<compile_context>
chip_gen: v7x
topology: tpu7x:2x2x1
jax: 0.10.0
libtpu: 0.0.40
codegen_flags: <defaults>
</compile_context>

<pallas_src>
import functools

import numpy as np
import jax
import jax.numpy as jnp
from jax import lax
from jax.experimental import pallas as pl
from jax.experimental.pallas import tpu as pltpu

EMB = 300            # GINet_Feat.emb_dim
FEAT = 512           # GINet_Feat.feat_dim
NUM_LAYER = 5        # GINet_Feat.num_layer
NUM_ATOM_TYPE = 119
NUM_CHIRALITY = 3
NUM_BOND_TYPE = 5
NUM_BOND_DIR = 3
BN_EPS = 1e-5


def _round_up(x, m):
    return (x + m - 1) // m * m


def _vmem_limit_bytes():
    # Generation-aware VMEM limit: ~3/4 of physical capacity, capped at 100 MiB
    # (v7x: 64 MiB -> 48 MiB; v5e/v6e: 128 MiB -> ~96-100 MiB).
    try:
        cap = int(pltpu.get_tpu_info().vmem_capacity_bytes)
    except Exception:
        cap = 64 * 1024 * 1024
    return int(max(32 * 1024 * 1024, min(cap * 3 // 4, 100 * 1024 * 1024)))


# --------------------------------------------------------------------------- kernels
def gin_tile_kernel(A_ref, h0_ref, eagg_ref, pind_ref,
                    gw1_ref, gb1_ref, gw2_ref, gb2_ref,
                    pool_ref):
    """5 GINEConv layers (+ folded BN) for one graph tile + per-tile pooled sums."""
    f32 = jnp.float32
    bf16 = jnp.bfloat16
    A = A_ref[...].astype(bf16)          # int8 counts -> bf16 (exact); hides under MXU

    def layer_body(l, h):
        # aggr[i] = sum_{e: dst(e)=i} (h[src(e)] + edge_emb[e]) == A @ h + eagg[l]
        aggr = jnp.dot(A, h.astype(bf16), preferred_element_type=f32) \
            + eagg_ref[l].astype(f32)
        # mlp: Linear(emb, 2*emb) -> ReLU -> Linear(2*emb, emb)  (BN folded into W2/b2)
        z = jnp.dot(aggr.astype(bf16), gw1_ref[l], preferred_element_type=f32) + gb1_ref[l]
        z = jnp.maximum(z, 0.0)
        h_new = jnp.dot(z.astype(bf16), gw2_ref[l], preferred_element_type=f32) + gb2_ref[l]
        # ReLU on all but the last layer; dropout = identity (eval mode)
        return jnp.where(l < NUM_LAYER - 1, jnp.maximum(h_new, 0.0), h_new)

    h = lax.fori_loop(0, NUM_LAYER, layer_body, h0_ref[...].astype(f32))

    # Per-tile pooled SUMS via a 0/1 indicator (padded node rows have zero columns,
    # so any bias-generated garbage in padding is masked out here).  The f32 1/count
    # mean-pool scale is applied outside the kernel.
    pool_ref[...] = jnp.dot(pind_ref[...], h.astype(bf16), preferred_element_type=f32)


def heads_kernel(pooled_ref, wfh_ref, bfh_ref, hwm_ref, hbm_ref, hwo_ref, hbo_ref,
                 out_ref, *, depth):
    """feat_lin (folded into head layer 1) + fused block-diagonal multi-task heads."""
    f32 = jnp.float32
    bf16 = jnp.bfloat16
    x = jnp.dot(pooled_ref[...], wfh_ref[...], preferred_element_type=f32) + bfh_ref[...]
    x = jnp.maximum(x, 0.0)                                                  # [Bp, T*256]
    for l in range(depth - 1):
        x = jnp.dot(x.astype(bf16), hwm_ref[l], preferred_element_type=f32) + hbm_ref[l]
        x = jnp.maximum(x, 0.0)
    out_ref[...] = jnp.dot(x.astype(bf16), hwo_ref[...], preferred_element_type=f32) \
        + hbo_ref[...]                                                       # [Bp, OUT_PAD]


# --------------------------------------------------------------------------- params
def init_params(key, num_tasks, depth):
    keys = iter(jax.random.split(key, 24))

    def nrm(shape, scale):
        return jax.random.normal(next(keys), shape, jnp.float32) * scale

    half = FEAT // 2
    p = {}
    p["x_emb1"] = nrm((NUM_ATOM_TYPE, EMB), 0.1)
    p["x_emb2"] = nrm((NUM_CHIRALITY, EMB), 0.1)
    p["edge_emb1"] = nrm((NUM_LAYER, NUM_BOND_TYPE, EMB), 0.1)
    p["edge_emb2"] = nrm((NUM_LAYER, NUM_BOND_DIR, EMB), 0.1)
    p["gin_w1"] = nrm((NUM_LAYER, EMB, 2 * EMB), 1.0 / np.sqrt(EMB))
    p["gin_b1"] = nrm((NUM_LAYER, 2 * EMB), 0.01)
    p["gin_w2"] = nrm((NUM_LAYER, 2 * EMB, EMB), 1.0 / np.sqrt(2 * EMB))
    p["gin_b2"] = nrm((NUM_LAYER, EMB), 0.01)
    p["bn_gamma"] = 1.0 + nrm((NUM_LAYER, EMB), 0.05)
    p["bn_beta"] = nrm((NUM_LAYER, EMB), 0.05)
    p["bn_mean"] = nrm((NUM_LAYER, EMB), 0.05)
    p["bn_var"] = 0.75 + 0.25 * jnp.abs(nrm((NUM_LAYER, EMB), 1.0))
    p["feat_w"] = nrm((EMB, FEAT), 1.0 / np.sqrt(EMB))
    p["feat_b"] = nrm((1, FEAT), 0.01)
    p["head_w1"] = nrm((num_tasks, FEAT, half), 1.0 / np.sqrt(FEAT))
    p["head_b1"] = nrm((num_tasks, half), 0.01)
    nm = max(num_tasks * (depth - 1), 1)
    p["head_wm"] = nrm((nm, half, half), 1.0 / np.sqrt(half))
    p["head_bm"] = nrm((nm, half), 0.01)
    p["head_wo"] = nrm((num_tasks, half, num_tasks), 1.0 / np.sqrt(half))
    p["head_bo"] = nrm((num_tasks, num_tasks), 0.01)
    return p


# --------------------------------------------------------------------------- glue
def _pack_graphs(batch_np, num_graphs, tile_n):
    """Greedily pack consecutive graphs into fixed-size node tiles (host-side glue)."""
    counts = np.bincount(batch_np, minlength=num_graphs).astype(np.int64)
    n_nodes = batch_np.shape[0]
    node_tile = np.zeros(n_nodes, np.int32)
    node_pos = np.zeros(n_nodes, np.int32)
    graph_tile = np.zeros(num_graphs, np.int32)
    graph_slot = np.zeros(num_graphs, np.int32)
    tile, cursor, slot, start = 0, 0, 0, 0
    for g in range(num_graphs):
        n = int(counts[g])
        assert n <= tile_n, "graph has more nodes than tile_n; raise tile_n"
        if cursor + n > tile_n:
            tile += 1
            cursor = 0
            slot = 0
        graph_tile[g] = tile
        graph_slot[g] = slot
        node_tile[start:start + n] = tile
        node_pos[start:start + n] = cursor + np.arange(n, dtype=np.int32)
        cursor += n
        slot += 1
        start += n
    num_tiles = tile + 1
    max_slots = int(graph_slot.max()) + 1 if num_graphs > 0 else 1
    return node_tile, node_pos, graph_tile, graph_slot, counts, num_tiles, max_slots


def _preprocess(params, x_nodes, edge_index, edge_attr, batch, num_graphs, tile_n):
    """Embedding gathers + graph packing -> per-tile operators (h0, A, eagg, pind)."""
    N = int(x_nodes.shape[0])
    batch_np = np.asarray(batch)
    (node_tile, node_pos, graph_tile, graph_slot,
     counts, T, max_slots) = _pack_graphs(batch_np, num_graphs, tile_n)
    GP = _round_up(max_slots, 8)

    # node embeddings
    h0 = params["x_emb1"][x_nodes[:, 0]] + params["x_emb2"][x_nodes[:, 1]]   # [N, 300]

    # add_self_loops + self-loop edge attr [4, 0]
    ei = np.asarray(edge_index)
    ea = np.asarray(edge_attr)
    sl = np.arange(N, dtype=ei.dtype)
    src = np.concatenate([ei[0], sl])
    dst = np.concatenate([ei[1], sl])
    sl_attr = np.stack([np.full((N,), 4, ea.dtype), np.zeros((N,), ea.dtype)], axis=1)
    ea = np.concatenate([ea, sl_attr], axis=0)

    # Per-graph block-diagonal adjacency stored as int8 counts per tile (exact).
    A_np = np.zeros((T, tile_n, tile_n), np.int32)
    np.add.at(A_np, (node_tile[dst], node_pos[dst], node_pos[src]), 1)
    A_tiled = jnp.asarray(np.clip(A_np, 0, 127).astype(np.int8))

    # Precomputed per-layer edge aggregation, scattered into tiles:
    #   eagg[t, l, i] = sum_{e: dst(e)=node (t,i)} edge_emb_l[e]
    dst_tile = jnp.asarray(node_tile[dst])
    dst_pos = jnp.asarray(node_pos[dst])
    eagg_layers = []
    for l in range(NUM_LAYER):
        eemb = params["edge_emb1"][l][ea[:, 0]] + params["edge_emb2"][l][ea[:, 1]]
        eagg_layers.append(
            jnp.zeros((T, tile_n, EMB), jnp.float32).at[dst_tile, dst_pos].add(eemb))
    eagg_tiled = jnp.stack(eagg_layers, axis=1).astype(jnp.bfloat16)   # [T, 5, tile_n, 300]

    h0_tiled = jnp.zeros((T, tile_n, EMB), jnp.bfloat16).at[
        jnp.asarray(node_tile), jnp.asarray(node_pos)].set(h0.astype(jnp.bfloat16))

    # 0/1 pooling indicator per tile (graph slot x node position).
    pind_np = np.zeros((T, GP, tile_n), np.float32)
    pind_np[node_tile, graph_slot[batch_np], node_pos] = 1.0
    pind_tiled = jnp.asarray(pind_np, dtype=jnp.bfloat16)

    return (h0_tiled, A_tiled, eagg_tiled, pind_tiled,
            jnp.asarray(graph_tile), jnp.asarray(graph_slot),
            jnp.asarray(counts.astype(np.float32)), T, GP)


# --------------------------------------------------------------------------- forward
def ginet_feat_mtl_forward(params, x_nodes, edge_index, edge_attr, batch,
                           num_graphs, num_tasks, depth, tile_n=128):
    bf16 = jnp.bfloat16
    (h0_tiled, A_tiled, eagg_tiled, pind_tiled,
     graph_tile, graph_slot, counts, T, GP) = _preprocess(
        params, x_nodes, edge_index, edge_attr, batch, num_graphs, tile_n)

    # ---- fold eval-mode BatchNorm into the second GIN linear (exact) ----
    inv = params["bn_gamma"] * jax.lax.rsqrt(params["bn_var"] + BN_EPS)         # [5, 300]
    gw1 = params["gin_w1"].astype(bf16)                                         # [5, 300, 600]
    gb1 = params["gin_b1"][:, None, :]                                          # [5, 1, 600]
    gw2 = (params["gin_w2"] * inv[:, None, :]).astype(bf16)                     # [5, 600, 300]
    gb2 = ((params["gin_b2"] - params["bn_mean"]) * inv + params["bn_beta"])[:, None, :]

    vmem_limit = _vmem_limit_bytes()
    const3 = lambda t: (0, 0, 0)

    # ---- kernel 1: GIN layers + per-tile pooled sums, ("parallel",) graph-tile grid ----
    pool_part = pl.pallas_call(
        gin_tile_kernel,
        out_shape=jax.ShapeDtypeStruct((T, GP, EMB), jnp.float32),
        grid=(T,),
        in_specs=[
            pl.BlockSpec((None, tile_n, tile_n), lambda t: (t, 0, 0)),            # A  (int8)
            pl.BlockSpec((None, tile_n, EMB), lambda t: (t, 0, 0)),               # h0 (bf16)
            pl.BlockSpec((None, NUM_LAYER, tile_n, EMB), lambda t: (t, 0, 0, 0)),  # eagg
            pl.BlockSpec((None, GP, tile_n), lambda t: (t, 0, 0)),                # pool ind.
            pl.BlockSpec((NUM_LAYER, EMB, 2 * EMB), const3),                      # gw1 resident
            pl.BlockSpec((NUM_LAYER, 1, 2 * EMB), const3),                        # gb1
            pl.BlockSpec((NUM_LAYER, 2 * EMB, EMB), const3),                      # gw2 (BN folded)
            pl.BlockSpec((NUM_LAYER, 1, EMB), const3),                            # gb2
        ],
        out_specs=pl.BlockSpec((None, GP, EMB), lambda t: (t, 0, 0)),
        compiler_params=pltpu.CompilerParams(
            dimension_semantics=("parallel",),
            vmem_limit_bytes=vmem_limit),
    )(A_tiled, h0_tiled, eagg_tiled, pind_tiled, gw1, gb1, gw2, gb2)

    # ---- mean pool: gather each graph's pooled sum, apply f32 1/count scale ----
    pooled = pool_part[graph_tile, graph_slot] / counts[:, None]                 # [B, 300] f32
    B_pad = _round_up(max(num_graphs, 1), 8)
    pooled_p = jnp.zeros((B_pad, EMB), bf16).at[:num_graphs].set(pooled.astype(bf16))

    # ---- fuse feat_lin into head layer 1 + block-diagonal multi-task heads ----
    half = FEAT // 2
    Th = num_tasks * half
    out_dim = num_tasks * num_tasks
    OUT_PAD = _round_up(out_dim, 128)

    W1 = params["head_w1"].transpose(1, 0, 2).reshape(FEAT, Th)                  # [512, T*256]
    b1 = params["head_b1"].reshape(1, Th)
    W_fh = (params["feat_w"] @ W1).astype(bf16)                                  # [300, T*256]
    b_fh = params["feat_b"] @ W1 + b1                                            # [1, T*256]

    nm = depth - 1
    if nm > 0:
        WM = jnp.stack([
            jax.scipy.linalg.block_diag(
                *[params["head_wm"][t * nm + l] for t in range(num_tasks)])
            for l in range(nm)]).astype(bf16)                                    # [nm, Th, Th]
        bM = params["head_bm"].reshape(num_tasks, nm, half).transpose(1, 0, 2).reshape(nm, 1, Th)
    else:
        WM = jnp.zeros((1, Th, Th), bf16)
        bM = jnp.zeros((1, 1, Th), jnp.float32)
    WO_bd = jax.scipy.linalg.block_diag(*[params["head_wo"][t] for t in range(num_tasks)])
    WO = jnp.zeros((Th, OUT_PAD), jnp.float32).at[:, :out_dim].set(WO_bd).astype(bf16)
    bO = jnp.zeros((1, OUT_PAD), jnp.float32).at[:, :out_dim].set(
        params["head_bo"].reshape(1, out_dim))

    vspec = pl.BlockSpec(memory_space=pltpu.MemorySpace.VMEM)
    out_full = pl.pallas_call(
        functools.partial(heads_kernel, depth=depth),
        out_shape=jax.ShapeDtypeStruct((B_pad, OUT_PAD), jnp.float32),
        in_specs=[vspec] * 7,
        out_specs=vspec,
        compiler_params=pltpu.CompilerParams(vmem_limit_bytes=vmem_limit),
    )(pooled_p, W_fh, b_fh, WM, bM, WO, bO)
    return out_full[:num_graphs, :out_dim]


# --------------------------------------------------------------------------- reference
def reference_forward(p, x_nodes, edge_index, edge_attr, batch,
                      num_graphs, num_tasks, depth):
    """Pure-JAX f32 reference mirroring the PyTorch forward (eval mode)."""
    N = x_nodes.shape[0]
    h = p["x_emb1"][x_nodes[:, 0]] + p["x_emb2"][x_nodes[:, 1]]
    sl = jnp.arange(N, dtype=edge_index.dtype)
    ei = jnp.concatenate([edge_index, jnp.stack([sl, sl])], axis=1)
    sl_attr = jnp.concatenate([jnp.full((N, 1), 4, edge_attr.dtype),
                               jnp.zeros((N, 1), edge_attr.dtype)], axis=1)
    ea = jnp.concatenate([edge_attr, sl_attr], axis=0)
    src, dst = ei[0], ei[1]
    for l in range(NUM_LAYER):
        eemb = p["edge_emb1"][l][ea[:, 0]] + p["edge_emb2"][l][ea[:, 1]]
        msg = h[src] + eemb
        aggr = jax.ops.segment_sum(msg, dst, num_segments=N)
        z = jax.nn.relu(aggr @ p["gin_w1"][l] + p["gin_b1"][l])
        h = z @ p["gin_w2"][l] + p["gin_b2"][l]
        h = (h - p["bn_mean"][l]) / jnp.sqrt(p["bn_var"][l] + BN_EPS) \
            * p["bn_gamma"][l] + p["bn_beta"][l]
        if l != NUM_LAYER - 1:
            h = jax.nn.relu(h)
    sums = jax.ops.segment_sum(h, batch, num_segments=num_graphs)
    cnt = jax.ops.segment_sum(jnp.ones((N,), jnp.float32), batch, num_segments=num_graphs)
    pooled = sums / cnt[:, None]
    feat = pooled @ p["feat_w"] + p["feat_b"]
    outs = []
    for t in range(num_tasks):
        xh = jax.nn.relu(feat @ p["head_w1"][t] + p["head_b1"][t])
        for li in range(depth - 1):
            idx = t * (depth - 1) + li
            xh = jax.nn.relu(xh @ p["head_wm"][idx] + p["head_bm"][idx])
        outs.append(xh @ p["head_wo"][t] + p["head_bo"][t])
    return jnp.concatenate(outs, axis=1)


if __name__ == "__main__":
    num_tasks = 3          # Feat_MTL num_tasks (each head outputs num_tasks -> concat = T*T)
    depth = 2              # pred_layer_depth
    num_graphs = 2
    nodes_per_graph = 6
    N = num_graphs * nodes_per_graph
    E = 16

    key = jax.random.PRNGKey(0)
    k1, k2, k3, k4, k5, k6 = jax.random.split(key, 6)
    atom = jax.random.randint(k1, (N, 1), 0, NUM_ATOM_TYPE, dtype=jnp.int32)
    chir = jax.random.randint(k2, (N, 1), 0, NUM_CHIRALITY, dtype=jnp.int32)
    x_nodes = jnp.concatenate([atom, chir], axis=1)

    src0 = jax.random.randint(k3, (E // 2,), 0, nodes_per_graph, dtype=jnp.int32)
    dst0 = jax.random.randint(k4, (E // 2,), 0, nodes_per_graph, dtype=jnp.int32)
    src = jnp.concatenate([src0, src0 + nodes_per_graph])
    dst = jnp.concatenate([dst0, dst0 + nodes_per_graph])
    edge_index = jnp.stack([src, dst]).astype(jnp.int32)
    bond_type = jax.random.randint(k5, (E,), 0, NUM_BOND_TYPE - 1, dtype=jnp.int32)
    bond_dir = jax.random.randint(k6, (E,), 0, NUM_BOND_DIR, dtype=jnp.int32)
    edge_attr = jnp.stack([bond_type, bond_dir], axis=1)
    batch = jnp.repeat(jnp.arange(num_graphs, dtype=jnp.int32), nodes_per_graph)

    params = init_params(jax.random.PRNGKey(1), num_tasks, depth)

    out = ginet_feat_mtl_forward(params, x_nodes, edge_index, edge_attr, batch,
                                 num_graphs, num_tasks, depth, tile_n=128)
    out = jax.block_until_ready(out)

    ref = reference_forward(params, x_nodes, edge_index, edge_attr, batch,
                            num_graphs, num_tasks, depth)
    # bf16 MXU matmuls with f32 accumulation vs f32 reference
    np.testing.assert_allclose(np.asarray(out), np.asarray(ref), rtol=3e-2, atol=3e-2)
    assert out.shape == (num_graphs, num_tasks * num_tasks)
    print("KERNEL_OK")
</pallas_src>

<mosaic_0001>
module attributes {stable_mosaic.version = 11 : i64} {
  func.func @gin_tile_kernel(%arg0: i32, %arg1: memref<1x128x128xi8, #tpu.memory_space<vmem>>, %arg2: memref<1x128x300xbf16, #tpu.memory_space<vmem>>, %arg3: memref<1x5x128x300xbf16, #tpu.memory_space<vmem>>, %arg4: memref<1x8x128xbf16, #tpu.memory_space<vmem>>, %arg5: memref<5x300x600xbf16, #tpu.memory_space<vmem>>, %arg6: memref<5x1x600xf32, #tpu.memory_space<vmem>>, %arg7: memref<5x600x300xbf16, #tpu.memory_space<vmem>>, %arg8: memref<5x1x300xf32, #tpu.memory_space<vmem>>, %arg9: memref<1x8x300xf32, #tpu.memory_space<vmem>>) attributes {dimension_semantics = [#tpu.dimension_semantics<parallel>], iteration_bounds = array<i64: 1>, scalar_prefetch = 0 : i64, scratch_operands = 0 : i64, tpu.core_type = #tpu.core_type<tc>, window_params = [{transform_indices = @transform_0, window_bounds = array<i64: 1, 128, 128>}, {transform_indices = @transform_1, window_bounds = array<i64: 1, 128, 300>}, {transform_indices = @transform_2, window_bounds = array<i64: 1, 5, 128, 300>}, {transform_indices = @transform_3, window_bounds = array<i64: 1, 8, 128>}, {pipeline_mode = #tpu.pipeline_mode<synchronous>, transform_indices = @transform_4, window_bounds = array<i64: 5, 300, 600>}, {pipeline_mode = #tpu.pipeline_mode<synchronous>, transform_indices = @transform_5, window_bounds = array<i64: 5, 1, 600>}, {pipeline_mode = #tpu.pipeline_mode<synchronous>, transform_indices = @transform_6, window_bounds = array<i64: 5, 600, 300>}, {pipeline_mode = #tpu.pipeline_mode<synchronous>, transform_indices = @transform_7, window_bounds = array<i64: 5, 1, 300>}, {transform_indices = @transform_8, window_bounds = array<i64: 1, 8, 300>}]} {
    %c0 = arith.constant 0 : index
    %c0_0 = arith.constant 0 : index
    %c0_1 = arith.constant 0 : index
    %0 = vector.load %arg1[%c0, %c0_0, %c0_1] : memref<1x128x128xi8, #tpu.memory_space<vmem>>, vector<1x128x128xi8>
    %1 = vector.shape_cast %0 : vector<1x128x128xi8> to vector<128x128xi8>
    %2 = arith.sitofp %1 : vector<128x128xi8> to vector<128x128xbf16>
    %c0_2 = arith.constant 0 : index
    %c0_3 = arith.constant 0 : index
    %c0_4 = arith.constant 0 : index
    %3 = vector.load %arg2[%c0_2, %c0_3, %c0_4] : memref<1x128x300xbf16, #tpu.memory_space<vmem>>, vector<1x128x300xbf16>
    %4 = vector.shape_cast %3 : vector<1x128x300xbf16> to vector<128x300xbf16>
    %5 = arith.extf %4 : vector<128x300xbf16> to vector<128x300xf32>
    %c0_i32 = arith.constant 0 : i32
    %c5_i32 = arith.constant 5 : i32
    %6 = arith.addi %c0_i32, %c5_i32 : i32
    %c1_i32 = arith.constant 1 : i32
    %7 = scf.for %arg10 = %c0_i32 to %6 step %c1_i32 iter_args(%arg11 = %5) -> (vector<128x300xf32>)  : i32 {
      %15 = arith.truncf %arg11 : vector<128x300xf32> to vector<128x300xbf16>
      %cst_12 = arith.constant dense<0.000000e+00> : vector<128x300xf32>
      %16 = tpu.matmul %2, %15, %cst_12 {dimension_numbers = #tpu.dot_dimension_numbers<[1], [0], [0], [1], [0, 0, 1, 1], [], []>} : vector<128x128xbf16>, vector<128x300xbf16>, vector<128x300xf32> -> vector<128x300xf32>
      %c0_13 = arith.constant 0 : index
      %17 = arith.index_cast %arg10 : i32 to index
      %c0_14 = arith.constant 0 : index
      %c0_15 = arith.constant 0 : index
      %18 = vector.load %arg3[%c0_13, %17, %c0_14, %c0_15] : memref<1x5x128x300xbf16, #tpu.memory_space<vmem>>, vector<1x1x128x300xbf16>
      %19 = vector.shape_cast %18 : vector<1x1x128x300xbf16> to vector<128x300xbf16>
      %20 = arith.extf %19 : vector<128x300xbf16> to vector<128x300xf32>
      %21 = arith.addf %16, %20 : vector<128x300xf32>
      %22 = arith.truncf %21 : vector<128x300xf32> to vector<128x300xbf16>
      %23 = arith.index_cast %arg10 : i32 to index
      %c0_16 = arith.constant 0 : index
      %c0_17 = arith.constant 0 : index
      %24 = vector.load %arg5[%23, %c0_16, %c0_17] : memref<5x300x600xbf16, #tpu.memory_space<vmem>>, vector<1x300x600xbf16>
      %25 = vector.shape_cast %24 : vector<1x300x600xbf16> to vector<300x600xbf16>
      %cst_18 = arith.constant dense<0.000000e+00> : vector<128x600xf32>
      %26 = tpu.matmul %22, %25, %cst_18 {dimension_numbers = #tpu.dot_dimension_numbers<[1], [0], [0], [1], [0, 0, 1, 1], [], []>} : vector<128x300xbf16>, vector<300x600xbf16>, vector<128x600xf32> -> vector<128x600xf32>
      %27 = arith.index_cast %arg10 : i32 to index
      %c0_19 = arith.constant 0 : index
      %c0_20 = arith.constant 0 : index
      %28 = vector.load %arg6[%27, %c0_19, %c0_20] : memref<5x1x600xf32, #tpu.memory_space<vmem>>, vector<1x1x600xf32>
      %29 = vector.shape_cast %28 : vector<1x1x600xf32> to vector<1x600xf32>
      %30 = vector.broadcast %29 : vector<1x600xf32> to vector<128x600xf32>
      %31 = arith.addf %26, %30 : vector<128x600xf32>
      %cst_21 = arith.constant 0.000000e+00 : f32
      %32 = vector.broadcast %cst_21 : f32 to vector<128x600xf32>
      %33 = arith.maximumf %31, %32 : vector<128x600xf32>
      %34 = arith.truncf %33 : vector<128x600xf32> to vector<128x600xbf16>
      %35 = arith.index_cast %arg10 : i32 to index
      %c0_22 = arith.constant 0 : index
      %c0_23 = arith.constant 0 : index
      %36 = vector.load %arg7[%35, %c0_22, %c0_23] : memref<5x600x300xbf16, #tpu.memory_space<vmem>>, vector<1x600x300xbf16>
      %37 = vector.shape_cast %36 : vector<1x600x300xbf16> to vector<600x300xbf16>
      %cst_24 = arith.constant dense<0.000000e+00> : vector<128x300xf32>
      %38 = tpu.matmul %34, %37, %cst_24 {dimension_numbers = #tpu.dot_dimension_numbers<[1], [0], [0], [1], [0, 0, 1, 1], [], []>} : vector<128x600xbf16>, vector<600x300xbf16>, vector<128x300xf32> -> vector<128x300xf32>
      %39 = arith.index_cast %arg10 : i32 to index
      %c0_25 = arith.constant 0 : index
      %c0_26 = arith.constant 0 : index
      %40 = vector.load %arg8[%39, %c0_25, %c0_26] : memref<5x1x300xf32, #tpu.memory_space<vmem>>, vector<1x1x300xf32>
      %41 = vector.shape_cast %40 : vector<1x1x300xf32> to vector<1x300xf32>
      %42 = vector.broadcast %41 : vector<1x300xf32> to vector<128x300xf32>
      %43 = arith.addf %38, %42 : vector<128x300xf32>
      %c4_i32 = arith.constant 4 : i32
      %44 = arith.cmpi slt, %arg10, %c4_i32 : i32
      %cst_27 = arith.constant 0.000000e+00 : f32
      %45 = vector.broadcast %cst_27 : f32 to vector<128x300xf32>
      %46 = arith.maximumf %43, %45 : vector<128x300xf32>
      %47 = arith.select %44, %46, %43 : vector<128x300xf32>
      scf.yield %47 : vector<128x300xf32>
    }
    %c5_i32_5 = arith.constant 5 : i32
    %c0_6 = arith.constant 0 : index
    %c0_7 = arith.constant 0 : index
    %c0_8 = arith.constant 0 : index
    %8 = vector.load %arg4[%c0_6, %c0_7, %c0_8] : memref<1x8x128xbf16, #tpu.memory_space<vmem>>, vector<1x8x128xbf16>
    %9 = vector.shape_cast %8 : vector<1x8x128xbf16> to vector<8x128xbf16>
    %10 = arith.truncf %7 : vector<128x300xf32> to vector<128x300xbf16>
    %cst = arith.constant dense<0.000000e+00> : vector<8x300xf32>
    %11 = tpu.matmul %9, %10, %cst {dimension_numbers = #tpu.dot_dimension_numbers<[1], [0], [0], [1], [0, 0, 1, 1], [], []>} : vector<8x128xbf16>, vector<128x300xbf16>, vector<8x300xf32> -> vector<8x300xf32>
    %c0_9 = arith.constant 0 : index
    %c0_10 = arith.constant 0 : index
    %c0_11 = arith.constant 0 : index
    %12 = vector.load %arg9[%c0_9, %c0_10, %c0_11] : memref<1x8x300xf32, #tpu.memory_space<vmem>>, vector<1x8x300xf32>
    %13 = vector.shape_cast %12 : vector<1x8x300xf32> to vector<8x300xf32>
    %14 = vector.shape_cast %11 : vector<8x300xf32> to vector<1x8x300xf32>
    tpu.vector_store %arg9[%c0_9, %c0_10, %c0_11], %14 {strides = array<i32>} : memref<1x8x300xf32, #tpu.memory_space<vmem>>, vector<1x8x300xf32>,
    return
  }
  func.func @transform_0(%arg0: i32) -> (i32, i32, i32) {
    %c0_i32 = arith.constant 0 : i32
    %c0_i32_0 = arith.constant 0 : i32
    %c0_i32_1 = arith.constant 0 : i32
    return %arg0, %c0_i32, %c0_i32_0 : i32, i32, i32
  }
  func.func @transform_1(%arg0: i32) -> (i32, i32, i32) {
    %c0_i32 = arith.constant 0 : i32
    %c0_i32_0 = arith.constant 0 : i32
    %c0_i32_1 = arith.constant 0 : i32
    return %arg0, %c0_i32, %c0_i32_0 : i32, i32, i32
  }
  func.func @transform_2(%arg0: i32) -> (i32, i32, i32, i32) {
    %c0_i32 = arith.constant 0 : i32
    %c0_i32_0 = arith.constant 0 : i32
    %c0_i32_1 = arith.constant 0 : i32
    %c0_i32_2 = arith.constant 0 : i32
    return %arg0, %c0_i32, %c0_i32_0, %c0_i32_1 : i32, i32, i32, i32
  }
  func.func @transform_3(%arg0: i32) -> (i32, i32, i32) {
    %c0_i32 = arith.constant 0 : i32
    %c0_i32_0 = arith.constant 0 : i32
    %c0_i32_1 = arith.constant 0 : i32
    return %arg0, %c0_i32, %c0_i32_0 : i32, i32, i32
  }
  func.func @transform_4(%arg0: i32) -> (i32, i32, i32) {
    %c0_i32 = arith.constant 0 : i32
    %c0_i32_0 = arith.constant 0 : i32
    %c0_i32_1 = arith.constant 0 : i32
    %c0_i32_2 = arith.constant 0 : i32
    return %c0_i32, %c0_i32_0, %c0_i32_1 : i32, i32, i32
  }
  func.func @transform_5(%arg0: i32) -> (i32, i32, i32) {
    %c0_i32 = arith.constant 0 : i32
    %c0_i32_0 = arith.constant 0 : i32
    %c0_i32_1 = arith.constant 0 : i32
    %c0_i32_2 = arith.constant 0 : i32
    return %c0_i32, %c0_i32_0, %c0_i32_1 : i32, i32, i32
  }
  func.func @transform_6(%arg0: i32) -> (i32, i32, i32) {
    %c0_i32 = arith.constant 0 : i32
    %c0_i32_0 = arith.constant 0 : i32
    %c0_i32_1 = arith.constant 0 : i32
    %c0_i32_2 = arith.constant 0 : i32
    return %c0_i32, %c0_i32_0, %c0_i32_1 : i32, i32, i32
  }
  func.func @transform_7(%arg0: i32) -> (i32, i32, i32) {
    %c0_i32 = arith.constant 0 : i32
    %c0_i32_0 = arith.constant 0 : i32
    %c0_i32_1 = arith.constant 0 : i32
    %c0_i32_2 = arith.constant 0 : i32
    return %c0_i32, %c0_i32_0, %c0_i32_1 : i32, i32, i32
  }
  func.func @transform_8(%arg0: i32) -> (i32, i32, i32) {
    %c0_i32 = arith.constant 0 : i32
    %c0_i32_0 = arith.constant 0 : i32
    %c0_i32_1 = arith.constant 0 : i32
    return %arg0, %c0_i32, %c0_i32_0 : i32, i32, i32
  }
}

</mosaic_0001>

<llo_original>
// kernel: tpu_custom_call.1
$region0: #{tpu_custom_call.1}
  #allocation0 [shape = 'u32[]', space=smem, size = 0x4, offset = 0x4, fixed_abs, tag = 'smem constant byte address 0x4 - core index']
  #allocation1 [shape = 'u32[144,128]{1,0:T(1,128)}', space=vmem, size = 0x12000, scoped, tag = 'internal scratch']
  %s0 = inlined_call_operand.vmem [shape: s8[1,128,128], index: 0, kind: input, shape index: {}]
  %s1 = inlined_call_operand.vmem [shape: bf16[1,128,300], index: 1, kind: input, shape index: {}]
  %s2 = inlined_call_operand.vmem [shape: bf16[1,5,128,300], index: 2, kind: input, shape index: {}]
  %s3 = inlined_call_operand.vmem [shape: bf16[1,8,128], index: 3, kind: input, shape index: {}]
  %s4 = inlined_call_operand.vmem [shape: bf16[5,300,600], index: 4, kind: input, shape index: {}]
  %s5 = inlined_call_operand.vmem [shape: f32[5,1,600], index: 5, kind: input, shape index: {}]
  %s6 = inlined_call_operand.vmem [shape: bf16[5,600,300], index: 6, kind: input, shape index: {}]
  %s7 = inlined_call_operand.vmem [shape: f32[5,1,300], index: 7, kind: input, shape index: {}]
  %s8 = inlined_call_operand.hbm [shape: f32[1,8,300], index: 8, kind: output, shape index: {}]
  %s9 = sld [smem:[#allocation0]]
  $region49: #{tpu_custom_call.1} parent=0
    _
  %s11 = ssub.s32 1, %s9
  %s12 = scalar_select 0, %s11, %s9
  $region1: #{tpu_custom_call.1} parent=0
    #allocation2 [shape = 'u8[12288]{0}', space=vmem, size = 0x3000, scoped, tag = 'output window, operand 0, single buffered']
    #allocation3 [shape = 's32[1]{0}', space=sflag, size = 0x4, scoped, tag = 'scoped memory for tpu_custom_call.1']
    %13 = vsyncpa [#allocation3], 0
    // Predicated region
    $region2: #{tpu_custom_call.1} parent=1 // pred_check
      _
    $region3: #{tpu_custom_call.1} parent=1 // pred_check_branch
      %15 = sbr.rel (0) target = $region5
    $region4: #{tpu_custom_call.1} parent=1 // pred_region
      _
    $region5: #{tpu_custom_call.1} parent=1 // pred_fallthru
      _
    // Predicated region
    $region6: #{tpu_custom_call.1} parent=1 // pred_check
      _
    $region7: #{tpu_custom_call.1} parent=1 // pred_check_branch
      %17 = sbr.rel (0) target = $region9
    $region8: #{tpu_custom_call.1} parent=1 // pred_region
      _
    $region9: #{tpu_custom_call.1} parent=1 // pred_fallthru
      _
    // Predicated region
    $region10: #{tpu_custom_call.1} parent=1 // pred_check
      _
    $region11: #{tpu_custom_call.1} parent=1 // pred_check_branch
      %19 = sbr.rel (0) target = $region13
    $region12: #{tpu_custom_call.1} parent=1 // pred_region
      _
    $region13: #{tpu_custom_call.1} parent=1 // pred_fallthru
      _
    // Predicated region
    $region14: #{tpu_custom_call.1} parent=1 // pred_check
      _
    $region15: #{tpu_custom_call.1} parent=1 // pred_check_branch
      %21 = sbr.rel (0) target = $region17
    $region16: #{tpu_custom_call.1} parent=1 // pred_region
      _
    $region17: #{tpu_custom_call.1} parent=1 // pred_fallthru
      _
    // Predicated region
    $region18: #{tpu_custom_call.1} parent=1 // pred_check
      _
    $region19: #{tpu_custom_call.1} parent=1 // pred_check_branch
      %23 = sbr.rel (0) target = $region21
    $region20: #{tpu_custom_call.1} parent=1 // pred_region
      _
    $region21: #{tpu_custom_call.1} parent=1 // pred_fallthru
      _
    // Predicated region
    $region22: #{tpu_custom_call.1} parent=1 // pred_check
      _
    $region23: #{tpu_custom_call.1} parent=1 // pred_check_branch
      %25 = sbr.rel (0) target = $region25
    $region24: #{tpu_custom_call.1} parent=1 // pred_region
      _
    $region25: #{tpu_custom_call.1} parent=1 // pred_fallthru
      _
    // Predicated region
    $region26: #{tpu_custom_call.1} parent=1 // pred_check
      _
    $region27: #{tpu_custom_call.1} parent=1 // pred_check_branch
      %27 = sbr.rel (0) target = $region29
    $region28: #{tpu_custom_call.1} parent=1 // pred_region
      _
    $region29: #{tpu_custom_call.1} parent=1 // pred_fallthru
      _
    // Predicated region
    $region30: #{tpu_custom_call.1} parent=1 // pred_check
      _
    $region31: #{tpu_custom_call.1} parent=1 // pred_check_branch
      %29 = sbr.rel (0) target = $region33
    $region32: #{tpu_custom_call.1} parent=1 // pred_region
      _
    $region33: #{tpu_custom_call.1} parent=1 // pred_fallthru
      _
    %v31 = vld [vmem:[%s0] sm:$0xff]
    %v32 = vld [vmem:[%s0 + $0x8] sm:$0xff]
    %v33 = vld [vmem:[%s0 + $0x10] sm:$0xff]
    %v34 = vld [vmem:[%s0 + $0x18] sm:$0xff]
    %v35 = vunpack.c.l.s8.bf16 %v31
    %v36 = vunpack.c.h.s8.bf16 %v31
    %v37 = vunpack.c.l.s8.bf16 %v32
    %v38 = vunpack.c.h.s8.bf16 %v32
    %v39 = vunpack.c.l.s8.bf16 %v33
    %v40 = vunpack.c.h.s8.bf16 %v33
    %v41 = vunpack.c.l.s8.bf16 %v34
    %v42 = vunpack.c.h.s8.bf16 %v34
    %v43 = vld [vmem:[%s1] sm:$0xff]
    %v44 = vld [vmem:[%s1 + $0x8] sm:$0xf]
    %v45 = vld [vmem:[%s1 + $0xc] sm:$0xff]
    %v46 = vld [vmem:[%s1 + $0x14] sm:$0xf]
    %v47 = vld [vmem:[%s1 + $0x18] sm:$0xff]
    %v48 = vld [vmem:[%s1 + $0x20] sm:$0xf]
    %v49 = vld [vmem:[%s1 + $0x24] sm:$0xff]
    %v50 = vld [vmem:[%s1 + $0x2c] sm:$0xf]
    %v51 = vld [vmem:[%s1 + $0x30] sm:$0xff]
    %v52 = vld [vmem:[%s1 + $0x38] sm:$0xf]
    %v53 = vld [vmem:[%s1 + $0x3c] sm:$0xff]
    %v54 = vld [vmem:[%s1 + $0x44] sm:$0xf]
    %v55 = vld [vmem:[%s1 + $0x48] sm:$0xff]
    %v56 = vld [vmem:[%s1 + $0x50] sm:$0xf]
    %v57 = vld [vmem:[%s1 + $0x54] sm:$0xff]
    %v58 = vld [vmem:[%s1 + $0x5c] sm:$0xf]
    %v59 = vld [vmem:[%s1 + $0x60] sm:$0xff]
    %v60 = vld [vmem:[%s1 + $0x68] sm:$0xf]
    %v61 = vld [vmem:[%s1 + $0x6c] sm:$0xff]
    %v62 = vld [vmem:[%s1 + $0x74] sm:$0xf]
    %v63 = vld [vmem:[%s1 + $0x78] sm:$0xff]
    %v64 = vld [vmem:[%s1 + $0x80] sm:$0xf]
    %v65 = vld [vmem:[%s1 + $0x84] sm:$0xff]
    %v66 = vld [vmem:[%s1 + $0x8c] sm:$0xf]
    %v67 = vld [vmem:[%s1 + $0x90] sm:$0xff]
    %v68 = vld [vmem:[%s1 + $0x98] sm:$0xf]
    %v69 = vld [vmem:[%s1 + $0x9c] sm:$0xff]
    %v70 = vld [vmem:[%s1 + $0xa4] sm:$0xf]
    %v71 = vld [vmem:[%s1 + $0xa8] sm:$0xff]
    %v72 = vld [vmem:[%s1 + $0xb0] sm:$0xf]
    %v73 = vld [vmem:[%s1 + $0xb4] sm:$0xff]
    %v74 = vld [vmem:[%s1 + $0xbc] sm:$0xf]
    %v75 = vunpack.c.l.bf16 %v43
    %v76 = vunpack.c.h.bf16 %v43
    %v77 = vunpack.c.l.bf16 %v44
    %v78 = vunpack.c.l.bf16 %v45
    %v79 = vunpack.c.h.bf16 %v45
    %v80 = vunpack.c.l.bf16 %v46
    %v81 = vunpack.c.l.bf16 %v47
    %v82 = vunpack.c.h.bf16 %v47
    %v83 = vunpack.c.l.bf16 %v48
    %v84 = vunpack.c.l.bf16 %v49
    %v85 = vunpack.c.h.bf16 %v49
    %v86 = vunpack.c.l.bf16 %v50
    %v87 = vunpack.c.l.bf16 %v51
    %v88 = vunpack.c.h.bf16 %v51
    %v89 = vunpack.c.l.bf16 %v52
    %v90 = vunpack.c.l.bf16 %v53
    %v91 = vunpack.c.h.bf16 %v53
    %v92 = vunpack.c.l.bf16 %v54
    %v93 = vunpack.c.l.bf16 %v55
    %v94 = vunpack.c.h.bf16 %v55
    %v95 = vunpack.c.l.bf16 %v56
    %v96 = vunpack.c.l.bf16 %v57
    %v97 = vunpack.c.h.bf16 %v57
    %v98 = vunpack.c.l.bf16 %v58
    %v99 = vunpack.c.l.bf16 %v59
    %v100 = vunpack.c.h.bf16 %v59
    %v101 = vunpack.c.l.bf16 %v60
    %v102 = vunpack.c.l.bf16 %v61
    %v103 = vunpack.c.h.bf16 %v61
    %v104 = vunpack.c.l.bf16 %v62
    %v105 = vunpack.c.l.bf16 %v63
    %v106 = vunpack.c.h.bf16 %v63
    %v107 = vunpack.c.l.bf16 %v64
    %v108 = vunpack.c.l.bf16 %v65
    %v109 = vunpack.c.h.bf16 %v65
    %v110 = vunpack.c.l.bf16 %v66
    %v111 = vunpack.c.l.bf16 %v67
    %v112 = vunpack.c.h.bf16 %v67
    %v113 = vunpack.c.l.bf16 %v68
    %v114 = vunpack.c.l.bf16 %v69
    %v115 = vunpack.c.h.bf16 %v69
    %v116 = vunpack.c.l.bf16 %v70
    %v117 = vunpack.c.l.bf16 %v71
    %v118 = vunpack.c.h.bf16 %v71
    %v119 = vunpack.c.l.bf16 %v72
    %v120 = vunpack.c.l.bf16 %v73
    %v121 = vunpack.c.h.bf16 %v73
    %v122 = vunpack.c.l.bf16 %v74
    loop: start=0, step=1, limit=5
    $region34: #{tpu_custom_call.1} parent=1 // loop_pre_header
      _
    $region35: #{tpu_custom_call.1} parent=1 // loop_header
      %s124 = sphi 0, %s128
      %p125 = scmp.ge.s32.totalorder %s124, 5
      %v129 = vphi %v75, %v3449
      %v130 = vphi %v76, %v3450
      %v131 = vphi %v77, %v3451
      %v132 = vphi %v78, %v3452
      %v133 = vphi %v79, %v3453
      %v134 = vphi %v80, %v3454
      %v135 = vphi %v81, %v3455
      %v136 = vphi %v82, %v3456
      %v137 = vphi %v83, %v3457
      %v138 = vphi %v84, %v3458
      %v139 = vphi %v85, %v3459
      %v140 = vphi %v86, %v3460
      %v141 = vphi %v87, %v3461
      %v142 = vphi %v88, %v3462
      %v143 = vphi %v89, %v3463
      %v144 = vphi %v90, %v3464
      %v145 = vphi %v91, %v3465
      %v146 = vphi %v92, %v3466
      %v147 = vphi %v93, %v3467
      %v148 = vphi %v94, %v3468
      %v149 = vphi %v95, %v3469
      %v150 = vphi %v96, %v3470
      %v151 = vphi %v97, %v3471
      %v152 = vphi %v98, %v3472
      %v153 = vphi %v99, %v3473
      %v154 = vphi %v100, %v3474
      %v155 = vphi %v101, %v3475
      %v156 = vphi %v102, %v3476
      %v157 = vphi %v103, %v3477
      %v158 = vphi %v104, %v3478
      %v159 = vphi %v105, %v3479
      %v160 = vphi %v106, %v3480
      %v161 = vphi %v107, %v3481
      %v162 = vphi %v108, %v3482
      %v163 = vphi %v109, %v3483
      %v164 = vphi %v110, %v3484
      %v165 = vphi %v111, %v3485
      %v166 = vphi %v112, %v3486
      %v167 = vphi %v113, %v3487
      %v168 = vphi %v114, %v3488
      %v169 = vphi %v115, %v3489
      %v170 = vphi %v116, %v3490
      %v171 = vphi %v117, %v3491
      %v172 = vphi %v118, %v3492
      %v173 = vphi %v119, %v3493
      %v174 = vphi %v120, %v3494
      %v175 = vphi %v121, %v3495
      %v176 = vphi %v122, %v3496
    $region36: #{tpu_custom_call.1} parent=1 // loop_header_branch
      %127 = sbr.rel (%p125) target = $region40
    $region37: #{tpu_custom_call.1} parent=1 // loop_body
      %v177 = vpack.c.bf16 %v132, %v129
      %v178 = vpack.c.bf16 %v133, %v130
      %v179 = vpack.c.bf16 %v134, %v131
      %v180 = vpack.c.bf16 %v138, %v135
      %v181 = vpack.c.bf16 %v139, %v136
      %v182 = vpack.c.bf16 %v140, %v137
      %v183 = vpack.c.bf16 %v144, %v141
      %v184 = vpack.c.bf16 %v145, %v142
      %v185 = vpack.c.bf16 %v146, %v143
      %v186 = vpack.c.bf16 %v150, %v147
      %v187 = vpack.c.bf16 %v151, %v148
      %v188 = vpack.c.bf16 %v152, %v149
      %v189 = vpack.c.bf16 %v156, %v153
      %v190 = vpack.c.bf16 %v157, %v154
      %v191 = vpack.c.bf16 %v158, %v155
      %v192 = vpack.c.bf16 %v162, %v159
      %v193 = vpack.c.bf16 %v163, %v160
      %v194 = vpack.c.bf16 %v164, %v161
      %v195 = vpack.c.bf16 %v168, %v165
      %v196 = vpack.c.bf16 %v169, %v166
      %v197 = vpack.c.bf16 %v170, %v167
      %v198 = vpack.c.bf16 %v174, %v171
      %v199 = vpack.c.bf16 %v175, %v172
      %v200 = vpack.c.bf16 %v176, %v173
      %s201 = smul.u32 %s124, 48
      %s202 = smul.addr %s201, 4
      %s203 = scalar_lea.vmem %s2, %s202
      %v204 = vld [vmem:[%s203] sm:$0xff]
      %v205 = vld [vmem:[%s203 + $0x8] sm:$0xf]
      %v206 = vld [vmem:[%s203 + $0xc] sm:$0xff]
      %v207 = vld [vmem:[%s203 + $0x14] sm:$0xf]
      %v208 = vld [vmem:[%s203 + $0x18] sm:$0xff]
      %v209 = vld [vmem:[%s203 + $0x20] sm:$0xf]
      %v210 = vld [vmem:[%s203 + $0x24] sm:$0xff]
      %v211 = vld [vmem:[%s203 + $0x2c] sm:$0xf]
      %v212 = vld [vmem:[%s203 + $0x30] sm:$0xff]
      %v213 = vld [vmem:[%s203 + $0x38] sm:$0xf]
      %v214 = vld [vmem:[%s203 + $0x3c] sm:$0xff]
      %v215 = vld [vmem:[%s203 + $0x44] sm:$0xf]
      %v216 = vld [vmem:[%s203 + $0x48] sm:$0xff]
      %v217 = vld [vmem:[%s203 + $0x50] sm:$0xf]
      %v218 = vld [vmem:[%s203 + $0x54] sm:$0xff]
      %v219 = vld [vmem:[%s203 + $0x5c] sm:$0xf]
      %v220 = vld [vmem:[%s203 + $0x60] sm:$0xff]
      %v221 = vld [vmem:[%s203 + $0x68] sm:$0xf]
      %v222 = vld [vmem:[%s203 + $0x6c] sm:$0xff]
      %v223 = vld [vmem:[%s203 + $0x74] sm:$0xf]
      %v224 = vld [vmem:[%s203 + $0x78] sm:$0xff]
      %v225 = vld [vmem:[%s203 + $0x80] sm:$0xf]
      %v226 = vld [vmem:[%s203 + $0x84] sm:$0xff]
      %v227 = vld [vmem:[%s203 + $0x8c] sm:$0xf]
      %v228 = vld [vmem:[%s203 + $0x90] sm:$0xff]
      %v229 = vld [vmem:[%s203 + $0x98] sm:$0xf]
      %v230 = vld [vmem:[%s203 + $0x9c] sm:$0xff]
      %v231 = vld [vmem:[%s203 + $0xa4] sm:$0xf]
      %v232 = vld [vmem:[%s203 + $0xa8] sm:$0xff]
      %v233 = vld [vmem:[%s203 + $0xb0] sm:$0xf]
      %v234 = vld [vmem:[%s203 + $0xb4] sm:$0xff]
      %v235 = vld [vmem:[%s203 + $0xbc] sm:$0xf]
      %v236 = vunpack.c.l.bf16 %v204
      %v237 = vunpack.c.h.bf16 %v204
      %v238 = vunpack.c.l.bf16 %v205
      %v239 = vunpack.c.l.bf16 %v206
      %v240 = vunpack.c.h.bf16 %v206
      %v241 = vunpack.c.l.bf16 %v207
      %v242 = vunpack.c.l.bf16 %v208
      %v243 = vunpack.c.h.bf16 %v208
      %v244 = vunpack.c.l.bf16 %v209
      %v245 = vunpack.c.l.bf16 %v210
      %v246 = vunpack.c.h.bf16 %v210
      %v247 = vunpack.c.l.bf16 %v211
      %v248 = vunpack.c.l.bf16 %v212
      %v249 = vunpack.c.h.bf16 %v212
      %v250 = vunpack.c.l.bf16 %v213
      %v251 = vunpack.c.l.bf16 %v214
      %v252 = vunpack.c.h.bf16 %v214
      %v253 = vunpack.c.l.bf16 %v215
      %v254 = vunpack.c.l.bf16 %v216
      %v255 = vunpack.c.h.bf16 %v216
      %v256 = vunpack.c.l.bf16 %v217
      %v257 = vunpack.c.l.bf16 %v218
      %v258 = vunpack.c.h.bf16 %v218
      %v259 = vunpack.c.l.bf16 %v219
      %v260 = vunpack.c.l.bf16 %v220
      %v261 = vunpack.c.h.bf16 %v220
      %v262 = vunpack.c.l.bf16 %v221
      %v263 = vunpack.c.l.bf16 %v222
      %v264 = vunpack.c.h.bf16 %v222
      %v265 = vunpack.c.l.bf16 %v223
      %v266 = vunpack.c.l.bf16 %v224
      %v267 = vunpack.c.h.bf16 %v224
      %v268 = vunpack.c.l.bf16 %v225
      %v269 = vunpack.c.l.bf16 %v226
      %v270 = vunpack.c.h.bf16 %v226
      %v271 = vunpack.c.l.bf16 %v227
      %v272 = vunpack.c.l.bf16 %v228
      %v273 = vunpack.c.h.bf16 %v228
      %v274 = vunpack.c.l.bf16 %v229
      %v275 = vunpack.c.l.bf16 %v230
      %v276 = vunpack.c.h.bf16 %v230
      %v277 = vunpack.c.l.bf16 %v231
      %v278 = vunpack.c.l.bf16 %v232
      %v279 = vunpack.c.h.bf16 %v232
      %v280 = vunpack.c.l.bf16 %v233
      %v281 = vunpack.c.l.bf16 %v234
      %v282 = vunpack.c.h.bf16 %v234
      %v283 = vunpack.c.l.bf16 %v235
      %284 = vmatprep.subr.bf16.mxu0 %v178
      %285 = vmatpush1.bf16.msra.mxu0 %v177
      %286 = vmatprep.subr.bf16.mxu0 %v181
      %287 = vmatpush1.bf16.msra.mxu0 %v180
      %288 = vmatprep.subr.bf16.mxu0 %v184
      %289 = vmatpush1.bf16.msra.mxu0 %v183
      %290 = vmatprep.subr.bf16.mxu0 %v187
      %291 = vmatpush1.bf16.msra.mxu0 %v186
      %292 = vmatprep.subr.bf16.mxu0 %v190
      %293 = vmatpush1.bf16.msra.mxu0 %v189
      %294 = vmatprep.subr.bf16.mxu0 %v193
      %295 = vmatpush1.bf16.msra.mxu0 %v192
      %296 = vmatprep.subr.bf16.mxu0 %v196
      %297 = vmatpush1.bf16.msra.mxu0 %v195
      %298 = vmatprep.subr.bf16.mxu0 %v199
      %299 = vmatpush1.bf16.msra.mxu0 %v198
      %300 = vmatprep.subr.bf16.mxu0 0
      %301 = vmatpush1.bf16.msra.mxu0 0
      %302 = vmatprep.subr.bf16.mxu0 0
      %303 = vmatpush1.bf16.msra.mxu0 0
      %304 = vmatprep.subr.bf16.mxu0 0
      %305 = vmatpush1.bf16.msra.mxu0 0
      %306 = vmatprep.subr.bf16.mxu0 0
      %307 = vmatpush1.bf16.msra.mxu0 0
      %308 = vmatprep.subr.bf16.mxu0 0
      %309 = vmatpush1.bf16.msra.mxu0 0
      %310 = vmatprep.subr.bf16.mxu0 0
      %311 = vmatpush1.bf16.msra.mxu0 0
      %312 = vmatprep.subr.bf16.mxu0 0
      %313 = vmatpush1.bf16.msra.mxu0 0
      %314 = vmatprep.subr.bf16.mxu0 0
      %315 = vmatpush1.bf16.msra.mxu0 0
      %316 = vmatprep.mubr.bf16.mxu0 0
      %317 = vmatmul.mubr.bf16.gmra.mrb[0].mxu0 %v35
      %v318 = vpop.f32.mrb[0].mxu0
      %v319 = vadd.f32 %v236, %v318
      %v320 = vpop.f32.mrb[0].mxu0
      %v321 = vadd.f32 %v237, %v320
      %v322 = vpop.f32.mrb[0].mxu0
      %v323 = vadd.f32 %v239, %v322
      %v324 = vpop.f32.mrb[0].mxu0
      %v325 = vadd.f32 %v240, %v324
      %326 = vmatprep.mubr.bf16.mxu0 0
      %327 = vmatmul.mubr.bf16.gmra.mrb[0].mxu0 %v36
      %v328 = vpop.f32.mrb[0].mxu0
      %v329 = vadd.f32 %v242, %v328
      %v330 = vpop.f32.mrb[0].mxu0
      %v331 = vadd.f32 %v243, %v330
      %v332 = vpop.f32.mrb[0].mxu0
      %v333 = vadd.f32 %v245, %v332
      %v334 = vpop.f32.mrb[0].mxu0
      %v335 = vadd.f32 %v246, %v334
      %336 = vmatprep.mubr.bf16.mxu0 0
      %337 = vmatmul.mubr.bf16.gmra.mrb[0].mxu0 %v37
      %v338 = vpop.f32.mrb[0].mxu0
      %v339 = vadd.f32 %v248, %v338
      %v340 = vpop.f32.mrb[0].mxu0
      %v341 = vadd.f32 %v249, %v340
      %v342 = vpop.f32.mrb[0].mxu0
      %v343 = vadd.f32 %v251, %v342
      %v344 = vpop.f32.mrb[0].mxu0
      %v345 = vadd.f32 %v252, %v344
      %346 = vmatprep.mubr.bf16.mxu0 0
      %347 = vmatmul.mubr.bf16.gmra.mrb[0].mxu0 %v38
      %v348 = vpop.f32.mrb[0].mxu0
      %v349 = vadd.f32 %v254, %v348
      %v350 = vpop.f32.mrb[0].mxu0
      %v351 = vadd.f32 %v255, %v350
      %v352 = vpop.f32.mrb[0].mxu0
      %v353 = vadd.f32 %v257, %v352
      %v354 = vpop.f32.mrb[0].mxu0
      %v355 = vadd.f32 %v258, %v354
      %356 = vmatprep.mubr.bf16.mxu0 0
      %357 = vmatmul.mubr.bf16.gmra.mrb[0].mxu0 %v39
      %v358 = vpop.f32.mrb[0].mxu0
      %v359 = vadd.f32 %v260, %v358
      %v360 = vpop.f32.mrb[0].mxu0
      %v361 = vadd.f32 %v261, %v360
      %v362 = vpop.f32.mrb[0].mxu0
      %v363 = vadd.f32 %v263, %v362
      %v364 = vpop.f32.mrb[0].mxu0
      %v365 = vadd.f32 %v264, %v364
      %366 = vmatprep.mubr.bf16.mxu0 0
      %367 = vmatmul.mubr.bf16.gmra.mrb[0].mxu0 %v40
      %v368 = vpop.f32.mrb[0].mxu0
      %v369 = vadd.f32 %v266, %v368
      %v370 = vpop.f32.mrb[0].mxu0
      %v371 = vadd.f32 %v267, %v370
      %v372 = vpop.f32.mrb[0].mxu0
      %v373 = vadd.f32 %v269, %v372
      %v374 = vpop.f32.mrb[0].mxu0
      %v375 = vadd.f32 %v270, %v374
      %376 = vmatprep.mubr.bf16.mxu0 0
      %377 = vmatmul.mubr.bf16.gmra.mrb[0].mxu0 %v41
      %v378 = vpop.f32.mrb[0].mxu0
      %v379 = vadd.f32 %v272, %v378
      %v380 = vpop.f32.mrb[0].mxu0
      %v381 = vadd.f32 %v273, %v380
      %v382 = vpop.f32.mrb[0].mxu0
      %v383 = vadd.f32 %v275, %v382
      %v384 = vpop.f32.mrb[0].mxu0
      %v385 = vadd.f32 %v276, %v384
      %386 = vmatprep.mubr.bf16.mxu0 0
      %387 = vmatmul.mubr.bf16.gmra.mrb[0].mxu0 %v42
      %v388 = vpop.f32.mrb[0].mxu0
      %v389 = vadd.f32 %v278, %v388
      %v390 = vpop.f32.mrb[0].mxu0
      %v391 = vadd.f32 %v279, %v390
      %v392 = vpop.f32.mrb[0].mxu0
      %v393 = vadd.f32 %v281, %v392
      %v394 = vpop.f32.mrb[0].mxu0
      %v395 = vadd.f32 %v282, %v394
      %396 = vdwg.mxu0
      %397 = vmatprep.subr.bf16.mxu0 0
      %398 = vmatpush1.bf16.msra.mxu0 %v179
      %399 = vmatprep.subr.bf16.mxu0 0
      %400 = vmatpush1.bf16.msra.mxu0 %v182
      %401 = vmatprep.subr.bf16.mxu0 0
      %402 = vmatpush1.bf16.msra.mxu0 %v185
      %403 = vmatprep.subr.bf16.mxu0 0
      %404 = vmatpush1.bf16.msra.mxu0 %v188
      %405 = vmatprep.subr.bf16.mxu0 0
      %406 = vmatpush1.bf16.msra.mxu0 %v191
      %407 = vmatprep.subr.bf16.mxu0 0
      %408 = vmatpush1.bf16.msra.mxu0 %v194
      %409 = vmatprep.subr.bf16.mxu0 0
      %410 = vmatpush1.bf16.msra.mxu0 %v197
      %411 = vmatprep.subr.bf16.mxu0 0
      %412 = vmatpush1.bf16.msra.mxu0 %v200
      %413 = vmatprep.subr.bf16.mxu0 0
      %414 = vmatpush1.bf16.msra.mxu0 0
      %415 = vmatprep.subr.bf16.mxu0 0
      %416 = vmatpush1.bf16.msra.mxu0 0
      %417 = vmatprep.subr.bf16.mxu0 0
      %418 = vmatpush1.bf16.msra.mxu0 0
      %419 = vmatprep.subr.bf16.mxu0 0
      %420 = vmatpush1.bf16.msra.mxu0 0
      %421 = vmatprep.subr.bf16.mxu0 0
      %422 = vmatpush1.bf16.msra.mxu0 0
      %423 = vmatprep.subr.bf16.mxu0 0
      %424 = vmatpush1.bf16.msra.mxu0 0
      %425 = vmatprep.subr.bf16.mxu0 0
      %426 = vmatpush1.bf16.msra.mxu0 0
      %427 = vmatprep.subr.bf16.mxu0 0
      %428 = vmatpush1.bf16.msra.mxu0 0
      %429 = vmatprep.mubr.bf16.mxu0 0
      %430 = vmatmul.mubr.bf16.gmra.mrb[0].mxu0 %v35
      %v431 = vpop.f32.mrb[0].mxu0
      %v432 = vadd.f32 %v238, %v431
      %v433 = vpop.f32.mrb[0].mxu0
      %v434 = vpop.f32.mrb[0].mxu0
      %v435 = vadd.f32 %v241, %v434
      %v436 = vpop.f32.mrb[0].mxu0
      %437 = vmatprep.mubr.bf16.mxu0 0
      %438 = vmatmul.mubr.bf16.gmra.mrb[0].mxu0 %v36
      %v439 = vpop.f32.mrb[0].mxu0
      %v440 = vadd.f32 %v244, %v439
      %v441 = vpop.f32.mrb[0].mxu0
      %v442 = vpop.f32.mrb[0].mxu0
      %v443 = vadd.f32 %v247, %v442
      %v444 = vpop.f32.mrb[0].mxu0
      %445 = vmatprep.mubr.bf16.mxu0 0
      %446 = vmatmul.mubr.bf16.gmra.mrb[0].mxu0 %v37
      %v447 = vpop.f32.mrb[0].mxu0
      %v448 = vadd.f32 %v250, %v447
      %v449 = vpop.f32.mrb[0].mxu0
      %v450 = vpop.f32.mrb[0].mxu0
      %v451 = vadd.f32 %v253, %v450
      %v452 = vpop.f32.mrb[0].mxu0
      %453 = vmatprep.mubr.bf16.mxu0 0
      %454 = vmatmul.mubr.bf16.gmra.mrb[0].mxu0 %v38
      %v455 = vpop.f32.mrb[0].mxu0
      %v456 = vadd.f32 %v256, %v455
      %v457 = vpop.f32.mrb[0].mxu0
      %v458 = vpop.f32.mrb[0].mxu0
      %v459 = vadd.f32 %v259, %v458
      %v460 = vpop.f32.mrb[0].mxu0
      %461 = vmatprep.mubr.bf16.mxu0 0
      %462 = vmatmul.mubr.bf16.gmra.mrb[0].mxu0 %v39
      %v463 = vpop.f32.mrb[0].mxu0
      %v464 = vadd.f32 %v262, %v463
      %v465 = vpop.f32.mrb[0].mxu0
      %v466 = vpop.f32.mrb[0].mxu0
      %v467 = vadd.f32 %v265, %v466
      %v468 = vpop.f32.mrb[0].mxu0
      %469 = vmatprep.mubr.bf16.mxu0 0
      %470 = vmatmul.mubr.bf16.gmra.mrb[0].mxu0 %v40
      %v471 = vpop.f32.mrb[0].mxu0
      %v472 = vadd.f32 %v268, %v471
      %v473 = vpop.f32.mrb[0].mxu0
      %v474 = vpop.f32.mrb[0].mxu0
      %v475 = vadd.f32 %v271, %v474
      %v476 = vpop.f32.mrb[0].mxu0
      %477 = vmatprep.mubr.bf16.mxu0 0
      %478 = vmatmul.mubr.bf16.gmra.mrb[0].mxu0 %v41
      %v479 = vpop.f32.mrb[0].mxu0
      %v480 = vadd.f32 %v274, %v479
      %v481 = vpop.f32.mrb[0].mxu0
      %v482 = vpop.f32.mrb[0].mxu0
      %v483 = vadd.f32 %v277, %v482
      %v484 = vpop.f32.mrb[0].mxu0
      %485 = vmatprep.mubr.bf16.mxu0 0
      %486 = vmatmul.mubr.bf16.gmra.mrb[0].mxu0 %v42
      %v487 = vpop.f32.mrb[0].mxu0
      %v488 = vadd.f32 %v280, %v487
      %v489 = vpop.f32.mrb[0].mxu0
      %v490 = vpop.f32.mrb[0].mxu0
      %v491 = vadd.f32 %v283, %v490
      %v492 = vpop.f32.mrb[0].mxu0
      %493 = vdwg.mxu0
      %v494 = vpack.c.bf16 %v323, %v319
      %v495 = vpack.c.bf16 %v325, %v321
      %v496 = vpack.c.bf16 %v435, %v432
      %v497 = vpack.c.bf16 %v333, %v329
      %v498 = vpack.c.bf16 %v335, %v331
      %v499 = vpack.c.bf16 %v443, %v440
      %v500 = vpack.c.bf16 %v343, %v339
      %v501 = vpack.c.bf16 %v345, %v341
      %v502 = vpack.c.bf16 %v451, %v448
      %v503 = vpack.c.bf16 %v353, %v349
      %v504 = vpack.c.bf16 %v355, %v351
      %v505 = vpack.c.bf16 %v459, %v456
      %v506 = vpack.c.bf16 %v363, %v359
      %v507 = vpack.c.bf16 %v365, %v361
      %v508 = vpack.c.bf16 %v467, %v464
      %v509 = vpack.c.bf16 %v373, %v369
      %v510 = vpack.c.bf16 %v375, %v371
      %v511 = vpack.c.bf16 %v475, %v472
      %v512 = vpack.c.bf16 %v383, %v379
      %v513 = vpack.c.bf16 %v385, %v381
      %v514 = vpack.c.bf16 %v483, %v480
      %v515 = vpack.c.bf16 %v393, %v389
      %v516 = vpack.c.bf16 %v395, %v391
      %v517 = vpack.c.bf16 %v491, %v488
      %s518 = smul.u32 %s124, 190
      %s519 = smul.addr %s518, 4
      %s520 = scalar_lea.vmem %s4, %s519
      %v521 = vld [vmem:[%s520] sm:$0xff]
      %v522 = vld [vmem:[%s520 + $0x8] sm:$0xff]
      %v523 = vld [vmem:[%s520 + $0x10] sm:$0xf]
      %v524 = vld [vmem:[%s520 + $0x14] sm:$0xff]
      %v525 = vld [vmem:[%s520 + $0x1c] sm:$0xff]
      %v526 = vld [vmem:[%s520 + $0x24] sm:$0xf]
      %v527 = vld [vmem:[%s520 + $0x28] sm:$0xff]
      %v528 = vld [vmem:[%s520 + $0x30] sm:$0xff]
      %v529 = vld [vmem:[%s520 + $0x38] sm:$0xf]
      %v530 = vld [vmem:[%s520 + $0x3c] sm:$0xff]
      %v531 = vld [vmem:[%s520 + $0x44] sm:$0xff]
      %v532 = vld [vmem:[%s520 + $0x4c] sm:$0xf]
      %v533 = vld [vmem:[%s520 + $0x50] sm:$0xff]
      %v534 = vld [vmem:[%s520 + $0x58] sm:$0xff]
      %v535 = vld [vmem:[%s520 + $0x60] sm:$0xf]
      %v536 = vld [vmem:[%s520 + $0x64] sm:$0xff]
      %v537 = vld [vmem:[%s520 + $0x6c] sm:$0xff]
      %v538 = vld [vmem:[%s520 + $0x74] sm:$0xf]
      %v539 = vld [vmem:[%s520 + $0x78] sm:$0xff]
      %v540 = vld [vmem:[%s520 + $0x80] sm:$0xff]
      %v541 = vld [vmem:[%s520 + $0x88] sm:$0xf]
      %v542 = vld [vmem:[%s520 + $0x8c] sm:$0xff]
      %v543 = vld [vmem:[%s520 + $0x94] sm:$0xff]
      %v544 = vld [vmem:[%s520 + $0x9c] sm:$0xf]
      %v545 = vld [vmem:[%s520 + $0xa0] sm:$0xff]
      %v546 = vld [vmem:[%s520 + $0xa8] sm:$0xff]
      %v547 = vld [vmem:[%s520 + $0xb0] sm:$0xf]
      %v548 = vld [vmem:[%s520 + $0xb4] sm:$0xff]
      %v549 = vld [vmem:[%s520 + $0xbc] sm:$0xff]
      %v550 = vld [vmem:[%s520 + $0xc4] sm:$0xf]
      %v551 = vld [vmem:[%s520 + $0xc8] sm:$0xff]
      %v552 = vld [vmem:[%s520 + $0xd0] sm:$0xff]
      %v553 = vld [vmem:[%s520 + $0xd8] sm:$0xf]
      %v554 = vld [vmem:[%s520 + $0xdc] sm:$0xff]
      %v555 = vld [vmem:[%s520 + $0xe4] sm:$0xff]
      %v556 = vld [vmem:[%s520 + $0xec] sm:$0xf]
      %v557 = vld [vmem:[%s520 + $0xf0] sm:$0xff]
      %v558 = vld [vmem:[%s520 + $0xf8] sm:$0xff]
      %v559 = vld [vmem:[%s520 + $0x100] sm:$0xf]
      %v560 = vld [vmem:[%s520 + $0x104] sm:$0xff]
      %v561 = vld [vmem:[%s520 + $0x10c] sm:$0xff]
      %v562 = vld [vmem:[%s520 + $0x114] sm:$0xf]
      %v563 = vld [vmem:[%s520 + $0x118] sm:$0xff]
      %v564 = vld [vmem:[%s520 + $0x120] sm:$0xff]
      %v565 = vld [vmem:[%s520 + $0x128] sm:$0xf]
      %v566 = vld [vmem:[%s520 + $0x12c] sm:$0xff]
      %v567 = vld [vmem:[%s520 + $0x134] sm:$0xff]
      %v568 = vld [vmem:[%s520 + $0x13c] sm:$0xf]
      %v569 = vld [vmem:[%s520 + $0x140] sm:$0xff]
      %v570 = vld [vmem:[%s520 + $0x148] sm:$0xff]
      %v571 = vld [vmem:[%s520 + $0x150] sm:$0xf]
      %v572 = vld [vmem:[%s520 + $0x154] sm:$0xff]
      %v573 = vld [vmem:[%s520 + $0x15c] sm:$0xff]
      %v574 = vld [vmem:[%s520 + $0x164] sm:$0xf]
      %v575 = vld [vmem:[%s520 + $0x168] sm:$0xff]
      %v576 = vld [vmem:[%s520 + $0x170] sm:$0xff]
      %v577 = vld [vmem:[%s520 + $0x178] sm:$0xf]
      %v578 = vld [vmem:[%s520 + $0x17c] sm:$0xff]
      %v579 = vld [vmem:[%s520 + $0x184] sm:$0xff]
      %v580 = vld [vmem:[%s520 + $0x18c] sm:$0xf]
      %v581 = vld [vmem:[%s520 + $0x190] sm:$0xff]
      %v582 = vld [vmem:[%s520 + $0x198] sm:$0xff]
      %v583 = vld [vmem:[%s520 + $0x1a0] sm:$0xf]
      %v584 = vld [vmem:[%s520 + $0x1a4] sm:$0xff]
      %v585 = vld [vmem:[%s520 + $0x1ac] sm:$0xff]
      %v586 = vld [vmem:[%s520 + $0x1b4] sm:$0xf]
      %v587 = vld [vmem:[%s520 + $0x1b8] sm:$0xff]
      %v588 = vld [vmem:[%s520 + $0x1c0] sm:$0xff]
      %v589 = vld [vmem:[%s520 + $0x1c8] sm:$0xf]
      %v590 = vld [vmem:[%s520 + $0x1cc] sm:$0xff]
      %v591 = vld [vmem:[%s520 + $0x1d4] sm:$0xff]
      %v592 = vld [vmem:[%s520 + $0x1dc] sm:$0xf]
      %v593 = vld [vmem:[%s520 + $0x1e0] sm:$0xff]
      %v594 = vld [vmem:[%s520 + $0x1e8] sm:$0xff]
      %v595 = vld [vmem:[%s520 + $0x1f0] sm:$0xf]
      %v596 = vld [vmem:[%s520 + $0x1f4] sm:$0xff]
      %v597 = vld [vmem:[%s520 + $0x1fc] sm:$0xff]
      %v598 = vld [vmem:[%s520 + $0x204] sm:$0xf]
      %v599 = vld [vmem:[%s520 + $0x208] sm:$0xff]
      %v600 = vld [vmem:[%s520 + $0x210] sm:$0xff]
      %v601 = vld [vmem:[%s520 + $0x218] sm:$0xf]
      %v602 = vld [vmem:[%s520 + $0x21c] sm:$0xff]
      %v603 = vld [vmem:[%s520 + $0x224] sm:$0xff]
      %v604 = vld [vmem:[%s520 + $0x22c] sm:$0xf]
      %v605 = vld [vmem:[%s520 + $0x230] sm:$0xff]
      %v606 = vld [vmem:[%s520 + $0x238] sm:$0xff]
      %v607 = vld [vmem:[%s520 + $0x240] sm:$0xf]
      %v608 = vld [vmem:[%s520 + $0x244] sm:$0xff]
      %v609 = vld [vmem:[%s520 + $0x24c] sm:$0xff]
      %v610 = vld [vmem:[%s520 + $0x254] sm:$0xf]
      %v611 = vld [vmem:[%s520 + $0x258] sm:$0xff]
      %v612 = vld [vmem:[%s520 + $0x260] sm:$0xff]
      %v613 = vld [vmem:[%s520 + $0x268] sm:$0xf]
      %v614 = vld [vmem:[%s520 + $0x26c] sm:$0xff]
      %v615 = vld [vmem:[%s520 + $0x274] sm:$0xff]
      %v616 = vld [vmem:[%s520 + $0x27c] sm:$0xf]
      %v617 = vld [vmem:[%s520 + $0x280] sm:$0xff]
      %v618 = vld [vmem:[%s520 + $0x288] sm:$0xff]
      %v619 = vld [vmem:[%s520 + $0x290] sm:$0xf]
      %v620 = vld [vmem:[%s520 + $0x294] sm:$0xff]
      %v621 = vld [vmem:[%s520 + $0x29c] sm:$0xff]
      %v622 = vld [vmem:[%s520 + $0x2a4] sm:$0xf]
      %v623 = vld [vmem:[%s520 + $0x2a8] sm:$0xff]
      %v624 = vld [vmem:[%s520 + $0x2b0] sm:$0xff]
      %v625 = vld [vmem:[%s520 + $0x2b8] sm:$0xf]
      %v626 = vld [vmem:[%s520 + $0x2bc] sm:$0xff]
      %v627 = vld [vmem:[%s520 + $0x2c4] sm:$0xff]
      %v628 = vld [vmem:[%s520 + $0x2cc] sm:$0xf]
      %v629 = vld [vmem:[%s520 + $0x2d0] sm:$0xff]
      %v630 = vld [vmem:[%s520 + $0x2d8] sm:$0xff]
      %v631 = vld [vmem:[%s520 + $0x2e0] sm:$0xf]
      %v632 = vld [vmem:[%s520 + $0x2e4] sm:$0x33]
      %v633 = vld [vmem:[%s520 + $0x2ec] sm:$0x33]
      %v634 = vld [vmem:[%s520 + $0x2f4] sm:$0x3]
      %s635 = smul.u32 %s124, 5
      %s636 = scalar_lea.vmem %s5, %s635
      %v637 = vld [vmem:[%s636] sm:$0x1f]
      %v639 = vlaneseq
      %v640 = vshrl.u32 %v639, 7
      %v641 = vsub.s32 0, %v640
      %v642 = vrot.slane %v637, %v641
      %v643 = vlaneseq
      %v644 = vshrl.u32 %v643, 7
      %v645 = vsub.s32 1, %v644
      %v646 = vrot.slane %v637, %v645
      %v647 = vlaneseq
      %v648 = vshrl.u32 %v647, 7
      %v649 = vsub.s32 2, %v648
      %v650 = vrot.slane %v637, %v649
      %v651 = vlaneseq
      %v652 = vshrl.u32 %v651, 7
      %v653 = vsub.s32 3, %v652
      %v654 = vrot.slane %v637, %v653
      %v655 = vlaneseq
      %v656 = vshrl.u32 %v655, 7
      %v657 = vsub.s32 4, %v656
      %v658 = vrot.slane %v637, %v657
      %v778 = vunpack.c.l.b16 %v521
      %v779 = vunpack.c.h.b16 %v521
      %v780 = vunpack.c.l.b16 %v522
      %v781 = vunpack.c.h.b16 %v522
      %v782 = vunpack.c.l.b16 %v523
      %v783 = vunpack.c.l.b16 %v524
      %v784 = vunpack.c.h.b16 %v524
      %v785 = vunpack.c.l.b16 %v525
      %v786 = vunpack.c.h.b16 %v525
      %v787 = vunpack.c.l.b16 %v526
      %v788 = vunpack.c.l.b16 %v527
      %v789 = vunpack.c.h.b16 %v527
      %v790 = vunpack.c.l.b16 %v528
      %v791 = vunpack.c.h.b16 %v528
      %v792 = vunpack.c.l.b16 %v529
      %v793 = vunpack.c.l.b16 %v530
      %v794 = vunpack.c.h.b16 %v530
      %v795 = vunpack.c.l.b16 %v531
      %v796 = vunpack.c.h.b16 %v531
      %v797 = vunpack.c.l.b16 %v532
      %v798 = vunpack.c.l.b16 %v533
      %v799 = vunpack.c.h.b16 %v533
      %v800 = vunpack.c.l.b16 %v534
      %v801 = vunpack.c.h.b16 %v534
      %v802 = vunpack.c.l.b16 %v535
      %v803 = vunpack.c.l.b16 %v536
      %v804 = vunpack.c.h.b16 %v536
      %v805 = vunpack.c.l.b16 %v537
      %v806 = vunpack.c.h.b16 %v537
      %v807 = vunpack.c.l.b16 %v538
      %v808 = vunpack.c.l.b16 %v539
      %v809 = vunpack.c.h.b16 %v539
      %v810 = vunpack.c.l.b16 %v540
      %v811 = vunpack.c.h.b16 %v540
      %v812 = vunpack.c.l.b16 %v541
      %v813 = vunpack.c.l.b16 %v542
      %v814 = vunpack.c.h.b16 %v542
      %v815 = vunpack.c.l.b16 %v543
      %v816 = vunpack.c.h.b16 %v543
      %v817 = vunpack.c.l.b16 %v544
      %v818 = vunpack.c.l.b16 %v545
      %v819 = vunpack.c.h.b16 %v545
      %v820 = vunpack.c.l.b16 %v546
      %v821 = vunpack.c.h.b16 %v546
      %v822 = vunpack.c.l.b16 %v547
      %v823 = vunpack.c.l.b16 %v548
      %v824 = vunpack.c.h.b16 %v548
      %v825 = vunpack.c.l.b16 %v549
      %v826 = vunpack.c.h.b16 %v549
      %v827 = vunpack.c.l.b16 %v550
      %v828 = vunpack.c.l.b16 %v551
      %v829 = vunpack.c.h.b16 %v551
      %v830 = vunpack.c.l.b16 %v552
      %v831 = vunpack.c.h.b16 %v552
      %v832 = vunpack.c.l.b16 %v553
      %v833 = vunpack.c.l.b16 %v554
      %v834 = vunpack.c.h.b16 %v554
      %v835 = vunpack.c.l.b16 %v555
      %v836 = vunpack.c.h.b16 %v555
      %v837 = vunpack.c.l.b16 %v556
      %v838 = vunpack.c.l.b16 %v557
      %v839 = vunpack.c.h.b16 %v557
      %v840 = vunpack.c.l.b16 %v558
      %v841 = vunpack.c.h.b16 %v558
      %v842 = vunpack.c.l.b16 %v559
      %v843 = vunpack.c.l.b16 %v560
      %v844 = vunpack.c.h.b16 %v560
      %v845 = vunpack.c.l.b16 %v561
      %v846 = vunpack.c.h.b16 %v561
      %v847 = vunpack.c.l.b16 %v562
      %v848 = vunpack.c.l.b16 %v563
      %v849 = vunpack.c.h.b16 %v563
      %v850 = vunpack.c.l.b16 %v564
      %v851 = vunpack.c.h.b16 %v564
      %v852 = vunpack.c.l.b16 %v565
      %v853 = vunpack.c.l.b16 %v566
      %v854 = vunpack.c.h.b16 %v566
      %v855 = vunpack.c.l.b16 %v567
      %v856 = vunpack.c.h.b16 %v567
      %v857 = vunpack.c.l.b16 %v568
      %v858 = vunpack.c.l.b16 %v569
      %v859 = vunpack.c.h.b16 %v569
      %v860 = vunpack.c.l.b16 %v570
      %v861 = vunpack.c.h.b16 %v570
      %v862 = vunpack.c.l.b16 %v571
      %v863 = vunpack.c.l.b16 %v572
      %v864 = vunpack.c.h.b16 %v572
      %v865 = vunpack.c.l.b16 %v573
      %v866 = vunpack.c.h.b16 %v573
      %v867 = vunpack.c.l.b16 %v574
      %v868 = vunpack.c.l.b16 %v575
      %v869 = vunpack.c.h.b16 %v575
      %v870 = vunpack.c.l.b16 %v576
      %v871 = vunpack.c.h.b16 %v576
      %v872 = vunpack.c.l.b16 %v577
      %v873 = vunpack.c.l.b16 %v578
      %v874 = vunpack.c.h.b16 %v578
      %v875 = vunpack.c.l.b16 %v579
      %v876 = vunpack.c.h.b16 %v579
      %v877 = vunpack.c.l.b16 %v580
      %v878 = vunpack.c.l.b16 %v581
      %v879 = vunpack.c.h.b16 %v581
      %v880 = vunpack.c.l.b16 %v582
      %v881 = vunpack.c.h.b16 %v582
      %v882 = vunpack.c.l.b16 %v583
      %v883 = vunpack.c.l.b16 %v584
      %v884 = vunpack.c.h.b16 %v584
      %v885 = vunpack.c.l.b16 %v585
      %v886 = vunpack.c.h.b16 %v585
      %v887 = vunpack.c.l.b16 %v586
      %v888 = vunpack.c.l.b16 %v587
      %v889 = vunpack.c.h.b16 %v587
      %v890 = vunpack.c.l.b16 %v588
      %v891 = vunpack.c.h.b16 %v588
      %v892 = vunpack.c.l.b16 %v589
      %v893 = vunpack.c.l.b16 %v590
      %v894 = vunpack.c.h.b16 %v590
      %v895 = vunpack.c.l.b16 %v591
      %v896 = vunpack.c.h.b16 %v591
      %v897 = vunpack.c.l.b16 %v592
      %v898 = vunpack.c.l.b16 %v593
      %v899 = vunpack.c.h.b16 %v593
      %v900 = vunpack.c.l.b16 %v594
      %v901 = vunpack.c.h.b16 %v594
      %v902 = vunpack.c.l.b16 %v595
      %v903 = vunpack.c.l.b16 %v596
      %v904 = vunpack.c.h.b16 %v596
      %v905 = vunpack.c.l.b16 %v597
      %v906 = vunpack.c.h.b16 %v597
      %v907 = vunpack.c.l.b16 %v598
      %v908 = vunpack.c.l.b16 %v599
      %v909 = vunpack.c.h.b16 %v599
      %v910 = vunpack.c.l.b16 %v600
      %v911 = vunpack.c.h.b16 %v600
      %v912 = vunpack.c.l.b16 %v601
      %v913 = vunpack.c.l.b16 %v602
      %v914 = vunpack.c.h.b16 %v602
      %v915 = vunpack.c.l.b16 %v603
      %v916 = vunpack.c.h.b16 %v603
      %v917 = vunpack.c.l.b16 %v604
      %v918 = vunpack.c.l.b16 %v605
      %v919 = vunpack.c.h.b16 %v605
      %v920 = vunpack.c.l.b16 %v606
      %v921 = vunpack.c.h.b16 %v606
      %v922 = vunpack.c.l.b16 %v607
      %v923 = vunpack.c.l.b16 %v608
      %v924 = vunpack.c.h.b16 %v608
      %v925 = vunpack.c.l.b16 %v609
      %v926 = vunpack.c.h.b16 %v609
      %v927 = vunpack.c.l.b16 %v610
      %v928 = vunpack.c.l.b16 %v611
      %v929 = vunpack.c.h.b16 %v611
      %v930 = vunpack.c.l.b16 %v612
      %v931 = vunpack.c.h.b16 %v612
      %v932 = vunpack.c.l.b16 %v613
      %v933 = vunpack.c.l.b16 %v614
      %v934 = vunpack.c.h.b16 %v614
      %v935 = vunpack.c.l.b16 %v615
      %v936 = vunpack.c.h.b16 %v615
      %v937 = vunpack.c.l.b16 %v616
      %v938 = vunpack.c.l.b16 %v617
      %v939 = vunpack.c.h.b16 %v617
      %v940 = vunpack.c.l.b16 %v618
      %v941 = vunpack.c.h.b16 %v618
      %v942 = vunpack.c.l.b16 %v619
      %v943 = vunpack.c.l.b16 %v620
      %v944 = vunpack.c.h.b16 %v620
      %v945 = vunpack.c.l.b16 %v621
      %v946 = vunpack.c.h.b16 %v621
      %v947 = vunpack.c.l.b16 %v622
      %v948 = vunpack.c.l.b16 %v623
      %v949 = vunpack.c.h.b16 %v623
      %v950 = vunpack.c.l.b16 %v624
      %v951 = vunpack.c.h.b16 %v624
      %v952 = vunpack.c.l.b16 %v625
      %v953 = vunpack.c.l.b16 %v626
      %v954 = vunpack.c.h.b16 %v626
      %v955 = vunpack.c.l.b16 %v627
      %v956 = vunpack.c.h.b16 %v627
      %v957 = vunpack.c.l.b16 %v628
      %v958 = vunpack.c.l.b16 %v629
      %v959 = vunpack.c.h.b16 %v629
      %v960 = vunpack.c.l.b16 %v630
      %v961 = vunpack.c.h.b16 %v630
      %v962 = vunpack.c.l.b16 %v631
      %v963 = vunpack.c.l.b16 %v632
      %v964 = vunpack.c.h.b16 %v632
      %v965 = vunpack.c.l.b16 %v633
      %v966 = vunpack.c.h.b16 %v633
      %v967 = vunpack.c.l.b16 %v634
      %v968 = vpack.c.b16 %v783, %v778
      %v969 = vpack.c.b16 %v784, %v779
      %v970 = vpack.c.b16 %v785, %v780
      %v971 = vpack.c.b16 %v786, %v781
      %v972 = vpack.c.b16 %v787, %v782
      %v973 = vpack.c.b16 %v793, %v788
      %v974 = vpack.c.b16 %v794, %v789
      %v975 = vpack.c.b16 %v795, %v790
      %v976 = vpack.c.b16 %v796, %v791
      %v977 = vpack.c.b16 %v797, %v792
      %v978 = vpack.c.b16 %v803, %v798
      %v979 = vpack.c.b16 %v804, %v799
      %v980 = vpack.c.b16 %v805, %v800
      %v981 = vpack.c.b16 %v806, %v801
      %v982 = vpack.c.b16 %v807, %v802
      %v983 = vpack.c.b16 %v813, %v808
      %v984 = vpack.c.b16 %v814, %v809
      %v985 = vpack.c.b16 %v815, %v810
      %v986 = vpack.c.b16 %v816, %v811
      %v987 = vpack.c.b16 %v817, %v812
      %v988 = vpack.c.b16 %v823, %v818
      %v989 = vpack.c.b16 %v824, %v819
      %v990 = vpack.c.b16 %v825, %v820
      %v991 = vpack.c.b16 %v826, %v821
      %v992 = vpack.c.b16 %v827, %v822
      %v993 = vpack.c.b16 %v833, %v828
      %v994 = vpack.c.b16 %v834, %v829
      %v995 = vpack.c.b16 %v835, %v830
      %v996 = vpack.c.b16 %v836, %v831
      %v997 = vpack.c.b16 %v837, %v832
      %v998 = vpack.c.b16 %v843, %v838
      %v999 = vpack.c.b16 %v844, %v839
      %v1000 = vpack.c.b16 %v845, %v840
      %v1001 = vpack.c.b16 %v846, %v841
      %v1002 = vpack.c.b16 %v847, %v842
      %v1003 = vpack.c.b16 %v853, %v848
      %v1004 = vpack.c.b16 %v854, %v849
      %v1005 = vpack.c.b16 %v855, %v850
      %v1006 = vpack.c.b16 %v856, %v851
      %v1007 = vpack.c.b16 %v857, %v852
      %v1008 = vpack.c.b16 %v863, %v858
      %v1009 = vpack.c.b16 %v864, %v859
      %v1010 = vpack.c.b16 %v865, %v860
      %v1011 = vpack.c.b16 %v866, %v861
      %v1012 = vpack.c.b16 %v867, %v862
      %v1013 = vpack.c.b16 %v873, %v868
      %v1014 = vpack.c.b16 %v874, %v869
      %v1015 = vpack.c.b16 %v875, %v870
      %v1016 = vpack.c.b16 %v876, %v871
      %v1017 = vpack.c.b16 %v877, %v872
      %v1018 = vpack.c.b16 %v883, %v878
      %v1019 = vpack.c.b16 %v884, %v879
      %v1020 = vpack.c.b16 %v885, %v880
      %v1021 = vpack.c.b16 %v886, %v881
      %v1022 = vpack.c.b16 %v887, %v882
      %v1023 = vpack.c.b16 %v893, %v888
      %v1024 = vpack.c.b16 %v894, %v889
      %v1025 = vpack.c.b16 %v895, %v890
      %v1026 = vpack.c.b16 %v896, %v891
      %v1027 = vpack.c.b16 %v897, %v892
      %v1028 = vpack.c.b16 %v903, %v898
      %v1029 = vpack.c.b16 %v904, %v899
      %v1030 = vpack.c.b16 %v905, %v900
      %v1031 = vpack.c.b16 %v906, %v901
      %v1032 = vpack.c.b16 %v907, %v902
      %v1033 = vpack.c.b16 %v913, %v908
      %v1034 = vpack.c.b16 %v914, %v909
      %v1035 = vpack.c.b16 %v915, %v910
      %v1036 = vpack.c.b16 %v916, %v911
      %v1037 = vpack.c.b16 %v917, %v912
      %v1038 = vpack.c.b16 %v923, %v918
      %v1039 = vpack.c.b16 %v924, %v919
      %v1040 = vpack.c.b16 %v925, %v920
      %v1041 = vpack.c.b16 %v926, %v921
      %v1042 = vpack.c.b16 %v927, %v922
      %v1043 = vpack.c.b16 %v933, %v928
      %v1044 = vpack.c.b16 %v934, %v929
      %v1045 = vpack.c.b16 %v935, %v930
      %v1046 = vpack.c.b16 %v936, %v931
      %v1047 = vpack.c.b16 %v937, %v932
      %v1048 = vpack.c.b16 %v943, %v938
      %v1049 = vpack.c.b16 %v944, %v939
      %v1050 = vpack.c.b16 %v945, %v940
      %v1051 = vpack.c.b16 %v946, %v941
      %v1052 = vpack.c.b16 %v947, %v942
      %v1053 = vpack.c.b16 %v953, %v948
      %v1054 = vpack.c.b16 %v954, %v949
      %v1055 = vpack.c.b16 %v955, %v950
      %v1056 = vpack.c.b16 %v956, %v951
      %v1057 = vpack.c.b16 %v957, %v952
      %v1058 = vpack.c.b16 %v963, %v958
      %v1059 = vpack.c.b16 %v964, %v959
      %v1060 = vpack.c.b16 %v965, %v960
      %v1061 = vpack.c.b16 %v966, %v961
      %v1062 = vpack.c.b16 %v967, %v962
      %vm1153 = vcmask 359424
      %v1155 = vsel %vm1153, %v496, 0
      %v1158 = vsel %vm1153, %v499, 0
      %v1161 = vsel %vm1153, %v502, 0
      %v1164 = vsel %vm1153, %v505, 0
      %v1167 = vsel %vm1153, %v508, 0
      %v1170 = vsel %vm1153, %v511, 0
      %v1173 = vsel %vm1153, %v514, 0
      %v1176 = vsel %vm1153, %v517, 0
      %vm1178 = vcmask 1045504
      %v1180 = vsel %vm1178, %v1058, 0
      %v1183 = vsel %vm1178, %v1059, 0
      %v1186 = vsel %vm1178, %v1060, 0
      %v1189 = vsel %vm1178, %v1061, 0
      %v1192 = vsel %vm1178, %v1062, 0
      %1194 = vmatprep.subr.bf16.mxu0 %v969
      %1195 = vmatpush1.bf16.msra.mxu0 %v968
      %1196 = vmatprep.subr.bf16.mxu0 %v974
      %1197 = vmatpush1.bf16.msra.mxu0 %v973
      %1198 = vmatprep.subr.bf16.mxu0 %v979
      %1199 = vmatpush1.bf16.msra.mxu0 %v978
      %1200 = vmatprep.subr.bf16.mxu0 %v984
      %1201 = vmatpush1.bf16.msra.mxu0 %v983
      %1202 = vmatprep.subr.bf16.mxu0 %v989
      %1203 = vmatpush1.bf16.msra.mxu0 %v988
      %1204 = vmatprep.subr.bf16.mxu0 %v994
      %1205 = vmatpush1.bf16.msra.mxu0 %v993
      %1206 = vmatprep.subr.bf16.mxu0 %v999
      %1207 = vmatpush1.bf16.msra.mxu0 %v998
      %1208 = vmatprep.subr.bf16.mxu0 %v1004
      %1209 = vmatpush1.bf16.msra.mxu0 %v1003
      %1210 = vmatprep.subr.bf16.mxu0 %v1009
      %1211 = vmatpush1.bf16.msra.mxu0 %v1008
      %1212 = vmatprep.subr.bf16.mxu0 %v1014
      %1213 = vmatpush1.bf16.msra.mxu0 %v1013
      %1214 = vmatprep.subr.bf16.mxu0 %v1019
      %1215 = vmatpush1.bf16.msra.mxu0 %v1018
      %1216 = vmatprep.subr.bf16.mxu0 %v1024
      %1217 = vmatpush1.bf16.msra.mxu0 %v1023
      %1218 = vmatprep.subr.bf16.mxu0 %v1029
      %1219 = vmatpush1.bf16.msra.mxu0 %v1028
      %1220 = vmatprep.subr.bf16.mxu0 %v1034
      %1221 = vmatpush1.bf16.msra.mxu0 %v1033
      %1222 = vmatprep.subr.bf16.mxu0 %v1039
      %1223 = vmatpush1.bf16.msra.mxu0 %v1038
      %1224 = vmatprep.subr.bf16.mxu0 %v1044
      %1225 = vmatpush1.bf16.msra.mxu0 %v1043
      %1226 = vmatprep.mubr.bf16.mxu0 %v495
      %1227 = vmatmul.mubr.bf16.gmra.mrb[0].mxu0 %v494
      %v1228 = vpop.f32.mrb[0].mxu0
      %v1229 = vadd.f32 %v642, %v1228
      %v1230 = vpop.f32.mrb[0].mxu0
      %v1231 = vadd.f32 %v646, %v1230
      %v1232 = vpop.f32.mrb[0].mxu0
      %v1233 = vadd.f32 %v642, %v1232
      %v1234 = vpop.f32.mrb[0].mxu0
      %v1235 = vadd.f32 %v646, %v1234
      %1236 = vmatprep.mubr.bf16.mxu0 %v498
      %1237 = vmatmul.mubr.bf16.gmra.mrb[0].mxu0 %v497
      %v1238 = vpop.f32.mrb[0].mxu0
      %v1239 = vadd.f32 %v642, %v1238
      %v1240 = vpop.f32.mrb[0].mxu0
      %v1241 = vadd.f32 %v646, %v1240
      %v1242 = vpop.f32.mrb[0].mxu0
      %v1243 = vadd.f32 %v642, %v1242
      %v1244 = vpop.f32.mrb[0].mxu0
      %v1245 = vadd.f32 %v646, %v1244
      %1246 = vmatprep.mubr.bf16.mxu0 %v501
      %1247 = vmatmul.mubr.bf16.gmra.mrb[0].mxu0 %v500
      %v1248 = vpop.f32.mrb[0].mxu0
      %v1249 = vadd.f32 %v642, %v1248
      %v1250 = vpop.f32.mrb[0].mxu0
      %v1251 = vadd.f32 %v646, %v1250
      %v1252 = vpop.f32.mrb[0].mxu0
      %v1253 = vadd.f32 %v642, %v1252
      %v1254 = vpop.f32.mrb[0].mxu0
      %v1255 = vadd.f32 %v646, %v1254
      %1256 = vmatprep.mubr.bf16.mxu0 %v504
      %1257 = vmatmul.mubr.bf16.gmra.mrb[0].mxu0 %v503
      %v1258 = vpop.f32.mrb[0].mxu0
      %v1259 = vadd.f32 %v642, %v1258
      %v1260 = vpop.f32.mrb[0].mxu0
      %v1261 = vadd.f32 %v646, %v1260
      %v1262 = vpop.f32.mrb[0].mxu0
      %v1263 = vadd.f32 %v642, %v1262
      %v1264 = vpop.f32.mrb[0].mxu0
      %v1265 = vadd.f32 %v646, %v1264
      %1266 = vmatprep.mubr.bf16.mxu0 %v507
      %1267 = vmatmul.mubr.bf16.gmra.mrb[0].mxu0 %v506
      %v1268 = vpop.f32.mrb[0].mxu0
      %v1269 = vadd.f32 %v642, %v1268
      %v1270 = vpop.f32.mrb[0].mxu0
      %v1271 = vadd.f32 %v646, %v1270
      %v1272 = vpop.f32.mrb[0].mxu0
      %v1273 = vadd.f32 %v642, %v1272
      %v1274 = vpop.f32.mrb[0].mxu0
      %v1275 = vadd.f32 %v646, %v1274
      %1276 = vmatprep.mubr.bf16.mxu0 %v510
      %1277 = vmatmul.mubr.bf16.gmra.mrb[0].mxu0 %v509
      %v1278 = vpop.f32.mrb[0].mxu0
      %v1279 = vadd.f32 %v642, %v1278
      %v1280 = vpop.f32.mrb[0].mxu0
      %v1281 = vadd.f32 %v646, %v1280
      %v1282 = vpop.f32.mrb[0].mxu0
      %v1283 = vadd.f32 %v642, %v1282
      %v1284 = vpop.f32.mrb[0].mxu0
      %v1285 = vadd.f32 %v646, %v1284
      %1286 = vmatprep.mubr.bf16.mxu0 %v513
      %1287 = vmatmul.mubr.bf16.gmra.mrb[0].mxu0 %v512
      %v1288 = vpop.f32.mrb[0].mxu0
      %v1289 = vadd.f32 %v642, %v1288
      %v1290 = vpop.f32.mrb[0].mxu0
      %v1291 = vadd.f32 %v646, %v1290
      %v1292 = vpop.f32.mrb[0].mxu0
      %v1293 = vadd.f32 %v642, %v1292
      %v1294 = vpop.f32.mrb[0].mxu0
      %v1295 = vadd.f32 %v646, %v1294
      %1296 = vmatprep.mubr.bf16.mxu0 %v516
      %1297 = vmatmul.mubr.bf16.gmra.mrb[0].mxu0 %v515
      %v1298 = vpop.f32.mrb[0].mxu0
      %v1299 = vadd.f32 %v642, %v1298
      %v1300 = vpop.f32.mrb[0].mxu0
      %v1301 = vadd.f32 %v646, %v1300
      %v1302 = vpop.f32.mrb[0].mxu0
      %v1303 = vadd.f32 %v642, %v1302
      %v1304 = vpop.f32.mrb[0].mxu0
      %v1305 = vadd.f32 %v646, %v1304
      %1306 = vdwg.mxu0
      %1307 = vmatprep.subr.bf16.mxu0 %v1049
      %1308 = vmatpush1.bf16.msra.mxu0 %v1048
      %1309 = vmatprep.subr.bf16.mxu0 %v1054
      %1310 = vmatpush1.bf16.msra.mxu0 %v1053
      %1311 = vmatprep.subr.bf16.mxu0 %v1183
      %1312 = vmatpush1.bf16.msra.mxu0 %v1180
      %1313 = vmatprep.subr.bf16.mxu0 0
      %1314 = vmatpush1.bf16.msra.mxu0 0
      %1315 = vmatprep.subr.bf16.mxu0 0
      %1316 = vmatpush1.bf16.msra.mxu0 0
      %1317 = vmatprep.subr.bf16.mxu0 0
      %1318 = vmatpush1.bf16.msra.mxu0 0
      %1319 = vmatprep.subr.bf16.mxu0 0
      %1320 = vmatpush1.bf16.msra.mxu0 0
      %1321 = vmatprep.subr.bf16.mxu0 0
      %1322 = vmatpush1.bf16.msra.mxu0 0
      %1323 = vmatprep.subr.bf16.mxu0 0
      %1324 = vmatpush1.bf16.msra.mxu0 0
      %1325 = vmatprep.subr.bf16.mxu0 0
      %1326 = vmatpush1.bf16.msra.mxu0 0
      %1327 = vmatprep.subr.bf16.mxu0 0
      %1328 = vmatpush1.bf16.msra.mxu0 0
      %1329 = vmatprep.subr.bf16.mxu0 0
      %1330 = vmatpush1.bf16.msra.mxu0 0
      %1331 = vmatprep.subr.bf16.mxu0 0
      %1332 = vmatpush1.bf16.msra.mxu0 0
      %1333 = vmatprep.subr.bf16.mxu0 0
      %1334 = vmatpush1.bf16.msra.mxu0 0
      %1335 = vmatprep.subr.bf16.mxu0 0
      %1336 = vmatpush1.bf16.msra.mxu0 0
      %1337 = vmatprep.subr.bf16.mxu0 0
      %1338 = vmatpush1.bf16.msra.mxu0 0
      %1339 = vmatprep.mubr.bf16.mxu0 0
      %1340 = vmatmul.mubr.bf16.gmra.mrb[0].mxu0 %v1155
      %v1341 = vpop.f32.mrb[0].mxu0
      %v1342 = vadd.f32 %v1229, %v1341
      %v1343 = vpop.f32.mrb[0].mxu0
      %v1344 = vadd.f32 %v1231, %v1343
      %v1345 = vpop.f32.mrb[0].mxu0
      %v1346 = vadd.f32 %v1233, %v1345
      %v1347 = vpop.f32.mrb[0].mxu0
      %v1348 = vadd.f32 %v1235, %v1347
      %1349 = vmatprep.mubr.bf16.mxu0 0
      %1350 = vmatmul.mubr.bf16.gmra.mrb[0].mxu0 %v1158
      %v1351 = vpop.f32.mrb[0].mxu0
      %v1352 = vadd.f32 %v1239, %v1351
      %v1353 = vpop.f32.mrb[0].mxu0
      %v1354 = vadd.f32 %v1241, %v1353
      %v1355 = vpop.f32.mrb[0].mxu0
      %v1356 = vadd.f32 %v1243, %v1355
      %v1357 = vpop.f32.mrb[0].mxu0
      %v1358 = vadd.f32 %v1245, %v1357
      %1359 = vmatprep.mubr.bf16.mxu0 0
      %1360 = vmatmul.mubr.bf16.gmra.mrb[0].mxu0 %v1161
      %v1361 = vpop.f32.mrb[0].mxu0
      %v1362 = vadd.f32 %v1249, %v1361
      %v1363 = vpop.f32.mrb[0].mxu0
      %v1364 = vadd.f32 %v1251, %v1363
      %v1365 = vpop.f32.mrb[0].mxu0
      %v1366 = vadd.f32 %v1253, %v1365
      %v1367 = vpop.f32.mrb[0].mxu0
      %v1368 = vadd.f32 %v1255, %v1367
      %1369 = vmatprep.mubr.bf16.mxu0 0
      %1370 = vmatmul.mubr.bf16.gmra.mrb[0].mxu0 %v1164
      %v1371 = vpop.f32.mrb[0].mxu0
      %v1372 = vadd.f32 %v1259, %v1371
      %v1373 = vpop.f32.mrb[0].mxu0
      %v1374 = vadd.f32 %v1261, %v1373
      %v1375 = vpop.f32.mrb[0].mxu0
      %v1376 = vadd.f32 %v1263, %v1375
      %v1377 = vpop.f32.mrb[0].mxu0
      %v1378 = vadd.f32 %v1265, %v1377
      %1379 = vmatprep.mubr.bf16.mxu0 0
      %1380 = vmatmul.mubr.bf16.gmra.mrb[0].mxu0 %v1167
      %v1381 = vpop.f32.mrb[0].mxu0
      %v1382 = vadd.f32 %v1269, %v1381
      %v1383 = vpop.f32.mrb[0].mxu0
      %v1384 = vadd.f32 %v1271, %v1383
      %v1385 = vpop.f32.mrb[0].mxu0
      %v1386 = vadd.f32 %v1273, %v1385
      %v1387 = vpop.f32.mrb[0].mxu0
      %v1388 = vadd.f32 %v1275, %v1387
      %1389 = vmatprep.mubr.bf16.mxu0 0
      %1390 = vmatmul.mubr.bf16.gmra.mrb[0].mxu0 %v1170
      %v1391 = vpop.f32.mrb[0].mxu0
      %v1392 = vadd.f32 %v1279, %v1391
      %v1393 = vpop.f32.mrb[0].mxu0
      %v1394 = vadd.f32 %v1281, %v1393
      %v1395 = vpop.f32.mrb[0].mxu0
      %v1396 = vadd.f32 %v1283, %v1395
      %v1397 = vpop.f32.mrb[0].mxu0
      %v1398 = vadd.f32 %v1285, %v1397
      %1399 = vmatprep.mubr.bf16.mxu0 0
      %1400 = vmatmul.mubr.bf16.gmra.mrb[0].mxu0 %v1173
      %v1401 = vpop.f32.mrb[0].mxu0
      %v1402 = vadd.f32 %v1289, %v1401
      %v1403 = vpop.f32.mrb[0].mxu0
      %v1404 = vadd.f32 %v1291, %v1403
      %v1405 = vpop.f32.mrb[0].mxu0
      %v1406 = vadd.f32 %v1293, %v1405
      %v1407 = vpop.f32.mrb[0].mxu0
      %v1408 = vadd.f32 %v1295, %v1407
      %1409 = vmatprep.mubr.bf16.mxu0 0
      %1410 = vmatmul.mubr.bf16.gmra.mrb[0].mxu0 %v1176
      %v1411 = vpop.f32.mrb[0].mxu0
      %v1412 = vadd.f32 %v1299, %v1411
      %v1413 = vpop.f32.mrb[0].mxu0
      %v1414 = vadd.f32 %v1301, %v1413
      %v1415 = vpop.f32.mrb[0].mxu0
      %v1416 = vadd.f32 %v1303, %v1415
      %v1417 = vpop.f32.mrb[0].mxu0
      %v1418 = vadd.f32 %v1305, %v1417
      %1419 = vdwg.mxu0
      %1420 = vmatprep.subr.bf16.mxu0 %v971
      %1421 = vmatpush1.bf16.msra.mxu0 %v970
      %1422 = vmatprep.subr.bf16.mxu0 %v976
      %1423 = vmatpush1.bf16.msra.mxu0 %v975
      %1424 = vmatprep.subr.bf16.mxu0 %v981
      %1425 = vmatpush1.bf16.msra.mxu0 %v980
      %1426 = vmatprep.subr.bf16.mxu0 %v986
      %1427 = vmatpush1.bf16.msra.mxu0 %v985
      %1428 = vmatprep.subr.bf16.mxu0 %v991
      %1429 = vmatpush1.bf16.msra.mxu0 %v990
      %1430 = vmatprep.subr.bf16.mxu0 %v996
      %1431 = vmatpush1.bf16.msra.mxu0 %v995
      %1432 = vmatprep.subr.bf16.mxu0 %v1001
      %1433 = vmatpush1.bf16.msra.mxu0 %v1000
      %1434 = vmatprep.subr.bf16.mxu0 %v1006
      %1435 = vmatpush1.bf16.msra.mxu0 %v1005
      %1436 = vmatprep.subr.bf16.mxu0 %v1011
      %1437 = vmatpush1.bf16.msra.mxu0 %v1010
      %1438 = vmatprep.subr.bf16.mxu0 %v1016
      %1439 = vmatpush1.bf16.msra.mxu0 %v1015
      %1440 = vmatprep.subr.bf16.mxu0 %v1021
      %1441 = vmatpush1.bf16.msra.mxu0 %v1020
      %1442 = vmatprep.subr.bf16.mxu0 %v1026
      %1443 = vmatpush1.bf16.msra.mxu0 %v1025
      %1444 = vmatprep.subr.bf16.mxu0 %v1031
      %1445 = vmatpush1.bf16.msra.mxu0 %v1030
      %1446 = vmatprep.subr.bf16.mxu0 %v1036
      %1447 = vmatpush1.bf16.msra.mxu0 %v1035
      %1448 = vmatprep.subr.bf16.mxu0 %v1041
      %1449 = vmatpush1.bf16.msra.mxu0 %v1040
      %1450 = vmatprep.subr.bf16.mxu0 %v1046
      %1451 = vmatpush1.bf16.msra.mxu0 %v1045
      %1452 = vmatprep.mubr.bf16.mxu0 %v495
      %1453 = vmatmul.mubr.bf16.gmra.mrb[0].mxu0 %v494
      %v1454 = vpop.f32.mrb[0].mxu0
      %v1455 = vadd.f32 %v650, %v1454
      %v1456 = vpop.f32.mrb[0].mxu0
      %v1457 = vadd.f32 %v654, %v1456
      %v1458 = vpop.f32.mrb[0].mxu0
      %v1459 = vadd.f32 %v650, %v1458
      %v1460 = vpop.f32.mrb[0].mxu0
      %v1461 = vadd.f32 %v654, %v1460
      %1462 = vmatprep.mubr.bf16.mxu0 %v498
      %1463 = vmatmul.mubr.bf16.gmra.mrb[0].mxu0 %v497
      %v1464 = vpop.f32.mrb[0].mxu0
      %v1465 = vadd.f32 %v650, %v1464
      %v1466 = vpop.f32.mrb[0].mxu0
      %v1467 = vadd.f32 %v654, %v1466
      %v1468 = vpop.f32.mrb[0].mxu0
      %v1469 = vadd.f32 %v650, %v1468
      %v1470 = vpop.f32.mrb[0].mxu0
      %v1471 = vadd.f32 %v654, %v1470
      %1472 = vmatprep.mubr.bf16.mxu0 %v501
      %1473 = vmatmul.mubr.bf16.gmra.mrb[0].mxu0 %v500
      %v1474 = vpop.f32.mrb[0].mxu0
      %v1475 = vadd.f32 %v650, %v1474
      %v1476 = vpop.f32.mrb[0].mxu0
      %v1477 = vadd.f32 %v654, %v1476
      %v1478 = vpop.f32.mrb[0].mxu0
      %v1479 = vadd.f32 %v650, %v1478
      %v1480 = vpop.f32.mrb[0].mxu0
      %v1481 = vadd.f32 %v654, %v1480
      %1482 = vmatprep.mubr.bf16.mxu0 %v504
      %1483 = vmatmul.mubr.bf16.gmra.mrb[0].mxu0 %v503
      %v1484 = vpop.f32.mrb[0].mxu0
      %v1485 = vadd.f32 %v650, %v1484
      %v1486 = vpop.f32.mrb[0].mxu0
      %v1487 = vadd.f32 %v654, %v1486
      %v1488 = vpop.f32.mrb[0].mxu0
      %v1489 = vadd.f32 %v650, %v1488
      %v1490 = vpop.f32.mrb[0].mxu0
      %v1491 = vadd.f32 %v654, %v1490
      %1492 = vmatprep.mubr.bf16.mxu0 %v507
      %1493 = vmatmul.mubr.bf16.gmra.mrb[0].mxu0 %v506
      %v1494 = vpop.f32.mrb[0].mxu0
      %v1495 = vadd.f32 %v650, %v1494
      %v1496 = vpop.f32.mrb[0].mxu0
      %v1497 = vadd.f32 %v654, %v1496
      %v1498 = vpop.f32.mrb[0].mxu0
      %v1499 = vadd.f32 %v650, %v1498
      %v1500 = vpop.f32.mrb[0].mxu0
      %v1501 = vadd.f32 %v654, %v1500
      %1502 = vmatprep.mubr.bf16.mxu0 %v510
      %1503 = vmatmul.mubr.bf16.gmra.mrb[0].mxu0 %v509
      %v1504 = vpop.f32.mrb[0].mxu0
      %v1505 = vadd.f32 %v650, %v1504
      %v1506 = vpop.f32.mrb[0].mxu0
      %v1507 = vadd.f32 %v654, %v1506
      %v1508 = vpop.f32.mrb[0].mxu0
      %v1509 = vadd.f32 %v650, %v1508
      %v1510 = vpop.f32.mrb[0].mxu0
      %v1511 = vadd.f32 %v654, %v1510
      %1512 = vmatprep.mubr.bf16.mxu0 %v513
      %1513 = vmatmul.mubr.bf16.gmra.mrb[0].mxu0 %v512
      %v1514 = vpop.f32.mrb[0].mxu0
      %v1515 = vadd.f32 %v650, %v1514
      %v1516 = vpop.f32.mrb[0].mxu0
      %v1517 = vadd.f32 %v654, %v1516
      %v1518 = vpop.f32.mrb[0].mxu0
      %v1519 = vadd.f32 %v650, %v1518
      %v1520 = vpop.f32.mrb[0].mxu0
      %v1521 = vadd.f32 %v654, %v1520
      %1522 = vmatprep.mubr.bf16.mxu0 %v516
      %1523 = vmatmul.mubr.bf16.gmra.mrb[0].mxu0 %v515
      %v1524 = vpop.f32.mrb[0].mxu0
      %v1525 = vadd.f32 %v650, %v1524
      %v1526 = vpop.f32.mrb[0].mxu0
      %v1527 = vadd.f32 %v654, %v1526
      %v1528 = vpop.f32.mrb[0].mxu0
      %v1529 = vadd.f32 %v650, %v1528
      %v1530 = vpop.f32.mrb[0].mxu0
      %v1531 = vadd.f32 %v654, %v1530
      %1532 = vdwg.mxu0
      %1533 = vmatprep.subr.bf16.mxu0 %v1051
      %1534 = vmatpush1.bf16.msra.mxu0 %v1050
      %1535 = vmatprep.subr.bf16.mxu0 %v1056
      %1536 = vmatpush1.bf16.msra.mxu0 %v1055
      %1537 = vmatprep.subr.bf16.mxu0 %v1189
      %1538 = vmatpush1.bf16.msra.mxu0 %v1186
      %1539 = vmatprep.subr.bf16.mxu0 0
      %1540 = vmatpush1.bf16.msra.mxu0 0
      %1541 = vmatprep.subr.bf16.mxu0 0
      %1542 = vmatpush1.bf16.msra.mxu0 0
      %1543 = vmatprep.subr.bf16.mxu0 0
      %1544 = vmatpush1.bf16.msra.mxu0 0
      %1545 = vmatprep.subr.bf16.mxu0 0
      %1546 = vmatpush1.bf16.msra.mxu0 0
      %1547 = vmatprep.subr.bf16.mxu0 0
      %1548 = vmatpush1.bf16.msra.mxu0 0
      %1549 = vmatprep.subr.bf16.mxu0 0
      %1550 = vmatpush1.bf16.msra.mxu0 0
      %1551 = vmatprep.subr.bf16.mxu0 0
      %1552 = vmatpush1.bf16.msra.mxu0 0
      %1553 = vmatprep.subr.bf16.mxu0 0
      %1554 = vmatpush1.bf16.msra.mxu0 0
      %1555 = vmatprep.subr.bf16.mxu0 0
      %1556 = vmatpush1.bf16.msra.mxu0 0
      %1557 = vmatprep.subr.bf16.mxu0 0
      %1558 = vmatpush1.bf16.msra.mxu0 0
      %1559 = vmatprep.subr.bf16.mxu0 0
      %1560 = vmatpush1.bf16.msra.mxu0 0
      %1561 = vmatprep.subr.bf16.mxu0 0
      %1562 = vmatpush1.bf16.msra.mxu0 0
      %1563 = vmatprep.subr.bf16.mxu0 0
      %1564 = vmatpush1.bf16.msra.mxu0 0
      %1565 = vmatprep.mubr.bf16.mxu0 0
      %1566 = vmatmul.mubr.bf16.gmra.mrb[0].mxu0 %v1155
      %v1567 = vpop.f32.mrb[0].mxu0
      %v1568 = vadd.f32 %v1455, %v1567
      %v1569 = vpop.f32.mrb[0].mxu0
      %v1570 = vadd.f32 %v1457, %v1569
      %v1571 = vpop.f32.mrb[0].mxu0
      %v1572 = vadd.f32 %v1459, %v1571
      %v1573 = vpop.f32.mrb[0].mxu0
      %v1574 = vadd.f32 %v1461, %v1573
      %1575 = vmatprep.mubr.bf16.mxu0 0
      %1576 = vmatmul.mubr.bf16.gmra.mrb[0].mxu0 %v1158
      %v1577 = vpop.f32.mrb[0].mxu0
      %v1578 = vadd.f32 %v1465, %v1577
      %v1579 = vpop.f32.mrb[0].mxu0
      %v1580 = vadd.f32 %v1467, %v1579
      %v1581 = vpop.f32.mrb[0].mxu0
      %v1582 = vadd.f32 %v1469, %v1581
      %v1583 = vpop.f32.mrb[0].mxu0
      %v1584 = vadd.f32 %v1471, %v1583
      %1585 = vmatprep.mubr.bf16.mxu0 0
      %1586 = vmatmul.mubr.bf16.gmra.mrb[0].mxu0 %v1161
      %v1587 = vpop.f32.mrb[0].mxu0
      %v1588 = vadd.f32 %v1475, %v1587
      %v1589 = vpop.f32.mrb[0].mxu0
      %v1590 = vadd.f32 %v1477, %v1589
      %v1591 = vpop.f32.mrb[0].mxu0
      %v1592 = vadd.f32 %v1479, %v1591
      %v1593 = vpop.f32.mrb[0].mxu0
      %v1594 = vadd.f32 %v1481, %v1593
      %1595 = vmatprep.mubr.bf16.mxu0 0
      %1596 = vmatmul.mubr.bf16.gmra.mrb[0].mxu0 %v1164
      %v1597 = vpop.f32.mrb[0].mxu0
      %v1598 = vadd.f32 %v1485, %v1597
      %v1599 = vpop.f32.mrb[0].mxu0
      %v1600 = vadd.f32 %v1487, %v1599
      %v1601 = vpop.f32.mrb[0].mxu0
      %v1602 = vadd.f32 %v1489, %v1601
      %v1603 = vpop.f32.mrb[0].mxu0
      %v1604 = vadd.f32 %v1491, %v1603
      %1605 = vmatprep.mubr.bf16.mxu0 0
      %1606 = vmatmul.mubr.bf16.gmra.mrb[0].mxu0 %v1167
      %v1607 = vpop.f32.mrb[0].mxu0
      %v1608 = vadd.f32 %v1495, %v1607
      %v1609 = vpop.f32.mrb[0].mxu0
      %v1610 = vadd.f32 %v1497, %v1609
      %v1611 = vpop.f32.mrb[0].mxu0
      %v1612 = vadd.f32 %v1499, %v1611
      %v1613 = vpop.f32.mrb[0].mxu0
      %v1614 = vadd.f32 %v1501, %v1613
      %1615 = vmatprep.mubr.bf16.mxu0 0
      %1616 = vmatmul.mubr.bf16.gmra.mrb[0].mxu0 %v1170
      %v1617 = vpop.f32.mrb[0].mxu0
      %v1618 = vadd.f32 %v1505, %v1617
      %v1619 = vpop.f32.mrb[0].mxu0
      %v1620 = vadd.f32 %v1507, %v1619
      %v1621 = vpop.f32.mrb[0].mxu0
      %v1622 = vadd.f32 %v1509, %v1621
      %v1623 = vpop.f32.mrb[0].mxu0
      %v1624 = vadd.f32 %v1511, %v1623
      %1625 = vmatprep.mubr.bf16.mxu0 0
      %1626 = vmatmul.mubr.bf16.gmra.mrb[0].mxu0 %v1173
      %v1627 = vpop.f32.mrb[0].mxu0
      %v1628 = vadd.f32 %v1515, %v1627
      %v1629 = vpop.f32.mrb[0].mxu0
      %v1630 = vadd.f32 %v1517, %v1629
      %v1631 = vpop.f32.mrb[0].mxu0
      %v1632 = vadd.f32 %v1519, %v1631
      %v1633 = vpop.f32.mrb[0].mxu0
      %v1634 = vadd.f32 %v1521, %v1633
      %1635 = vmatprep.mubr.bf16.mxu0 0
      %1636 = vmatmul.mubr.bf16.gmra.mrb[0].mxu0 %v1176
      %v1637 = vpop.f32.mrb[0].mxu0
      %v1638 = vadd.f32 %v1525, %v1637
      %v1639 = vpop.f32.mrb[0].mxu0
      %v1640 = vadd.f32 %v1527, %v1639
      %v1641 = vpop.f32.mrb[0].mxu0
      %v1642 = vadd.f32 %v1529, %v1641
      %v1643 = vpop.f32.mrb[0].mxu0
      %v1644 = vadd.f32 %v1531, %v1643
      %1645 = vdwg.mxu0
      %1646 = vmatprep.subr.bf16.mxu0 0
      %1647 = vmatpush1.bf16.msra.mxu0 %v972
      %1648 = vmatprep.subr.bf16.mxu0 0
      %1649 = vmatpush1.bf16.msra.mxu0 %v977
      %1650 = vmatprep.subr.bf16.mxu0 0
      %1651 = vmatpush1.bf16.msra.mxu0 %v982
      %1652 = vmatprep.subr.bf16.mxu0 0
      %1653 = vmatpush1.bf16.msra.mxu0 %v987
      %1654 = vmatprep.subr.bf16.mxu0 0
      %1655 = vmatpush1.bf16.msra.mxu0 %v992
      %1656 = vmatprep.subr.bf16.mxu0 0
      %1657 = vmatpush1.bf16.msra.mxu0 %v997
      %1658 = vmatprep.subr.bf16.mxu0 0
      %1659 = vmatpush1.bf16.msra.mxu0 %v1002
      %1660 = vmatprep.subr.bf16.mxu0 0
      %1661 = vmatpush1.bf16.msra.mxu0 %v1007
      %1662 = vmatprep.subr.bf16.mxu0 0
      %1663 = vmatpush1.bf16.msra.mxu0 %v1012
      %1664 = vmatprep.subr.bf16.mxu0 0
      %1665 = vmatpush1.bf16.msra.mxu0 %v1017
      %1666 = vmatprep.subr.bf16.mxu0 0
      %1667 = vmatpush1.bf16.msra.mxu0 %v1022
      %1668 = vmatprep.subr.bf16.mxu0 0
      %1669 = vmatpush1.bf16.msra.mxu0 %v1027
      %1670 = vmatprep.subr.bf16.mxu0 0
      %1671 = vmatpush1.bf16.msra.mxu0 %v1032
      %1672 = vmatprep.subr.bf16.mxu0 0
      %1673 = vmatpush1.bf16.msra.mxu0 %v1037
      %1674 = vmatprep.subr.bf16.mxu0 0
      %1675 = vmatpush1.bf16.msra.mxu0 %v1042
      %1676 = vmatprep.subr.bf16.mxu0 0
      %1677 = vmatpush1.bf16.msra.mxu0 %v1047
      %1678 = vmatprep.mubr.bf16.mxu0 %v495
      %1679 = vmatmul.mubr.bf16.gmra.mrb[0].mxu0 %v494
      %v1680 = vpop.f32.mrb[0].mxu0
      %v1681 = vadd.f32 %v658, %v1680
      %v1682 = vpop.f32.mrb[0].mxu0
      %v1683 = vpop.f32.mrb[0].mxu0
      %v1684 = vadd.f32 %v658, %v1683
      %v1685 = vpop.f32.mrb[0].mxu0
      %1686 = vmatprep.mubr.bf16.mxu0 %v498
      %1687 = vmatmul.mubr.bf16.gmra.mrb[0].mxu0 %v497
      %v1688 = vpop.f32.mrb[0].mxu0
      %v1689 = vadd.f32 %v658, %v1688
      %v1690 = vpop.f32.mrb[0].mxu0
      %v1691 = vpop.f32.mrb[0].mxu0
      %v1692 = vadd.f32 %v658, %v1691
      %v1693 = vpop.f32.mrb[0].mxu0
      %1694 = vmatprep.mubr.bf16.mxu0 %v501
      %1695 = vmatmul.mubr.bf16.gmra.mrb[0].mxu0 %v500
      %v1696 = vpop.f32.mrb[0].mxu0
      %v1697 = vadd.f32 %v658, %v1696
      %v1698 = vpop.f32.mrb[0].mxu0
      %v1699 = vpop.f32.mrb[0].mxu0
      %v1700 = vadd.f32 %v658, %v1699
      %v1701 = vpop.f32.mrb[0].mxu0
      %1702 = vmatprep.mubr.bf16.mxu0 %v504
      %1703 = vmatmul.mubr.bf16.gmra.mrb[0].mxu0 %v503
      %v1704 = vpop.f32.mrb[0].mxu0
      %v1705 = vadd.f32 %v658, %v1704
      %v1706 = vpop.f32.mrb[0].mxu0
      %v1707 = vpop.f32.mrb[0].mxu0
      %v1708 = vadd.f32 %v658, %v1707
      %v1709 = vpop.f32.mrb[0].mxu0
      %1710 = vmatprep.mubr.bf16.mxu0 %v507
      %1711 = vmatmul.mubr.bf16.gmra.mrb[0].mxu0 %v506
      %v1712 = vpop.f32.mrb[0].mxu0
      %v1713 = vadd.f32 %v658, %v1712
      %v1714 = vpop.f32.mrb[0].mxu0
      %v1715 = vpop.f32.mrb[0].mxu0
      %v1716 = vadd.f32 %v658, %v1715
      %v1717 = vpop.f32.mrb[0].mxu0
      %1718 = vmatprep.mubr.bf16.mxu0 %v510
      %1719 = vmatmul.mubr.bf16.gmra.mrb[0].mxu0 %v509
      %v1720 = vpop.f32.mrb[0].mxu0
      %v1721 = vadd.f32 %v658, %v1720
      %v1722 = vpop.f32.mrb[0].mxu0
      %v1723 = vpop.f32.mrb[0].mxu0
      %v1724 = vadd.f32 %v658, %v1723
      %v1725 = vpop.f32.mrb[0].mxu0
      %1726 = vmatprep.mubr.bf16.mxu0 %v513
      %1727 = vmatmul.mubr.bf16.gmra.mrb[0].mxu0 %v512
      %v1728 = vpop.f32.mrb[0].mxu0
      %v1729 = vadd.f32 %v658, %v1728
      %v1730 = vpop.f32.mrb[0].mxu0
      %v1731 = vpop.f32.mrb[0].mxu0
      %v1732 = vadd.f32 %v658, %v1731
      %v1733 = vpop.f32.mrb[0].mxu0
      %1734 = vmatprep.mubr.bf16.mxu0 %v516
      %1735 = vmatmul.mubr.bf16.gmra.mrb[0].mxu0 %v515
      %v1736 = vpop.f32.mrb[0].mxu0
      %v1737 = vadd.f32 %v658, %v1736
      %v1738 = vpop.f32.mrb[0].mxu0
      %v1739 = vpop.f32.mrb[0].mxu0
      %v1740 = vadd.f32 %v658, %v1739
      %v1741 = vpop.f32.mrb[0].mxu0
      %1742 = vdwg.mxu0
      %1743 = vmatprep.subr.bf16.mxu0 0
      %1744 = vmatpush1.bf16.msra.mxu0 %v1052
      %1745 = vmatprep.subr.bf16.mxu0 0
      %1746 = vmatpush1.bf16.msra.mxu0 %v1057
      %1747 = vmatprep.subr.bf16.mxu0 0
      %1748 = vmatpush1.bf16.msra.mxu0 %v1192
      %1749 = vmatprep.subr.bf16.mxu0 0
      %1750 = vmatpush1.bf16.msra.mxu0 0
      %1751 = vmatprep.subr.bf16.mxu0 0
      %1752 = vmatpush1.bf16.msra.mxu0 0
      %1753 = vmatprep.subr.bf16.mxu0 0
      %1754 = vmatpush1.bf16.msra.mxu0 0
      %1755 = vmatprep.subr.bf16.mxu0 0
      %1756 = vmatpush1.bf16.msra.mxu0 0
      %1757 = vmatprep.subr.bf16.mxu0 0
      %1758 = vmatpush1.bf16.msra.mxu0 0
      %1759 = vmatprep.subr.bf16.mxu0 0
      %1760 = vmatpush1.bf16.msra.mxu0 0
      %1761 = vmatprep.subr.bf16.mxu0 0
      %1762 = vmatpush1.bf16.msra.mxu0 0
      %1763 = vmatprep.subr.bf16.mxu0 0
      %1764 = vmatpush1.bf16.msra.mxu0 0
      %1765 = vmatprep.subr.bf16.mxu0 0
      %1766 = vmatpush1.bf16.msra.mxu0 0
      %1767 = vmatprep.subr.bf16.mxu0 0
      %1768 = vmatpush1.bf16.msra.mxu0 0
      %1769 = vmatprep.subr.bf16.mxu0 0
      %1770 = vmatpush1.bf16.msra.mxu0 0
      %1771 = vmatprep.subr.bf16.mxu0 0
      %1772 = vmatpush1.bf16.msra.mxu0 0
      %1773 = vmatprep.subr.bf16.mxu0 0
      %1774 = vmatpush1.bf16.msra.mxu0 0
      %1775 = vmatprep.mubr.bf16.mxu0 0
      %1776 = vmatmul.mubr.bf16.gmra.mrb[0].mxu0 %v1155
      %v1777 = vpop.f32.mrb[0].mxu0
      %v1778 = vadd.f32 %v1681, %v1777
      %v1779 = vpop.f32.mrb[0].mxu0
      %v1780 = vpop.f32.mrb[0].mxu0
      %v1781 = vadd.f32 %v1684, %v1780
      %v1782 = vpop.f32.mrb[0].mxu0
      %1783 = vmatprep.mubr.bf16.mxu0 0
      %1784 = vmatmul.mubr.bf16.gmra.mrb[0].mxu0 %v1158
      %v1785 = vpop.f32.mrb[0].mxu0
      %v1786 = vadd.f32 %v1689, %v1785
      %v1787 = vpop.f32.mrb[0].mxu0
      %v1788 = vpop.f32.mrb[0].mxu0
      %v1789 = vadd.f32 %v1692, %v1788
      %v1790 = vpop.f32.mrb[0].mxu0
      %1791 = vmatprep.mubr.bf16.mxu0 0
      %1792 = vmatmul.mubr.bf16.gmra.mrb[0].mxu0 %v1161
      %v1793 = vpop.f32.mrb[0].mxu0
      %v1794 = vadd.f32 %v1697, %v1793
      %v1795 = vpop.f32.mrb[0].mxu0
      %v1796 = vpop.f32.mrb[0].mxu0
      %v1797 = vadd.f32 %v1700, %v1796
      %v1798 = vpop.f32.mrb[0].mxu0
      %1799 = vmatprep.mubr.bf16.mxu0 0
      %1800 = vmatmul.mubr.bf16.gmra.mrb[0].mxu0 %v1164
      %v1801 = vpop.f32.mrb[0].mxu0
      %v1802 = vadd.f32 %v1705, %v1801
      %v1803 = vpop.f32.mrb[0].mxu0
      %v1804 = vpop.f32.mrb[0].mxu0
      %v1805 = vadd.f32 %v1708, %v1804
      %v1806 = vpop.f32.mrb[0].mxu0
      %1807 = vmatprep.mubr.bf16.mxu0 0
      %1808 = vmatmul.mubr.bf16.gmra.mrb[0].mxu0 %v1167
      %v1809 = vpop.f32.mrb[0].mxu0
      %v1810 = vadd.f32 %v1713, %v1809
      %v1811 = vpop.f32.mrb[0].mxu0
      %v1812 = vpop.f32.mrb[0].mxu0
      %v1813 = vadd.f32 %v1716, %v1812
      %v1814 = vpop.f32.mrb[0].mxu0
      %1815 = vmatprep.mubr.bf16.mxu0 0
      %1816 = vmatmul.mubr.bf16.gmra.mrb[0].mxu0 %v1170
      %v1817 = vpop.f32.mrb[0].mxu0
      %v1818 = vadd.f32 %v1721, %v1817
      %v1819 = vpop.f32.mrb[0].mxu0
      %v1820 = vpop.f32.mrb[0].mxu0
      %v1821 = vadd.f32 %v1724, %v1820
      %v1822 = vpop.f32.mrb[0].mxu0
      %1823 = vmatprep.mubr.bf16.mxu0 0
      %1824 = vmatmul.mubr.bf16.gmra.mrb[0].mxu0 %v1173
      %v1825 = vpop.f32.mrb[0].mxu0
      %v1826 = vadd.f32 %v1729, %v1825
      %v1827 = vpop.f32.mrb[0].mxu0
      %v1828 = vpop.f32.mrb[0].mxu0
      %v1829 = vadd.f32 %v1732, %v1828
      %v1830 = vpop.f32.mrb[0].mxu0
      %1831 = vmatprep.mubr.bf16.mxu0 0
      %1832 = vmatmul.mubr.bf16.gmra.mrb[0].mxu0 %v1176
      %v1833 = vpop.f32.mrb[0].mxu0
      %v1834 = vadd.f32 %v1737, %v1833
      %v1835 = vpop.f32.mrb[0].mxu0
      %v1836 = vpop.f32.mrb[0].mxu0
      %v1837 = vadd.f32 %v1740, %v1836
      %v1838 = vpop.f32.mrb[0].mxu0
      %1839 = vdwg.mxu0
      %v1840 = vmax.f32 %v1342, 0.0
      %v1841 = vmax.f32 %v1344, 0.0
      %v1842 = vmax.f32 %v1568, 0.0
      %v1843 = vmax.f32 %v1570, 0.0
      %v1844 = vmax.f32 %v1778, 0.0
      %v1845 = vmax.f32 %v1346, 0.0
      %v1846 = vmax.f32 %v1348, 0.0
      %v1847 = vmax.f32 %v1572, 0.0
      %v1848 = vmax.f32 %v1574, 0.0
      %v1849 = vmax.f32 %v1781, 0.0
      %v1850 = vmax.f32 %v1352, 0.0
      %v1851 = vmax.f32 %v1354, 0.0
      %v1852 = vmax.f32 %v1578, 0.0
      %v1853 = vmax.f32 %v1580, 0.0
      %v1854 = vmax.f32 %v1786, 0.0
      %v1855 = vmax.f32 %v1356, 0.0
      %v1856 = vmax.f32 %v1358, 0.0
      %v1857 = vmax.f32 %v1582, 0.0
      %v1858 = vmax.f32 %v1584, 0.0
      %v1859 = vmax.f32 %v1789, 0.0
      %v1860 = vmax.f32 %v1362, 0.0
      %v1861 = vmax.f32 %v1364, 0.0
      %v1862 = vmax.f32 %v1588, 0.0
      %v1863 = vmax.f32 %v1590, 0.0
      %v1864 = vmax.f32 %v1794, 0.0
      %v1865 = vmax.f32 %v1366, 0.0
      %v1866 = vmax.f32 %v1368, 0.0
      %v1867 = vmax.f32 %v1592, 0.0
      %v1868 = vmax.f32 %v1594, 0.0
      %v1869 = vmax.f32 %v1797, 0.0
      %v1870 = vmax.f32 %v1372, 0.0
      %v1871 = vmax.f32 %v1374, 0.0
      %v1872 = vmax.f32 %v1598, 0.0
      %v1873 = vmax.f32 %v1600, 0.0
      %v1874 = vmax.f32 %v1802, 0.0
      %v1875 = vmax.f32 %v1376, 0.0
      %v1876 = vmax.f32 %v1378, 0.0
      %v1877 = vmax.f32 %v1602, 0.0
      %v1878 = vmax.f32 %v1604, 0.0
      %v1879 = vmax.f32 %v1805, 0.0
      %v1880 = vmax.f32 %v1382, 0.0
      %v1881 = vmax.f32 %v1384, 0.0
      %v1882 = vmax.f32 %v1608, 0.0
      %v1883 = vmax.f32 %v1610, 0.0
      %v1884 = vmax.f32 %v1810, 0.0
      %v1885 = vmax.f32 %v1386, 0.0
      %v1886 = vmax.f32 %v1388, 0.0
      %v1887 = vmax.f32 %v1612, 0.0
      %v1888 = vmax.f32 %v1614, 0.0
      %v1889 = vmax.f32 %v1813, 0.0
      %v1890 = vmax.f32 %v1392, 0.0
      %v1891 = vmax.f32 %v1394, 0.0
      %v1892 = vmax.f32 %v1618, 0.0
      %v1893 = vmax.f32 %v1620, 0.0
      %v1894 = vmax.f32 %v1818, 0.0
      %v1895 = vmax.f32 %v1396, 0.0
      %v1896 = vmax.f32 %v1398, 0.0
      %v1897 = vmax.f32 %v1622, 0.0
      %v1898 = vmax.f32 %v1624, 0.0
      %v1899 = vmax.f32 %v1821, 0.0
      %v1900 = vmax.f32 %v1402, 0.0
      %v1901 = vmax.f32 %v1404, 0.0
      %v1902 = vmax.f32 %v1628, 0.0
      %v1903 = vmax.f32 %v1630, 0.0
      %v1904 = vmax.f32 %v1826, 0.0
      %v1905 = vmax.f32 %v1406, 0.0
      %v1906 = vmax.f32 %v1408, 0.0
      %v1907 = vmax.f32 %v1632, 0.0
      %v1908 = vmax.f32 %v1634, 0.0
      %v1909 = vmax.f32 %v1829, 0.0
      %v1910 = vmax.f32 %v1412, 0.0
      %v1911 = vmax.f32 %v1414, 0.0
      %v1912 = vmax.f32 %v1638, 0.0
      %v1913 = vmax.f32 %v1640, 0.0
      %v1914 = vmax.f32 %v1834, 0.0
      %v1915 = vmax.f32 %v1416, 0.0
      %v1916 = vmax.f32 %v1418, 0.0
      %v1917 = vmax.f32 %v1642, 0.0
      %v1918 = vmax.f32 %v1644, 0.0
      %v1919 = vmax.f32 %v1837, 0.0
      %v1920 = vpack.c.bf16 %v1845, %v1840
      %v1921 = vpack.c.bf16 %v1846, %v1841
      %v1922 = vpack.c.bf16 %v1847, %v1842
      %v1923 = vpack.c.bf16 %v1848, %v1843
      %v1924 = vpack.c.bf16 %v1849, %v1844
      %v1925 = vpack.c.bf16 %v1855, %v1850
      %v1926 = vpack.c.bf16 %v1856, %v1851
      %v1927 = vpack.c.bf16 %v1857, %v1852
      %v1928 = vpack.c.bf16 %v1858, %v1853
      %v1929 = vpack.c.bf16 %v1859, %v1854
      %v1930 = vpack.c.bf16 %v1865, %v1860
      %v1931 = vpack.c.bf16 %v1866, %v1861
      %v1932 = vpack.c.bf16 %v1867, %v1862
      %v1933 = vpack.c.bf16 %v1868, %v1863
      %v1934 = vpack.c.bf16 %v1869, %v1864
      %v1935 = vpack.c.bf16 %v1875, %v1870
      %v1936 = vpack.c.bf16 %v1876, %v1871
      %v1937 = vpack.c.bf16 %v1877, %v1872
      %v1938 = vpack.c.bf16 %v1878, %v1873
      %v1939 = vpack.c.bf16 %v1879, %v1874
      %v1940 = vpack.c.bf16 %v1885, %v1880
      %v1941 = vpack.c.bf16 %v1886, %v1881
      %v1942 = vpack.c.bf16 %v1887, %v1882
      %v1943 = vpack.c.bf16 %v1888, %v1883
      %v1944 = vpack.c.bf16 %v1889, %v1884
      %v1945 = vpack.c.bf16 %v1895, %v1890
      %v1946 = vpack.c.bf16 %v1896, %v1891
      %v1947 = vpack.c.bf16 %v1897, %v1892
      %v1948 = vpack.c.bf16 %v1898, %v1893
      %v1949 = vpack.c.bf16 %v1899, %v1894
      %v1950 = vpack.c.bf16 %v1905, %v1900
      %v1951 = vpack.c.bf16 %v1906, %v1901
      %v1952 = vpack.c.bf16 %v1907, %v1902
      %v1953 = vpack.c.bf16 %v1908, %v1903
      %v1954 = vpack.c.bf16 %v1909, %v1904
      %v1955 = vpack.c.bf16 %v1915, %v1910
      %v1956 = vpack.c.bf16 %v1916, %v1911
      %v1957 = vpack.c.bf16 %v1917, %v1912
      %v1958 = vpack.c.bf16 %v1918, %v1913
      %v1959 = vpack.c.bf16 %v1919, %v1914
      %s1960 = smul.u32 %s124, 225
      %s1961 = smul.addr %s1960, 4
      %s1962 = scalar_lea.vmem %s6, %s1961
      %v1963 = vld [vmem:[%s1962] sm:$0xff]
      %v1964 = vld [vmem:[%s1962 + $0x8] sm:$0xf]
      %v1965 = vld [vmem:[%s1962 + $0xc] sm:$0xff]
      %v1966 = vld [vmem:[%s1962 + $0x14] sm:$0xf]
      %v1967 = vld [vmem:[%s1962 + $0x18] sm:$0xff]
      %v1968 = vld [vmem:[%s1962 + $0x20] sm:$0xf]
      %v1969 = vld [vmem:[%s1962 + $0x24] sm:$0xff]
      %v1970 = vld [vmem:[%s1962 + $0x2c] sm:$0xf]
      %v1971 = vld [vmem:[%s1962 + $0x30] sm:$0xff]
      %v1972 = vld [vmem:[%s1962 + $0x38] sm:$0xf]
      %v1973 = vld [vmem:[%s1962 + $0x3c] sm:$0xff]
      %v1974 = vld [vmem:[%s1962 + $0x44] sm:$0xf]
      %v1975 = vld [vmem:[%s1962 + $0x48] sm:$0xff]
      %v1976 = vld [vmem:[%s1962 + $0x50] sm:$0xf]
      %v1977 = vld [vmem:[%s1962 + $0x54] sm:$0xff]
      %v1978 = vld [vmem:[%s1962 + $0x5c] sm:$0xf]
      %v1979 = vld [vmem:[%s1962 + $0x60] sm:$0xff]
      %v1980 = vld [vmem:[%s1962 + $0x68] sm:$0xf]
      %v1981 = vld [vmem:[%s1962 + $0x6c] sm:$0xff]
      %v1982 = vld [vmem:[%s1962 + $0x74] sm:$0xf]
      %v1983 = vld [vmem:[%s1962 + $0x78] sm:$0xff]
      %v1984 = vld [vmem:[%s1962 + $0x80] sm:$0xf]
      %v1985 = vld [vmem:[%s1962 + $0x84] sm:$0xff]
      %v1986 = vld [vmem:[%s1962 + $0x8c] sm:$0xf]
      %v1987 = vld [vmem:[%s1962 + $0x90] sm:$0xff]
      %v1988 = vld [vmem:[%s1962 + $0x98] sm:$0xf]
      %v1989 = vld [vmem:[%s1962 + $0x9c] sm:$0xff]
      %v1990 = vld [vmem:[%s1962 + $0xa4] sm:$0xf]
      %v1991 = vld [vmem:[%s1962 + $0xa8] sm:$0xff]
      %v1992 = vld [vmem:[%s1962 + $0xb0] sm:$0xf]
      %v1993 = vld [vmem:[%s1962 + $0xb4] sm:$0xff]
      %v1994 = vld [vmem:[%s1962 + $0xbc] sm:$0xf]
      %v1995 = vld [vmem:[%s1962 + $0xc0] sm:$0xff]
      %v1996 = vld [vmem:[%s1962 + $0xc8] sm:$0xf]
      %v1997 = vld [vmem:[%s1962 + $0xcc] sm:$0xff]
      %v1998 = vld [vmem:[%s1962 + $0xd4] sm:$0xf]
      %v1999 = vld [vmem:[%s1962 + $0xd8] sm:$0xff]
      %v2000 = vld [vmem:[%s1962 + $0xe0] sm:$0xf]
      %v2001 = vld [vmem:[%s1962 + $0xe4] sm:$0xff]
      %v2002 = vld [vmem:[%s1962 + $0xec] sm:$0xf]
      %v2003 = vld [vmem:[%s1962 + $0xf0] sm:$0xff]
      %v2004 = vld [vmem:[%s1962 + $0xf8] sm:$0xf]
      %v2005 = vld [vmem:[%s1962 + $0xfc] sm:$0xff]
      %v2006 = vld [vmem:[%s1962 + $0x104] sm:$0xf]
      %v2007 = vld [vmem:[%s1962 + $0x108] sm:$0xff]
      %v2008 = vld [vmem:[%s1962 + $0x110] sm:$0xf]
      %v2009 = vld [vmem:[%s1962 + $0x114] sm:$0xff]
      %v2010 = vld [vmem:[%s1962 + $0x11c] sm:$0xf]
      %v2011 = vld [vmem:[%s1962 + $0x120] sm:$0xff]
      %v2012 = vld [vmem:[%s1962 + $0x128] sm:$0xf]
      %v2013 = vld [vmem:[%s1962 + $0x12c] sm:$0xff]
      %v2014 = vld [vmem:[%s1962 + $0x134] sm:$0xf]
      %v2015 = vld [vmem:[%s1962 + $0x138] sm:$0xff]
      %v2016 = vld [vmem:[%s1962 + $0x140] sm:$0xf]
      %v2017 = vld [vmem:[%s1962 + $0x144] sm:$0xff]
      %v2018 = vld [vmem:[%s1962 + $0x14c] sm:$0xf]
      %v2019 = vld [vmem:[%s1962 + $0x150] sm:$0xff]
      %v2020 = vld [vmem:[%s1962 + $0x158] sm:$0xf]
      %v2021 = vld [vmem:[%s1962 + $0x15c] sm:$0xff]
      %v2022 = vld [vmem:[%s1962 + $0x164] sm:$0xf]
      %v2023 = vld [vmem:[%s1962 + $0x168] sm:$0xff]
      %v2024 = vld [vmem:[%s1962 + $0x170] sm:$0xf]
      %v2025 = vld [vmem:[%s1962 + $0x174] sm:$0xff]
      %v2026 = vld [vmem:[%s1962 + $0x17c] sm:$0xf]
      %v2027 = vld [vmem:[%s1962 + $0x180] sm:$0xff]
      %v2028 = vld [vmem:[%s1962 + $0x188] sm:$0xf]
      %v2029 = vld [vmem:[%s1962 + $0x18c] sm:$0xff]
      %v2030 = vld [vmem:[%s1962 + $0x194] sm:$0xf]
      %v2031 = vld [vmem:[%s1962 + $0x198] sm:$0xff]
      %v2032 = vld [vmem:[%s1962 + $0x1a0] sm:$0xf]
      %v2033 = vld [vmem:[%s1962 + $0x1a4] sm:$0xff]
      %v2034 = vld [vmem:[%s1962 + $0x1ac] sm:$0xf]
      %v2035 = vld [vmem:[%s1962 + $0x1b0] sm:$0xff]
      %v2036 = vld [vmem:[%s1962 + $0x1b8] sm:$0xf]
      %v2037 = vld [vmem:[%s1962 + $0x1bc] sm:$0xff]
      %v2038 = vld [vmem:[%s1962 + $0x1c4] sm:$0xf]
      %v2039 = vld [vmem:[%s1962 + $0x1c8] sm:$0xff]
      %v2040 = vld [vmem:[%s1962 + $0x1d0] sm:$0xf]
      %v2041 = vld [vmem:[%s1962 + $0x1d4] sm:$0xff]
      %v2042 = vld [vmem:[%s1962 + $0x1dc] sm:$0xf]
      %v2043 = vld [vmem:[%s1962 + $0x1e0] sm:$0xff]
      %v2044 = vld [vmem:[%s1962 + $0x1e8] sm:$0xf]
      %v2045 = vld [vmem:[%s1962 + $0x1ec] sm:$0xff]
      %v2046 = vld [vmem:[%s1962 + $0x1f4] sm:$0xf]
      %v2047 = vld [vmem:[%s1962 + $0x1f8] sm:$0xff]
      %v2048 = vld [vmem:[%s1962 + $0x200] sm:$0xf]
      %v2049 = vld [vmem:[%s1962 + $0x204] sm:$0xff]
      %v2050 = vld [vmem:[%s1962 + $0x20c] sm:$0xf]
      %v2051 = vld [vmem:[%s1962 + $0x210] sm:$0xff]
      %v2052 = vld [vmem:[%s1962 + $0x218] sm:$0xf]
      %v2053 = vld [vmem:[%s1962 + $0x21c] sm:$0xff]
      %v2054 = vld [vmem:[%s1962 + $0x224] sm:$0xf]
      %v2055 = vld [vmem:[%s1962 + $0x228] sm:$0xff]
      %v2056 = vld [vmem:[%s1962 + $0x230] sm:$0xf]
      %v2057 = vld [vmem:[%s1962 + $0x234] sm:$0xff]
      %v2058 = vld [vmem:[%s1962 + $0x23c] sm:$0xf]
      %v2059 = vld [vmem:[%s1962 + $0x240] sm:$0xff]
      %v2060 = vld [vmem:[%s1962 + $0x248] sm:$0xf]
      %v2061 = vld [vmem:[%s1962 + $0x24c] sm:$0xff]
      %v2062 = vld [vmem:[%s1962 + $0x254] sm:$0xf]
      %v2063 = vld [vmem:[%s1962 + $0x258] sm:$0xff]
      %v2064 = vld [vmem:[%s1962 + $0x260] sm:$0xf]
      %v2065 = vld [vmem:[%s1962 + $0x264] sm:$0xff]
      %v2066 = vld [vmem:[%s1962 + $0x26c] sm:$0xf]
      %v2067 = vld [vmem:[%s1962 + $0x270] sm:$0xff]
      %v2068 = vld [vmem:[%s1962 + $0x278] sm:$0xf]
      %v2069 = vld [vmem:[%s1962 + $0x27c] sm:$0xff]
      %v2070 = vld [vmem:[%s1962 + $0x284] sm:$0xf]
      %v2071 = vld [vmem:[%s1962 + $0x288] sm:$0xff]
      %v2072 = vld [vmem:[%s1962 + $0x290] sm:$0xf]
      %v2073 = vld [vmem:[%s1962 + $0x294] sm:$0xff]
      %v2074 = vld [vmem:[%s1962 + $0x29c] sm:$0xf]
      %v2075 = vld [vmem:[%s1962 + $0x2a0] sm:$0xff]
      %v2076 = vld [vmem:[%s1962 + $0x2a8] sm:$0xf]
      %v2077 = vld [vmem:[%s1962 + $0x2ac] sm:$0xff]
      %v2078 = vld [vmem:[%s1962 + $0x2b4] sm:$0xf]
      %v2079 = vld [vmem:[%s1962 + $0x2b8] sm:$0xff]
      %v2080 = vld [vmem:[%s1962 + $0x2c0] sm:$0xf]
      %v2081 = vld [vmem:[%s1962 + $0x2c4] sm:$0xff]
      %v2082 = vld [vmem:[%s1962 + $0x2cc] sm:$0xf]
      %v2083 = vld [vmem:[%s1962 + $0x2d0] sm:$0xff]
      %v2084 = vld [vmem:[%s1962 + $0x2d8] sm:$0xf]
      %v2085 = vld [vmem:[%s1962 + $0x2dc] sm:$0xff]
      %v2086 = vld [vmem:[%s1962 + $0x2e4] sm:$0xf]
      %v2087 = vld [vmem:[%s1962 + $0x2e8] sm:$0xff]
      %v2088 = vld [vmem:[%s1962 + $0x2f0] sm:$0xf]
      %v2089 = vld [vmem:[%s1962 + $0x2f4] sm:$0xff]
      %v2090 = vld [vmem:[%s1962 + $0x2fc] sm:$0xf]
      %v2091 = vld [vmem:[%s1962 + $0x300] sm:$0xff]
      %v2092 = vld [vmem:[%s1962 + $0x308] sm:$0xf]
      %v2093 = vld [vmem:[%s1962 + $0x30c] sm:$0xff]
      %v2094 = vld [vmem:[%s1962 + $0x314] sm:$0xf]
      %v2095 = vld [vmem:[%s1962 + $0x318] sm:$0xff]
      %v2096 = vld [vmem:[%s1962 + $0x320] sm:$0xf]
      %v2097 = vld [vmem:[%s1962 + $0x324] sm:$0xff]
      %v2098 = vld [vmem:[%s1962 + $0x32c] sm:$0xf]
      %v2099 = vld [vmem:[%s1962 + $0x330] sm:$0xff]
      %v2100 = vld [vmem:[%s1962 + $0x338] sm:$0xf]
      %v2101 = vld [vmem:[%s1962 + $0x33c] sm:$0xff]
      %v2102 = vld [vmem:[%s1962 + $0x344] sm:$0xf]
      %v2103 = vld [vmem:[%s1962 + $0x348] sm:$0xff]
      %v2104 = vld [vmem:[%s1962 + $0x350] sm:$0xf]
      %v2105 = vld [vmem:[%s1962 + $0x354] sm:$0xff]
      %v2106 = vld [vmem:[%s1962 + $0x35c] sm:$0xf]
      %v2107 = vld [vmem:[%s1962 + $0x360] sm:$0xff]
      %v2108 = vld [vmem:[%s1962 + $0x368] sm:$0xf]
      %v2109 = vld [vmem:[%s1962 + $0x36c] sm:$0xff]
      %v2110 = vld [vmem:[%s1962 + $0x374] sm:$0xf]
      %v2111 = vld [vmem:[%s1962 + $0x378] sm:$0xff]
      %v2112 = vld [vmem:[%s1962 + $0x380] sm:$0xf]
      %s2113 = smul.u32 %s124, 3
      %s2114 = scalar_lea.vmem %s7, %s2113
      %v2115 = vld [vmem:[%s2114] sm:$0x7]
      %v2117 = vlaneseq
      %v2118 = vshrl.u32 %v2117, 7
      %v2119 = vsub.s32 0, %v2118
      %v2120 = vrot.slane %v2115, %v2119
      %v2121 = vlaneseq
      %v2122 = vshrl.u32 %v2121, 7
      %v2123 = vsub.s32 1, %v2122
      %v2124 = vrot.slane %v2115, %v2123
      %v2125 = vlaneseq
      %v2126 = vshrl.u32 %v2125, 7
      %v2127 = vsub.s32 2, %v2126
      %v2128 = vrot.slane %v2115, %v2127
      %v2282 = vunpack.c.l.b16 %v1963
      %v2283 = vunpack.c.h.b16 %v1963
      %v2284 = vunpack.c.l.b16 %v1964
      %v2285 = vunpack.c.l.b16 %v1965
      %v2286 = vunpack.c.h.b16 %v1965
      %v2287 = vunpack.c.l.b16 %v1966
      %v2288 = vunpack.c.l.b16 %v1967
      %v2289 = vunpack.c.h.b16 %v1967
      %v2290 = vunpack.c.l.b16 %v1968
      %v2291 = vunpack.c.l.b16 %v1969
      %v2292 = vunpack.c.h.b16 %v1969
      %v2293 = vunpack.c.l.b16 %v1970
      %v2294 = vunpack.c.l.b16 %v1971
      %v2295 = vunpack.c.h.b16 %v1971
      %v2296 = vunpack.c.l.b16 %v1972
      %v2297 = vunpack.c.l.b16 %v1973
      %v2298 = vunpack.c.h.b16 %v1973
      %v2299 = vunpack.c.l.b16 %v1974
      %v2300 = vunpack.c.l.b16 %v1975
      %v2301 = vunpack.c.h.b16 %v1975
      %v2302 = vunpack.c.l.b16 %v1976
      %v2303 = vunpack.c.l.b16 %v1977
      %v2304 = vunpack.c.h.b16 %v1977
      %v2305 = vunpack.c.l.b16 %v1978
      %v2306 = vunpack.c.l.b16 %v1979
      %v2307 = vunpack.c.h.b16 %v1979
      %v2308 = vunpack.c.l.b16 %v1980
      %v2309 = vunpack.c.l.b16 %v1981
      %v2310 = vunpack.c.h.b16 %v1981
      %v2311 = vunpack.c.l.b16 %v1982
      %v2312 = vunpack.c.l.b16 %v1983
      %v2313 = vunpack.c.h.b16 %v1983
      %v2314 = vunpack.c.l.b16 %v1984
      %v2315 = vunpack.c.l.b16 %v1985
      %v2316 = vunpack.c.h.b16 %v1985
      %v2317 = vunpack.c.l.b16 %v1986
      %v2318 = vunpack.c.l.b16 %v1987
      %v2319 = vunpack.c.h.b16 %v1987
      %v2320 = vunpack.c.l.b16 %v1988
      %v2321 = vunpack.c.l.b16 %v1989
      %v2322 = vunpack.c.h.b16 %v1989
      %v2323 = vunpack.c.l.b16 %v1990
      %v2324 = vunpack.c.l.b16 %v1991
      %v2325 = vunpack.c.h.b16 %v1991
      %v2326 = vunpack.c.l.b16 %v1992
      %v2327 = vunpack.c.l.b16 %v1993
      %v2328 = vunpack.c.h.b16 %v1993
      %v2329 = vunpack.c.l.b16 %v1994
      %v2330 = vunpack.c.l.b16 %v1995
      %v2331 = vunpack.c.h.b16 %v1995
      %v2332 = vunpack.c.l.b16 %v1996
      %v2333 = vunpack.c.l.b16 %v1997
      %v2334 = vunpack.c.h.b16 %v1997
      %v2335 = vunpack.c.l.b16 %v1998
      %v2336 = vunpack.c.l.b16 %v1999
      %v2337 = vunpack.c.h.b16 %v1999
      %v2338 = vunpack.c.l.b16 %v2000
      %v2339 = vunpack.c.l.b16 %v2001
      %v2340 = vunpack.c.h.b16 %v2001
      %v2341 = vunpack.c.l.b16 %v2002
      %v2342 = vunpack.c.l.b16 %v2003
      %v2343 = vunpack.c.h.b16 %v2003
      %v2344 = vunpack.c.l.b16 %v2004
      %v2345 = vunpack.c.l.b16 %v2005
      %v2346 = vunpack.c.h.b16 %v2005
      %v2347 = vunpack.c.l.b16 %v2006
      %v2348 = vunpack.c.l.b16 %v2007
      %v2349 = vunpack.c.h.b16 %v2007
      %v2350 = vunpack.c.l.b16 %v2008
      %v2351 = vunpack.c.l.b16 %v2009
      %v2352 = vunpack.c.h.b16 %v2009
      %v2353 = vunpack.c.l.b16 %v2010
      %v2354 = vunpack.c.l.b16 %v2011
      %v2355 = vunpack.c.h.b16 %v2011
      %v2356 = vunpack.c.l.b16 %v2012
      %v2357 = vunpack.c.l.b16 %v2013
      %v2358 = vunpack.c.h.b16 %v2013
      %v2359 = vunpack.c.l.b16 %v2014
      %v2360 = vunpack.c.l.b16 %v2015
      %v2361 = vunpack.c.h.b16 %v2015
      %v2362 = vunpack.c.l.b16 %v2016
      %v2363 = vunpack.c.l.b16 %v2017
      %v2364 = vunpack.c.h.b16 %v2017
      %v2365 = vunpack.c.l.b16 %v2018
      %v2366 = vunpack.c.l.b16 %v2019
      %v2367 = vunpack.c.h.b16 %v2019
      %v2368 = vunpack.c.l.b16 %v2020
      %v2369 = vunpack.c.l.b16 %v2021
      %v2370 = vunpack.c.h.b16 %v2021
      %v2371 = vunpack.c.l.b16 %v2022
      %v2372 = vunpack.c.l.b16 %v2023
      %v2373 = vunpack.c.h.b16 %v2023
      %v2374 = vunpack.c.l.b16 %v2024
      %v2375 = vunpack.c.l.b16 %v2025
      %v2376 = vunpack.c.h.b16 %v2025
      %v2377 = vunpack.c.l.b16 %v2026
      %v2378 = vunpack.c.l.b16 %v2027
      %v2379 = vunpack.c.h.b16 %v2027
      %v2380 = vunpack.c.l.b16 %v2028
      %v2381 = vunpack.c.l.b16 %v2029
      %v2382 = vunpack.c.h.b16 %v2029
      %v2383 = vunpack.c.l.b16 %v2030
      %v2384 = vunpack.c.l.b16 %v2031
      %v2385 = vunpack.c.h.b16 %v2031
      %v2386 = vunpack.c.l.b16 %v2032
      %v2387 = vunpack.c.l.b16 %v2033
      %v2388 = vunpack.c.h.b16 %v2033
      %v2389 = vunpack.c.l.b16 %v2034
      %v2390 = vunpack.c.l.b16 %v2035
      %v2391 = vunpack.c.h.b16 %v2035
      %v2392 = vunpack.c.l.b16 %v2036
      %v2393 = vunpack.c.l.b16 %v2037
      %v2394 = vunpack.c.h.b16 %v2037
      %v2395 = vunpack.c.l.b16 %v2038
      %v2396 = vunpack.c.l.b16 %v2039
      %v2397 = vunpack.c.h.b16 %v2039
      %v2398 = vunpack.c.l.b16 %v2040
      %v2399 = vunpack.c.l.b16 %v2041
      %v2400 = vunpack.c.h.b16 %v2041
      %v2401 = vunpack.c.l.b16 %v2042
      %v2402 = vunpack.c.l.b16 %v2043
      %v2403 = vunpack.c.h.b16 %v2043
      %v2404 = vunpack.c.l.b16 %v2044
      %v2405 = vunpack.c.l.b16 %v2045
      %v2406 = vunpack.c.h.b16 %v2045
      %v2407 = vunpack.c.l.b16 %v2046
      %v2408 = vunpack.c.l.b16 %v2047
      %v2409 = vunpack.c.h.b16 %v2047
      %v2410 = vunpack.c.l.b16 %v2048
      %v2411 = vunpack.c.l.b16 %v2049
      %v2412 = vunpack.c.h.b16 %v2049
      %v2413 = vunpack.c.l.b16 %v2050
      %v2414 = vunpack.c.l.b16 %v2051
      %v2415 = vunpack.c.h.b16 %v2051
      %v2416 = vunpack.c.l.b16 %v2052
      %v2417 = vunpack.c.l.b16 %v2053
      %v2418 = vunpack.c.h.b16 %v2053
      %v2419 = vunpack.c.l.b16 %v2054
      %v2420 = vunpack.c.l.b16 %v2055
      %v2421 = vunpack.c.h.b16 %v2055
      %v2422 = vunpack.c.l.b16 %v2056
      %v2423 = vunpack.c.l.b16 %v2057
      %v2424 = vunpack.c.h.b16 %v2057
      %v2425 = vunpack.c.l.b16 %v2058
      %v2426 = vunpack.c.l.b16 %v2059
      %v2427 = vunpack.c.h.b16 %v2059
      %v2428 = vunpack.c.l.b16 %v2060
      %v2429 = vunpack.c.l.b16 %v2061
      %v2430 = vunpack.c.h.b16 %v2061
      %v2431 = vunpack.c.l.b16 %v2062
      %v2432 = vunpack.c.l.b16 %v2063
      %v2433 = vunpack.c.h.b16 %v2063
      %v2434 = vunpack.c.l.b16 %v2064
      %v2435 = vunpack.c.l.b16 %v2065
      %v2436 = vunpack.c.h.b16 %v2065
      %v2437 = vunpack.c.l.b16 %v2066
      %v2438 = vunpack.c.l.b16 %v2067
      %v2439 = vunpack.c.h.b16 %v2067
      %v2440 = vunpack.c.l.b16 %v2068
      %v2441 = vunpack.c.l.b16 %v2069
      %v2442 = vunpack.c.h.b16 %v2069
      %v2443 = vunpack.c.l.b16 %v2070
      %v2444 = vunpack.c.l.b16 %v2071
      %v2445 = vunpack.c.h.b16 %v2071
      %v2446 = vunpack.c.l.b16 %v2072
      %v2447 = vunpack.c.l.b16 %v2073
      %v2448 = vunpack.c.h.b16 %v2073
      %v2449 = vunpack.c.l.b16 %v2074
      %v2450 = vunpack.c.l.b16 %v2075
      %v2451 = vunpack.c.h.b16 %v2075
      %v2452 = vunpack.c.l.b16 %v2076
      %v2453 = vunpack.c.l.b16 %v2077
      %v2454 = vunpack.c.h.b16 %v2077
      %v2455 = vunpack.c.l.b16 %v2078
      %v2456 = vunpack.c.l.b16 %v2079
      %v2457 = vunpack.c.h.b16 %v2079
      %v2458 = vunpack.c.l.b16 %v2080
      %v2459 = vunpack.c.l.b16 %v2081
      %v2460 = vunpack.c.h.b16 %v2081
      %v2461 = vunpack.c.l.b16 %v2082
      %v2462 = vunpack.c.l.b16 %v2083
      %v2463 = vunpack.c.h.b16 %v2083
      %v2464 = vunpack.c.l.b16 %v2084
      %v2465 = vunpack.c.l.b16 %v2085
      %v2466 = vunpack.c.h.b16 %v2085
      %v2467 = vunpack.c.l.b16 %v2086
      %v2468 = vunpack.c.l.b16 %v2087
      %v2469 = vunpack.c.h.b16 %v2087
      %v2470 = vunpack.c.l.b16 %v2088
      %v2471 = vunpack.c.l.b16 %v2089
      %v2472 = vunpack.c.h.b16 %v2089
      %v2473 = vunpack.c.l.b16 %v2090
      %v2474 = vunpack.c.l.b16 %v2091
      %v2475 = vunpack.c.h.b16 %v2091
      %v2476 = vunpack.c.l.b16 %v2092
      %v2477 = vunpack.c.l.b16 %v2093
      %v2478 = vunpack.c.h.b16 %v2093
      %v2479 = vunpack.c.l.b16 %v2094
      %v2480 = vunpack.c.l.b16 %v2095
      %v2481 = vunpack.c.h.b16 %v2095
      %v2482 = vunpack.c.l.b16 %v2096
      %v2483 = vunpack.c.l.b16 %v2097
      %v2484 = vunpack.c.h.b16 %v2097
      %v2485 = vunpack.c.l.b16 %v2098
      %v2486 = vunpack.c.l.b16 %v2099
      %v2487 = vunpack.c.h.b16 %v2099
      %v2488 = vunpack.c.l.b16 %v2100
      %v2489 = vunpack.c.l.b16 %v2101
      %v2490 = vunpack.c.h.b16 %v2101
      %v2491 = vunpack.c.l.b16 %v2102
      %v2492 = vunpack.c.l.b16 %v2103
      %v2493 = vunpack.c.h.b16 %v2103
      %v2494 = vunpack.c.l.b16 %v2104
      %v2495 = vunpack.c.l.b16 %v2105
      %v2496 = vunpack.c.h.b16 %v2105
      %v2497 = vunpack.c.l.b16 %v2106
      %v2498 = vunpack.c.l.b16 %v2107
      %v2499 = vunpack.c.h.b16 %v2107
      %v2500 = vunpack.c.l.b16 %v2108
      %v2501 = vunpack.c.l.b16 %v2109
      %v2502 = vunpack.c.h.b16 %v2109
      %v2503 = vunpack.c.l.b16 %v2110
      %v2504 = vunpack.c.l.b16 %v2111
      %v2505 = vunpack.c.h.b16 %v2111
      %v2506 = vunpack.c.l.b16 %v2112
      %v2507 = vpack.c.b16 %v2285, %v2282
      %v2508 = vpack.c.b16 %v2286, %v2283
      %v2509 = vpack.c.b16 %v2287, %v2284
      %v2510 = vpack.c.b16 %v2291, %v2288
      %v2511 = vpack.c.b16 %v2292, %v2289
      %v2512 = vpack.c.b16 %v2293, %v2290
      %v2513 = vpack.c.b16 %v2297, %v2294
      %v2514 = vpack.c.b16 %v2298, %v2295
      %v2515 = vpack.c.b16 %v2299, %v2296
      %v2516 = vpack.c.b16 %v2303, %v2300
      %v2517 = vpack.c.b16 %v2304, %v2301
      %v2518 = vpack.c.b16 %v2305, %v2302
      %v2519 = vpack.c.b16 %v2309, %v2306
      %v2520 = vpack.c.b16 %v2310, %v2307
      %v2521 = vpack.c.b16 %v2311, %v2308
      %v2522 = vpack.c.b16 %v2315, %v2312
      %v2523 = vpack.c.b16 %v2316, %v2313
      %v2524 = vpack.c.b16 %v2317, %v2314
      %v2525 = vpack.c.b16 %v2321, %v2318
      %v2526 = vpack.c.b16 %v2322, %v2319
      %v2527 = vpack.c.b16 %v2323, %v2320
      %v2528 = vpack.c.b16 %v2327, %v2324
      %v2529 = vpack.c.b16 %v2328, %v2325
      %v2530 = vpack.c.b16 %v2329, %v2326
      %v2531 = vpack.c.b16 %v2333, %v2330
      %v2532 = vpack.c.b16 %v2334, %v2331
      %v2533 = vpack.c.b16 %v2335, %v2332
      %v2534 = vpack.c.b16 %v2339, %v2336
      %v2535 = vpack.c.b16 %v2340, %v2337
      %v2536 = vpack.c.b16 %v2341, %v2338
      %v2537 = vpack.c.b16 %v2345, %v2342
      %v2538 = vpack.c.b16 %v2346, %v2343
      %v2539 = vpack.c.b16 %v2347, %v2344
      %v2540 = vpack.c.b16 %v2351, %v2348
      %v2541 = vpack.c.b16 %v2352, %v2349
      %v2542 = vpack.c.b16 %v2353, %v2350
      %v2543 = vpack.c.b16 %v2357, %v2354
      %v2544 = vpack.c.b16 %v2358, %v2355
      %v2545 = vpack.c.b16 %v2359, %v2356
      %v2546 = vpack.c.b16 %v2363, %v2360
      %v2547 = vpack.c.b16 %v2364, %v2361
      %v2548 = vpack.c.b16 %v2365, %v2362
      %v2549 = vpack.c.b16 %v2369, %v2366
      %v2550 = vpack.c.b16 %v2370, %v2367
      %v2551 = vpack.c.b16 %v2371, %v2368
      %v2552 = vpack.c.b16 %v2375, %v2372
      %v2553 = vpack.c.b16 %v2376, %v2373
      %v2554 = vpack.c.b16 %v2377, %v2374
      %v2555 = vpack.c.b16 %v2381, %v2378
      %v2556 = vpack.c.b16 %v2382, %v2379
      %v2557 = vpack.c.b16 %v2383, %v2380
      %v2558 = vpack.c.b16 %v2387, %v2384
      %v2559 = vpack.c.b16 %v2388, %v2385
      %v2560 = vpack.c.b16 %v2389, %v2386
      %v2561 = vpack.c.b16 %v2393, %v2390
      %v2562 = vpack.c.b16 %v2394, %v2391
      %v2563 = vpack.c.b16 %v2395, %v2392
      %v2564 = vpack.c.b16 %v2399, %v2396
      %v2565 = vpack.c.b16 %v2400, %v2397
      %v2566 = vpack.c.b16 %v2401, %v2398
      %v2567 = vpack.c.b16 %v2405, %v2402
      %v2568 = vpack.c.b16 %v2406, %v2403
      %v2569 = vpack.c.b16 %v2407, %v2404
      %v2570 = vpack.c.b16 %v2411, %v2408
      %v2571 = vpack.c.b16 %v2412, %v2409
      %v2572 = vpack.c.b16 %v2413, %v2410
      %v2573 = vpack.c.b16 %v2417, %v2414
      %v2574 = vpack.c.b16 %v2418, %v2415
      %v2575 = vpack.c.b16 %v2419, %v2416
      %v2576 = vpack.c.b16 %v2423, %v2420
      %v2577 = vpack.c.b16 %v2424, %v2421
      %v2578 = vpack.c.b16 %v2425, %v2422
      %v2579 = vpack.c.b16 %v2429, %v2426
      %v2580 = vpack.c.b16 %v2430, %v2427
      %v2581 = vpack.c.b16 %v2431, %v2428
      %v2582 = vpack.c.b16 %v2435, %v2432
      %v2583 = vpack.c.b16 %v2436, %v2433
      %v2584 = vpack.c.b16 %v2437, %v2434
      %v2585 = vpack.c.b16 %v2441, %v2438
      %v2586 = vpack.c.b16 %v2442, %v2439
      %v2587 = vpack.c.b16 %v2443, %v2440
      %v2588 = vpack.c.b16 %v2447, %v2444
      %v2589 = vpack.c.b16 %v2448, %v2445
      %v2590 = vpack.c.b16 %v2449, %v2446
      %v2591 = vpack.c.b16 %v2453, %v2450
      %v2592 = vpack.c.b16 %v2454, %v2451
      %v2593 = vpack.c.b16 %v2455, %v2452
      %v2594 = vpack.c.b16 %v2459, %v2456
      %v2595 = vpack.c.b16 %v2460, %v2457
      %v2596 = vpack.c.b16 %v2461, %v2458
      %v2597 = vpack.c.b16 %v2465, %v2462
      %v2598 = vpack.c.b16 %v2466, %v2463
      %v2599 = vpack.c.b16 %v2467, %v2464
      %v2600 = vpack.c.b16 %v2471, %v2468
      %v2601 = vpack.c.b16 %v2472, %v2469
      %v2602 = vpack.c.b16 %v2473, %v2470
      %v2603 = vpack.c.b16 %v2477, %v2474
      %v2604 = vpack.c.b16 %v2478, %v2475
      %v2605 = vpack.c.b16 %v2479, %v2476
      %v2606 = vpack.c.b16 %v2483, %v2480
      %v2607 = vpack.c.b16 %v2484, %v2481
      %v2608 = vpack.c.b16 %v2485, %v2482
      %v2609 = vpack.c.b16 %v2489, %v2486
      %v2610 = vpack.c.b16 %v2490, %v2487
      %v2611 = vpack.c.b16 %v2491, %v2488
      %v2612 = vpack.c.b16 %v2495, %v2492
      %v2613 = vpack.c.b16 %v2496, %v2493
      %v2614 = vpack.c.b16 %v2497, %v2494
      %v2615 = vpack.c.b16 %v2501, %v2498
      %v2616 = vpack.c.b16 %v2502, %v2499
      %v2617 = vpack.c.b16 %v2503, %v2500
      %v2618 = vpack.c.b16 %v2504, %v2504
      %v2619 = vpack.c.b16 %v2505, %v2505
      %v2620 = vpack.c.b16 %v2506, %v2506
      %vm2732 = vcmask 719872
      %v2734 = vsel %vm2732, %v1924, 0
      %v2737 = vsel %vm2732, %v1929, 0
      %v2740 = vsel %vm2732, %v1934, 0
      %v2743 = vsel %vm2732, %v1939, 0
      %v2746 = vsel %vm2732, %v1944, 0
      %v2749 = vsel %vm2732, %v1949, 0
      %v2752 = vsel %vm2732, %v1954, 0
      %v2755 = vsel %vm2732, %v1959, 0
      %vm2757 = vcmask 1043456
      %v2759 = vsel %vm2757, %v2618, 0
      %v2762 = vsel %vm2757, %v2619, 0
      %v2765 = vsel %vm2757, %v2620, 0
      %2767 = vmatprep.subr.bf16.mxu0 %v2508
      %2768 = vmatpush1.bf16.msra.mxu0 %v2507
      %2769 = vmatprep.subr.bf16.mxu0 %v2511
      %2770 = vmatpush1.bf16.msra.mxu0 %v2510
      %2771 = vmatprep.subr.bf16.mxu0 %v2514
      %2772 = vmatpush1.bf16.msra.mxu0 %v2513
      %2773 = vmatprep.subr.bf16.mxu0 %v2517
      %2774 = vmatpush1.bf16.msra.mxu0 %v2516
      %2775 = vmatprep.subr.bf16.mxu0 %v2520
      %2776 = vmatpush1.bf16.msra.mxu0 %v2519
      %2777 = vmatprep.subr.bf16.mxu0 %v2523
      %2778 = vmatpush1.bf16.msra.mxu0 %v2522
      %2779 = vmatprep.subr.bf16.mxu0 %v2526
      %2780 = vmatpush1.bf16.msra.mxu0 %v2525
      %2781 = vmatprep.subr.bf16.mxu0 %v2529
      %2782 = vmatpush1.bf16.msra.mxu0 %v2528
      %2783 = vmatprep.subr.bf16.mxu0 %v2532
      %2784 = vmatpush1.bf16.msra.mxu0 %v2531
      %2785 = vmatprep.subr.bf16.mxu0 %v2535
      %2786 = vmatpush1.bf16.msra.mxu0 %v2534
      %2787 = vmatprep.subr.bf16.mxu0 %v2538
      %2788 = vmatpush1.bf16.msra.mxu0 %v2537
      %2789 = vmatprep.subr.bf16.mxu0 %v2541
      %2790 = vmatpush1.bf16.msra.mxu0 %v2540
      %2791 = vmatprep.subr.bf16.mxu0 %v2544
      %2792 = vmatpush1.bf16.msra.mxu0 %v2543
      %2793 = vmatprep.subr.bf16.mxu0 %v2547
      %2794 = vmatpush1.bf16.msra.mxu0 %v2546
      %2795 = vmatprep.subr.bf16.mxu0 %v2550
      %2796 = vmatpush1.bf16.msra.mxu0 %v2549
      %2797 = vmatprep.subr.bf16.mxu0 %v2553
      %2798 = vmatpush1.bf16.msra.mxu0 %v2552
      %2799 = vmatprep.mubr.bf16.mxu0 %v1921
      %2800 = vmatmul.mubr.bf16.gmra.mrb[0].mxu0 %v1920
      %v2801 = vpop.f32.mrb[0].mxu0
      %v2802 = vadd.f32 %v2120, %v2801
      %v2803 = vpop.f32.mrb[0].mxu0
      %v2804 = vadd.f32 %v2124, %v2803
      %v2805 = vpop.f32.mrb[0].mxu0
      %v2806 = vadd.f32 %v2120, %v2805
      %v2807 = vpop.f32.mrb[0].mxu0
      %v2808 = vadd.f32 %v2124, %v2807
      %2809 = vmatprep.mubr.bf16.mxu0 %v1926
      %2810 = vmatmul.mubr.bf16.gmra.mrb[0].mxu0 %v1925
      %v2811 = vpop.f32.mrb[0].mxu0
      %v2812 = vadd.f32 %v2120, %v2811
      %v2813 = vpop.f32.mrb[0].mxu0
      %v2814 = vadd.f32 %v2124, %v2813
      %v2815 = vpop.f32.mrb[0].mxu0
      %v2816 = vadd.f32 %v2120, %v2815
      %v2817 = vpop.f32.mrb[0].mxu0
      %v2818 = vadd.f32 %v2124, %v2817
      %2819 = vmatprep.mubr.bf16.mxu0 %v1931
      %2820 = vmatmul.mubr.bf16.gmra.mrb[0].mxu0 %v1930
      %v2821 = vpop.f32.mrb[0].mxu0
      %v2822 = vadd.f32 %v2120, %v2821
      %v2823 = vpop.f32.mrb[0].mxu0
      %v2824 = vadd.f32 %v2124, %v2823
      %v2825 = vpop.f32.mrb[0].mxu0
      %v2826 = vadd.f32 %v2120, %v2825
      %v2827 = vpop.f32.mrb[0].mxu0
      %v2828 = vadd.f32 %v2124, %v2827
      %2829 = vmatprep.mubr.bf16.mxu0 %v1936
      %2830 = vmatmul.mubr.bf16.gmra.mrb[0].mxu0 %v1935
      %v2831 = vpop.f32.mrb[0].mxu0
      %v2832 = vadd.f32 %v2120, %v2831
      %v2833 = vpop.f32.mrb[0].mxu0
      %v2834 = vadd.f32 %v2124, %v2833
      %v2835 = vpop.f32.mrb[0].mxu0
      %v2836 = vadd.f32 %v2120, %v2835
      %v2837 = vpop.f32.mrb[0].mxu0
      %v2838 = vadd.f32 %v2124, %v2837
      %2839 = vmatprep.mubr.bf16.mxu0 %v1941
      %2840 = vmatmul.mubr.bf16.gmra.mrb[0].mxu0 %v1940
      %v2841 = vpop.f32.mrb[0].mxu0
      %v2842 = vadd.f32 %v2120, %v2841
      %v2843 = vpop.f32.mrb[0].mxu0
      %v2844 = vadd.f32 %v2124, %v2843
      %v2845 = vpop.f32.mrb[0].mxu0
      %v2846 = vadd.f32 %v2120, %v2845
      %v2847 = vpop.f32.mrb[0].mxu0
      %v2848 = vadd.f32 %v2124, %v2847
      %2849 = vmatprep.mubr.bf16.mxu0 %v1946
      %2850 = vmatmul.mubr.bf16.gmra.mrb[0].mxu0 %v1945
      %v2851 = vpop.f32.mrb[0].mxu0
      %v2852 = vadd.f32 %v2120, %v2851
      %v2853 = vpop.f32.mrb[0].mxu0
      %v2854 = vadd.f32 %v2124, %v2853
      %v2855 = vpop.f32.mrb[0].mxu0
      %v2856 = vadd.f32 %v2120, %v2855
      %v2857 = vpop.f32.mrb[0].mxu0
      %v2858 = vadd.f32 %v2124, %v2857
      %2859 = vmatprep.mubr.bf16.mxu0 %v1951
      %2860 = vmatmul.mubr.bf16.gmra.mrb[0].mxu0 %v1950
      %v2861 = vpop.f32.mrb[0].mxu0
      %v2862 = vadd.f32 %v2120, %v2861
      %v2863 = vpop.f32.mrb[0].mxu0
      %v2864 = vadd.f32 %v2124, %v2863
      %v2865 = vpop.f32.mrb[0].mxu0
      %v2866 = vadd.f32 %v2120, %v2865
      %v2867 = vpop.f32.mrb[0].mxu0
      %v2868 = vadd.f32 %v2124, %v2867
      %2869 = vmatprep.mubr.bf16.mxu0 %v1956
      %2870 = vmatmul.mubr.bf16.gmra.mrb[0].mxu0 %v1955
      %v2871 = vpop.f32.mrb[0].mxu0
      %v2872 = vadd.f32 %v2120, %v2871
      %v2873 = vpop.f32.mrb[0].mxu0
      %v2874 = vadd.f32 %v2124, %v2873
      %v2875 = vpop.f32.mrb[0].mxu0
      %v2876 = vadd.f32 %v2120, %v2875
      %v2877 = vpop.f32.mrb[0].mxu0
      %v2878 = vadd.f32 %v2124, %v2877
      %2879 = vdwg.mxu0
      %2880 = vmatprep.subr.bf16.mxu0 %v2556
      %2881 = vmatpush1.bf16.msra.mxu0 %v2555
      %2882 = vmatprep.subr.bf16.mxu0 %v2559
      %2883 = vmatpush1.bf16.msra.mxu0 %v2558
      %2884 = vmatprep.subr.bf16.mxu0 %v2562
      %2885 = vmatpush1.bf16.msra.mxu0 %v2561
      %2886 = vmatprep.subr.bf16.mxu0 %v2565
      %2887 = vmatpush1.bf16.msra.mxu0 %v2564
      %2888 = vmatprep.subr.bf16.mxu0 %v2568
      %2889 = vmatpush1.bf16.msra.mxu0 %v2567
      %2890 = vmatprep.subr.bf16.mxu0 %v2571
      %2891 = vmatpush1.bf16.msra.mxu0 %v2570
      %2892 = vmatprep.subr.bf16.mxu0 %v2574
      %2893 = vmatpush1.bf16.msra.mxu0 %v2573
      %2894 = vmatprep.subr.bf16.mxu0 %v2577
      %2895 = vmatpush1.bf16.msra.mxu0 %v2576
      %2896 = vmatprep.subr.bf16.mxu0 %v2580
      %2897 = vmatpush1.bf16.msra.mxu0 %v2579
      %2898 = vmatprep.subr.bf16.mxu0 %v2583
      %2899 = vmatpush1.bf16.msra.mxu0 %v2582
      %2900 = vmatprep.subr.bf16.mxu0 %v2586
      %2901 = vmatpush1.bf16.msra.mxu0 %v2585
      %2902 = vmatprep.subr.bf16.mxu0 %v2589
      %2903 = vmatpush1.bf16.msra.mxu0 %v2588
      %2904 = vmatprep.subr.bf16.mxu0 %v2592
      %2905 = vmatpush1.bf16.msra.mxu0 %v2591
      %2906 = vmatprep.subr.bf16.mxu0 %v2595
      %2907 = vmatpush1.bf16.msra.mxu0 %v2594
      %2908 = vmatprep.subr.bf16.mxu0 %v2598
      %2909 = vmatpush1.bf16.msra.mxu0 %v2597
      %2910 = vmatprep.subr.bf16.mxu0 %v2601
      %2911 = vmatpush1.bf16.msra.mxu0 %v2600
      %2912 = vmatprep.mubr.bf16.mxu0 %v1923
      %2913 = vmatmul.mubr.bf16.gmra.mrb[0].mxu0 %v1922
      %v2914 = vpop.f32.mrb[0].mxu0
      %v2915 = vadd.f32 %v2802, %v2914
      %v2916 = vpop.f32.mrb[0].mxu0
      %v2917 = vadd.f32 %v2804, %v2916
      %v2918 = vpop.f32.mrb[0].mxu0
      %v2919 = vadd.f32 %v2806, %v2918
      %v2920 = vpop.f32.mrb[0].mxu0
      %v2921 = vadd.f32 %v2808, %v2920
      %2922 = vmatprep.mubr.bf16.mxu0 %v1928
      %2923 = vmatmul.mubr.bf16.gmra.mrb[0].mxu0 %v1927
      %v2924 = vpop.f32.mrb[0].mxu0
      %v2925 = vadd.f32 %v2812, %v2924
      %v2926 = vpop.f32.mrb[0].mxu0
      %v2927 = vadd.f32 %v2814, %v2926
      %v2928 = vpop.f32.mrb[0].mxu0
      %v2929 = vadd.f32 %v2816, %v2928
      %v2930 = vpop.f32.mrb[0].mxu0
      %v2931 = vadd.f32 %v2818, %v2930
      %2932 = vmatprep.mubr.bf16.mxu0 %v1933
      %2933 = vmatmul.mubr.bf16.gmra.mrb[0].mxu0 %v1932
      %v2934 = vpop.f32.mrb[0].mxu0
      %v2935 = vadd.f32 %v2822, %v2934
      %v2936 = vpop.f32.mrb[0].mxu0
      %v2937 = vadd.f32 %v2824, %v2936
      %v2938 = vpop.f32.mrb[0].mxu0
      %v2939 = vadd.f32 %v2826, %v2938
      %v2940 = vpop.f32.mrb[0].mxu0
      %v2941 = vadd.f32 %v2828, %v2940
      %2942 = vmatprep.mubr.bf16.mxu0 %v1938
      %2943 = vmatmul.mubr.bf16.gmra.mrb[0].mxu0 %v1937
      %v2944 = vpop.f32.mrb[0].mxu0
      %v2945 = vadd.f32 %v2832, %v2944
      %v2946 = vpop.f32.mrb[0].mxu0
      %v2947 = vadd.f32 %v2834, %v2946
      %v2948 = vpop.f32.mrb[0].mxu0
      %v2949 = vadd.f32 %v2836, %v2948
      %v2950 = vpop.f32.mrb[0].mxu0
      %v2951 = vadd.f32 %v2838, %v2950
      %2952 = vmatprep.mubr.bf16.mxu0 %v1943
      %2953 = vmatmul.mubr.bf16.gmra.mrb[0].mxu0 %v1942
      %v2954 = vpop.f32.mrb[0].mxu0
      %v2955 = vadd.f32 %v2842, %v2954
      %v2956 = vpop.f32.mrb[0].mxu0
      %v2957 = vadd.f32 %v2844, %v2956
      %v2958 = vpop.f32.mrb[0].mxu0
      %v2959 = vadd.f32 %v2846, %v2958
      %v2960 = vpop.f32.mrb[0].mxu0
      %v2961 = vadd.f32 %v2848, %v2960
      %2962 = vmatprep.mubr.bf16.mxu0 %v1948
      %2963 = vmatmul.mubr.bf16.gmra.mrb[0].mxu0 %v1947
      %v2964 = vpop.f32.mrb[0].mxu0
      %v2965 = vadd.f32 %v2852, %v2964
      %v2966 = vpop.f32.mrb[0].mxu0
      %v2967 = vadd.f32 %v2854, %v2966
      %v2968 = vpop.f32.mrb[0].mxu0
      %v2969 = vadd.f32 %v2856, %v2968
      %v2970 = vpop.f32.mrb[0].mxu0
      %v2971 = vadd.f32 %v2858, %v2970
      %2972 = vmatprep.mubr.bf16.mxu0 %v1953
      %2973 = vmatmul.mubr.bf16.gmra.mrb[0].mxu0 %v1952
      %v2974 = vpop.f32.mrb[0].mxu0
      %v2975 = vadd.f32 %v2862, %v2974
      %v2976 = vpop.f32.mrb[0].mxu0
      %v2977 = vadd.f32 %v2864, %v2976
      %v2978 = vpop.f32.mrb[0].mxu0
      %v2979 = vadd.f32 %v2866, %v2978
      %v2980 = vpop.f32.mrb[0].mxu0
      %v2981 = vadd.f32 %v2868, %v2980
      %2982 = vmatprep.mubr.bf16.mxu0 %v1958
      %2983 = vmatmul.mubr.bf16.gmra.mrb[0].mxu0 %v1957
      %v2984 = vpop.f32.mrb[0].mxu0
      %v2985 = vadd.f32 %v2872, %v2984
      %v2986 = vpop.f32.mrb[0].mxu0
      %v2987 = vadd.f32 %v2874, %v2986
      %v2988 = vpop.f32.mrb[0].mxu0
      %v2989 = vadd.f32 %v2876, %v2988
      %v2990 = vpop.f32.mrb[0].mxu0
      %v2991 = vadd.f32 %v2878, %v2990
      %2992 = vdwg.mxu0
      %2993 = vmatprep.subr.bf16.mxu0 %v2604
      %2994 = vmatpush1.bf16.msra.mxu0 %v2603
      %2995 = vmatprep.subr.bf16.mxu0 %v2607
      %2996 = vmatpush1.bf16.msra.mxu0 %v2606
      %2997 = vmatprep.subr.bf16.mxu0 %v2610
      %2998 = vmatpush1.bf16.msra.mxu0 %v2609
      %2999 = vmatprep.subr.bf16.mxu0 %v2613
      %3000 = vmatpush1.bf16.msra.mxu0 %v2612
      %3001 = vmatprep.subr.bf16.mxu0 %v2616
      %3002 = vmatpush1.bf16.msra.mxu0 %v2615
      %3003 = vmatprep.subr.bf16.mxu0 %v2762
      %3004 = vmatpush1.bf16.msra.mxu0 %v2759
      %3005 = vmatprep.subr.bf16.mxu0 0
      %3006 = vmatpush1.bf16.msra.mxu0 0
      %3007 = vmatprep.subr.bf16.mxu0 0
      %3008 = vmatpush1.bf16.msra.mxu0 0
      %3009 = vmatprep.subr.bf16.mxu0 0
      %3010 = vmatpush1.bf16.msra.mxu0 0
      %3011 = vmatprep.subr.bf16.mxu0 0
      %3012 = vmatpush1.bf16.msra.mxu0 0
      %3013 = vmatprep.subr.bf16.mxu0 0
      %3014 = vmatpush1.bf16.msra.mxu0 0
      %3015 = vmatprep.subr.bf16.mxu0 0
      %3016 = vmatpush1.bf16.msra.mxu0 0
      %3017 = vmatprep.subr.bf16.mxu0 0
      %3018 = vmatpush1.bf16.msra.mxu0 0
      %3019 = vmatprep.subr.bf16.mxu0 0
      %3020 = vmatpush1.bf16.msra.mxu0 0
      %3021 = vmatprep.subr.bf16.mxu0 0
      %3022 = vmatpush1.bf16.msra.mxu0 0
      %3023 = vmatprep.subr.bf16.mxu0 0
      %3024 = vmatpush1.bf16.msra.mxu0 0
      %3025 = vmatprep.mubr.bf16.mxu0 0
      %3026 = vmatmul.mubr.bf16.gmra.mrb[0].mxu0 %v2734
      %v3027 = vpop.f32.mrb[0].mxu0
      %v3028 = vadd.f32 %v2915, %v3027
      %v3029 = vpop.f32.mrb[0].mxu0
      %v3030 = vadd.f32 %v2917, %v3029
      %v3031 = vpop.f32.mrb[0].mxu0
      %v3032 = vadd.f32 %v2919, %v3031
      %v3033 = vpop.f32.mrb[0].mxu0
      %v3034 = vadd.f32 %v2921, %v3033
      %3035 = vmatprep.mubr.bf16.mxu0 0
      %3036 = vmatmul.mubr.bf16.gmra.mrb[0].mxu0 %v2737
      %v3037 = vpop.f32.mrb[0].mxu0
      %v3038 = vadd.f32 %v2925, %v3037
      %v3039 = vpop.f32.mrb[0].mxu0
      %v3040 = vadd.f32 %v2927, %v3039
      %v3041 = vpop.f32.mrb[0].mxu0
      %v3042 = vadd.f32 %v2929, %v3041
      %v3043 = vpop.f32.mrb[0].mxu0
      %v3044 = vadd.f32 %v2931, %v3043
      %3045 = vmatprep.mubr.bf16.mxu0 0
      %3046 = vmatmul.mubr.bf16.gmra.mrb[0].mxu0 %v2740
      %v3047 = vpop.f32.mrb[0].mxu0
      %v3048 = vadd.f32 %v2935, %v3047
      %v3049 = vpop.f32.mrb[0].mxu0
      %v3050 = vadd.f32 %v2937, %v3049
      %v3051 = vpop.f32.mrb[0].mxu0
      %v3052 = vadd.f32 %v2939, %v3051
      %v3053 = vpop.f32.mrb[0].mxu0
      %v3054 = vadd.f32 %v2941, %v3053
      %3055 = vmatprep.mubr.bf16.mxu0 0
      %3056 = vmatmul.mubr.bf16.gmra.mrb[0].mxu0 %v2743
      %v3057 = vpop.f32.mrb[0].mxu0
      %v3058 = vadd.f32 %v2945, %v3057
      %v3059 = vpop.f32.mrb[0].mxu0
      %v3060 = vadd.f32 %v2947, %v3059
      %v3061 = vpop.f32.mrb[0].mxu0
      %v3062 = vadd.f32 %v2949, %v3061
      %v3063 = vpop.f32.mrb[0].mxu0
      %v3064 = vadd.f32 %v2951, %v3063
      %3065 = vmatprep.mubr.bf16.mxu0 0
      %3066 = vmatmul.mubr.bf16.gmra.mrb[0].mxu0 %v2746
      %v3067 = vpop.f32.mrb[0].mxu0
      %v3068 = vadd.f32 %v2955, %v3067
      %v3069 = vpop.f32.mrb[0].mxu0
      %v3070 = vadd.f32 %v2957, %v3069
      %v3071 = vpop.f32.mrb[0].mxu0
      %v3072 = vadd.f32 %v2959, %v3071
      %v3073 = vpop.f32.mrb[0].mxu0
      %v3074 = vadd.f32 %v2961, %v3073
      %3075 = vmatprep.mubr.bf16.mxu0 0
      %3076 = vmatmul.mubr.bf16.gmra.mrb[0].mxu0 %v2749
      %v3077 = vpop.f32.mrb[0].mxu0
      %v3078 = vadd.f32 %v2965, %v3077
      %v3079 = vpop.f32.mrb[0].mxu0
      %v3080 = vadd.f32 %v2967, %v3079
      %v3081 = vpop.f32.mrb[0].mxu0
      %v3082 = vadd.f32 %v2969, %v3081
      %v3083 = vpop.f32.mrb[0].mxu0
      %v3084 = vadd.f32 %v2971, %v3083
      %3085 = vmatprep.mubr.bf16.mxu0 0
      %3086 = vmatmul.mubr.bf16.gmra.mrb[0].mxu0 %v2752
      %v3087 = vpop.f32.mrb[0].mxu0
      %v3088 = vadd.f32 %v2975, %v3087
      %v3089 = vpop.f32.mrb[0].mxu0
      %v3090 = vadd.f32 %v2977, %v3089
      %v3091 = vpop.f32.mrb[0].mxu0
      %v3092 = vadd.f32 %v2979, %v3091
      %v3093 = vpop.f32.mrb[0].mxu0
      %v3094 = vadd.f32 %v2981, %v3093
      %3095 = vmatprep.mubr.bf16.mxu0 0
      %3096 = vmatmul.mubr.bf16.gmra.mrb[0].mxu0 %v2755
      %v3097 = vpop.f32.mrb[0].mxu0
      %v3098 = vadd.f32 %v2985, %v3097
      %v3099 = vpop.f32.mrb[0].mxu0
      %v3100 = vadd.f32 %v2987, %v3099
      %v3101 = vpop.f32.mrb[0].mxu0
      %v3102 = vadd.f32 %v2989, %v3101
      %v3103 = vpop.f32.mrb[0].mxu0
      %v3104 = vadd.f32 %v2991, %v3103
      %3105 = vdwg.mxu0
      %3106 = vmatprep.subr.bf16.mxu0 0
      %3107 = vmatpush1.bf16.msra.mxu0 %v2509
      %3108 = vmatprep.subr.bf16.mxu0 0
      %3109 = vmatpush1.bf16.msra.mxu0 %v2512
      %3110 = vmatprep.subr.bf16.mxu0 0
      %3111 = vmatpush1.bf16.msra.mxu0 %v2515
      %3112 = vmatprep.subr.bf16.mxu0 0
      %3113 = vmatpush1.bf16.msra.mxu0 %v2518
      %3114 = vmatprep.subr.bf16.mxu0 0
      %3115 = vmatpush1.bf16.msra.mxu0 %v2521
      %3116 = vmatprep.subr.bf16.mxu0 0
      %3117 = vmatpush1.bf16.msra.mxu0 %v2524
      %3118 = vmatprep.subr.bf16.mxu0 0
      %3119 = vmatpush1.bf16.msra.mxu0 %v2527
      %3120 = vmatprep.subr.bf16.mxu0 0
      %3121 = vmatpush1.bf16.msra.mxu0 %v2530
      %3122 = vmatprep.subr.bf16.mxu0 0
      %3123 = vmatpush1.bf16.msra.mxu0 %v2533
      %3124 = vmatprep.subr.bf16.mxu0 0
      %3125 = vmatpush1.bf16.msra.mxu0 %v2536
      %3126 = vmatprep.subr.bf16.mxu0 0
      %3127 = vmatpush1.bf16.msra.mxu0 %v2539
      %3128 = vmatprep.subr.bf16.mxu0 0
      %3129 = vmatpush1.bf16.msra.mxu0 %v2542
      %3130 = vmatprep.subr.bf16.mxu0 0
      %3131 = vmatpush1.bf16.msra.mxu0 %v2545
      %3132 = vmatprep.subr.bf16.mxu0 0
      %3133 = vmatpush1.bf16.msra.mxu0 %v2548
      %3134 = vmatprep.subr.bf16.mxu0 0
      %3135 = vmatpush1.bf16.msra.mxu0 %v2551
      %3136 = vmatprep.subr.bf16.mxu0 0
      %3137 = vmatpush1.bf16.msra.mxu0 %v2554
      %3138 = vmatprep.mubr.bf16.mxu0 %v1921
      %3139 = vmatmul.mubr.bf16.gmra.mrb[0].mxu0 %v1920
      %v3140 = vpop.f32.mrb[0].mxu0
      %v3141 = vadd.f32 %v2128, %v3140
      %v3142 = vpop.f32.mrb[0].mxu0
      %v3143 = vpop.f32.mrb[0].mxu0
      %v3144 = vadd.f32 %v2128, %v3143
      %v3145 = vpop.f32.mrb[0].mxu0
      %3146 = vmatprep.mubr.bf16.mxu0 %v1926
      %3147 = vmatmul.mubr.bf16.gmra.mrb[0].mxu0 %v1925
      %v3148 = vpop.f32.mrb[0].mxu0
      %v3149 = vadd.f32 %v2128, %v3148
      %v3150 = vpop.f32.mrb[0].mxu0
      %v3151 = vpop.f32.mrb[0].mxu0
      %v3152 = vadd.f32 %v2128, %v3151
      %v3153 = vpop.f32.mrb[0].mxu0
      %3154 = vmatprep.mubr.bf16.mxu0 %v1931
      %3155 = vmatmul.mubr.bf16.gmra.mrb[0].mxu0 %v1930
      %v3156 = vpop.f32.mrb[0].mxu0
      %v3157 = vadd.f32 %v2128, %v3156
      %v3158 = vpop.f32.mrb[0].mxu0
      %v3159 = vpop.f32.mrb[0].mxu0
      %v3160 = vadd.f32 %v2128, %v3159
      %v3161 = vpop.f32.mrb[0].mxu0
      %3162 = vmatprep.mubr.bf16.mxu0 %v1936
      %3163 = vmatmul.mubr.bf16.gmra.mrb[0].mxu0 %v1935
      %v3164 = vpop.f32.mrb[0].mxu0
      %v3165 = vadd.f32 %v2128, %v3164
      %v3166 = vpop.f32.mrb[0].mxu0
      %v3167 = vpop.f32.mrb[0].mxu0
      %v3168 = vadd.f32 %v2128, %v3167
      %v3169 = vpop.f32.mrb[0].mxu0
      %3170 = vmatprep.mubr.bf16.mxu0 %v1941
      %3171 = vmatmul.mubr.bf16.gmra.mrb[0].mxu0 %v1940
      %v3172 = vpop.f32.mrb[0].mxu0
      %v3173 = vadd.f32 %v2128, %v3172
      %v3174 = vpop.f32.mrb[0].mxu0
      %v3175 = vpop.f32.mrb[0].mxu0
      %v3176 = vadd.f32 %v2128, %v3175
      %v3177 = vpop.f32.mrb[0].mxu0
      %3178 = vmatprep.mubr.bf16.mxu0 %v1946
      %3179 = vmatmul.mubr.bf16.gmra.mrb[0].mxu0 %v1945
      %v3180 = vpop.f32.mrb[0].mxu0
      %v3181 = vadd.f32 %v2128, %v3180
      %v3182 = vpop.f32.mrb[0].mxu0
      %v3183 = vpop.f32.mrb[0].mxu0
      %v3184 = vadd.f32 %v2128, %v3183
      %v3185 = vpop.f32.mrb[0].mxu0
      %3186 = vmatprep.mubr.bf16.mxu0 %v1951
      %3187 = vmatmul.mubr.bf16.gmra.mrb[0].mxu0 %v1950
      %v3188 = vpop.f32.mrb[0].mxu0
      %v3189 = vadd.f32 %v2128, %v3188
      %v3190 = vpop.f32.mrb[0].mxu0
      %v3191 = vpop.f32.mrb[0].mxu0
      %v3192 = vadd.f32 %v2128, %v3191
      %v3193 = vpop.f32.mrb[0].mxu0
      %3194 = vmatprep.mubr.bf16.mxu0 %v1956
      %3195 = vmatmul.mubr.bf16.gmra.mrb[0].mxu0 %v1955
      %v3196 = vpop.f32.mrb[0].mxu0
      %v3197 = vadd.f32 %v2128, %v3196
      %v3198 = vpop.f32.mrb[0].mxu0
      %v3199 = vpop.f32.mrb[0].mxu0
      %v3200 = vadd.f32 %v2128, %v3199
      %v3201 = vpop.f32.mrb[0].mxu0
      %3202 = vdwg.mxu0
      %3203 = vmatprep.subr.bf16.mxu0 0
      %3204 = vmatpush1.bf16.msra.mxu0 %v2557
      %3205 = vmatprep.subr.bf16.mxu0 0
      %3206 = vmatpush1.bf16.msra.mxu0 %v2560
      %3207 = vmatprep.subr.bf16.mxu0 0
      %3208 = vmatpush1.bf16.msra.mxu0 %v2563
      %3209 = vmatprep.subr.bf16.mxu0 0
      %3210 = vmatpush1.bf16.msra.mxu0 %v2566
      %3211 = vmatprep.subr.bf16.mxu0 0
      %3212 = vmatpush1.bf16.msra.mxu0 %v2569
      %3213 = vmatprep.subr.bf16.mxu0 0
      %3214 = vmatpush1.bf16.msra.mxu0 %v2572
      %3215 = vmatprep.subr.bf16.mxu0 0
      %3216 = vmatpush1.bf16.msra.mxu0 %v2575
      %3217 = vmatprep.subr.bf16.mxu0 0
      %3218 = vmatpush1.bf16.msra.mxu0 %v2578
      %3219 = vmatprep.subr.bf16.mxu0 0
      %3220 = vmatpush1.bf16.msra.mxu0 %v2581
      %3221 = vmatprep.subr.bf16.mxu0 0
      %3222 = vmatpush1.bf16.msra.mxu0 %v2584
      %3223 = vmatprep.subr.bf16.mxu0 0
      %3224 = vmatpush1.bf16.msra.mxu0 %v2587
      %3225 = vmatprep.subr.bf16.mxu0 0
      %3226 = vmatpush1.bf16.msra.mxu0 %v2590
      %3227 = vmatprep.subr.bf16.mxu0 0
      %3228 = vmatpush1.bf16.msra.mxu0 %v2593
      %3229 = vmatprep.subr.bf16.mxu0 0
      %3230 = vmatpush1.bf16.msra.mxu0 %v2596
      %3231 = vmatprep.subr.bf16.mxu0 0
      %3232 = vmatpush1.bf16.msra.mxu0 %v2599
      %3233 = vmatprep.subr.bf16.mxu0 0
      %3234 = vmatpush1.bf16.msra.mxu0 %v2602
      %3235 = vmatprep.mubr.bf16.mxu0 %v1923
      %3236 = vmatmul.mubr.bf16.gmra.mrb[0].mxu0 %v1922
      %v3237 = vpop.f32.mrb[0].mxu0
      %v3238 = vadd.f32 %v3141, %v3237
      %v3239 = vpop.f32.mrb[0].mxu0
      %v3240 = vpop.f32.mrb[0].mxu0
      %v3241 = vadd.f32 %v3144, %v3240
      %v3242 = vpop.f32.mrb[0].mxu0
      %3243 = vmatprep.mubr.bf16.mxu0 %v1928
      %3244 = vmatmul.mubr.bf16.gmra.mrb[0].mxu0 %v1927
      %v3245 = vpop.f32.mrb[0].mxu0
      %v3246 = vadd.f32 %v3149, %v3245
      %v3247 = vpop.f32.mrb[0].mxu0
      %v3248 = vpop.f32.mrb[0].mxu0
      %v3249 = vadd.f32 %v3152, %v3248
      %v3250 = vpop.f32.mrb[0].mxu0
      %3251 = vmatprep.mubr.bf16.mxu0 %v1933
      %3252 = vmatmul.mubr.bf16.gmra.mrb[0].mxu0 %v1932
      %v3253 = vpop.f32.mrb[0].mxu0
      %v3254 = vadd.f32 %v3157, %v3253
      %v3255 = vpop.f32.mrb[0].mxu0
      %v3256 = vpop.f32.mrb[0].mxu0
      %v3257 = vadd.f32 %v3160, %v3256
      %v3258 = vpop.f32.mrb[0].mxu0
      %3259 = vmatprep.mubr.bf16.mxu0 %v1938
      %3260 = vmatmul.mubr.bf16.gmra.mrb[0].mxu0 %v1937
      %v3261 = vpop.f32.mrb[0].mxu0
      %v3262 = vadd.f32 %v3165, %v3261
      %v3263 = vpop.f32.mrb[0].mxu0
      %v3264 = vpop.f32.mrb[0].mxu0
      %v3265 = vadd.f32 %v3168, %v3264
      %v3266 = vpop.f32.mrb[0].mxu0
      %3267 = vmatprep.mubr.bf16.mxu0 %v1943
      %3268 = vmatmul.mubr.bf16.gmra.mrb[0].mxu0 %v1942
      %v3269 = vpop.f32.mrb[0].mxu0
      %v3270 = vadd.f32 %v3173, %v3269
      %v3271 = vpop.f32.mrb[0].mxu0
      %v3272 = vpop.f32.mrb[0].mxu0
      %v3273 = vadd.f32 %v3176, %v3272
      %v3274 = vpop.f32.mrb[0].mxu0
      %3275 = vmatprep.mubr.bf16.mxu0 %v1948
      %3276 = vmatmul.mubr.bf16.gmra.mrb[0].mxu0 %v1947
      %v3277 = vpop.f32.mrb[0].mxu0
      %v3278 = vadd.f32 %v3181, %v3277
      %v3279 = vpop.f32.mrb[0].mxu0
      %v3280 = vpop.f32.mrb[0].mxu0
      %v3281 = vadd.f32 %v3184, %v3280
      %v3282 = vpop.f32.mrb[0].mxu0
      %3283 = vmatprep.mubr.bf16.mxu0 %v1953
      %3284 = vmatmul.mubr.bf16.gmra.mrb[0].mxu0 %v1952
      %v3285 = vpop.f32.mrb[0].mxu0
      %v3286 = vadd.f32 %v3189, %v3285
      %v3287 = vpop.f32.mrb[0].mxu0
      %v3288 = vpop.f32.mrb[0].mxu0
      %v3289 = vadd.f32 %v3192, %v3288
      %v3290 = vpop.f32.mrb[0].mxu0
      %3291 = vmatprep.mubr.bf16.mxu0 %v1958
      %3292 = vmatmul.mubr.bf16.gmra.mrb[0].mxu0 %v1957
      %v3293 = vpop.f32.mrb[0].mxu0
      %v3294 = vadd.f32 %v3197, %v3293
      %v3295 = vpop.f32.mrb[0].mxu0
      %v3296 = vpop.f32.mrb[0].mxu0
      %v3297 = vadd.f32 %v3200, %v3296
      %v3298 = vpop.f32.mrb[0].mxu0
      %3299 = vdwg.mxu0
      %3300 = vmatprep.subr.bf16.mxu0 0
      %3301 = vmatpush1.bf16.msra.mxu0 %v2605
      %3302 = vmatprep.subr.bf16.mxu0 0
      %3303 = vmatpush1.bf16.msra.mxu0 %v2608
      %3304 = vmatprep.subr.bf16.mxu0 0
      %3305 = vmatpush1.bf16.msra.mxu0 %v2611
      %3306 = vmatprep.subr.bf16.mxu0 0
      %3307 = vmatpush1.bf16.msra.mxu0 %v2614
      %3308 = vmatprep.subr.bf16.mxu0 0
      %3309 = vmatpush1.bf16.msra.mxu0 %v2617
      %3310 = vmatprep.subr.bf16.mxu0 0
      %3311 = vmatpush1.bf16.msra.mxu0 %v2765
      %3312 = vmatprep.subr.bf16.mxu0 0
      %3313 = vmatpush1.bf16.msra.mxu0 0
      %3314 = vmatprep.subr.bf16.mxu0 0
      %3315 = vmatpush1.bf16.msra.mxu0 0
      %3316 = vmatprep.subr.bf16.mxu0 0
      %3317 = vmatpush1.bf16.msra.mxu0 0
      %3318 = vmatprep.subr.bf16.mxu0 0
      %3319 = vmatpush1.bf16.msra.mxu0 0
      %3320 = vmatprep.subr.bf16.mxu0 0
      %3321 = vmatpush1.bf16.msra.mxu0 0
      %3322 = vmatprep.subr.bf16.mxu0 0
      %3323 = vmatpush1.bf16.msra.mxu0 0
      %3324 = vmatprep.subr.bf16.mxu0 0
      %3325 = vmatpush1.bf16.msra.mxu0 0
      %3326 = vmatprep.subr.bf16.mxu0 0
      %3327 = vmatpush1.bf16.msra.mxu0 0
      %3328 = vmatprep.subr.bf16.mxu0 0
      %3329 = vmatpush1.bf16.msra.mxu0 0
      %3330 = vmatprep.subr.bf16.mxu0 0
      %3331 = vmatpush1.bf16.msra.mxu0 0
      %3332 = vmatprep.mubr.bf16.mxu0 0
      %3333 = vmatmul.mubr.bf16.gmra.mrb[0].mxu0 %v2734
      %v3334 = vpop.f32.mrb[0].mxu0
      %v3335 = vadd.f32 %v3238, %v3334
      %v3336 = vpop.f32.mrb[0].mxu0
      %v3337 = vpop.f32.mrb[0].mxu0
      %v3338 = vadd.f32 %v3241, %v3337
      %v3339 = vpop.f32.mrb[0].mxu0
      %3340 = vmatprep.mubr.bf16.mxu0 0
      %3341 = vmatmul.mubr.bf16.gmra.mrb[0].mxu0 %v2737
      %v3342 = vpop.f32.mrb[0].mxu0
      %v3343 = vadd.f32 %v3246, %v3342
      %v3344 = vpop.f32.mrb[0].mxu0
      %v3345 = vpop.f32.mrb[0].mxu0
      %v3346 = vadd.f32 %v3249, %v3345
      %v3347 = vpop.f32.mrb[0].mxu0
      %3348 = vmatprep.mubr.bf16.mxu0 0
      %3349 = vmatmul.mubr.bf16.gmra.mrb[0].mxu0 %v2740
      %v3350 = vpop.f32.mrb[0].mxu0
      %v3351 = vadd.f32 %v3254, %v3350
      %v3352 = vpop.f32.mrb[0].mxu0
      %v3353 = vpop.f32.mrb[0].mxu0
      %v3354 = vadd.f32 %v3257, %v3353
      %v3355 = vpop.f32.mrb[0].mxu0
      %3356 = vmatprep.mubr.bf16.mxu0 0
      %3357 = vmatmul.mubr.bf16.gmra.mrb[0].mxu0 %v2743
      %v3358 = vpop.f32.mrb[0].mxu0
      %v3359 = vadd.f32 %v3262, %v3358
      %v3360 = vpop.f32.mrb[0].mxu0
      %v3361 = vpop.f32.mrb[0].mxu0
      %v3362 = vadd.f32 %v3265, %v3361
      %v3363 = vpop.f32.mrb[0].mxu0
      %3364 = vmatprep.mubr.bf16.mxu0 0
      %3365 = vmatmul.mubr.bf16.gmra.mrb[0].mxu0 %v2746
      %v3366 = vpop.f32.mrb[0].mxu0
      %v3367 = vadd.f32 %v3270, %v3366
      %v3368 = vpop.f32.mrb[0].mxu0
      %v3369 = vpop.f32.mrb[0].mxu0
      %v3370 = vadd.f32 %v3273, %v3369
      %v3371 = vpop.f32.mrb[0].mxu0
      %3372 = vmatprep.mubr.bf16.mxu0 0
      %3373 = vmatmul.mubr.bf16.gmra.mrb[0].mxu0 %v2749
      %v3374 = vpop.f32.mrb[0].mxu0
      %v3375 = vadd.f32 %v3278, %v3374
      %v3376 = vpop.f32.mrb[0].mxu0
      %v3377 = vpop.f32.mrb[0].mxu0
      %v3378 = vadd.f32 %v3281, %v3377
      %v3379 = vpop.f32.mrb[0].mxu0
      %3380 = vmatprep.mubr.bf16.mxu0 0
      %3381 = vmatmul.mubr.bf16.gmra.mrb[0].mxu0 %v2752
      %v3382 = vpop.f32.mrb[0].mxu0
      %v3383 = vadd.f32 %v3286, %v3382
      %v3384 = vpop.f32.mrb[0].mxu0
      %v3385 = vpop.f32.mrb[0].mxu0
      %v3386 = vadd.f32 %v3289, %v3385
      %v3387 = vpop.f32.mrb[0].mxu0
      %3388 = vmatprep.mubr.bf16.mxu0 0
      %3389 = vmatmul.mubr.bf16.gmra.mrb[0].mxu0 %v2755
      %v3390 = vpop.f32.mrb[0].mxu0
      %v3391 = vadd.f32 %v3294, %v3390
      %v3392 = vpop.f32.mrb[0].mxu0
      %v3393 = vpop.f32.mrb[0].mxu0
      %v3394 = vadd.f32 %v3297, %v3393
      %v3395 = vpop.f32.mrb[0].mxu0
      %3396 = vdwg.mxu0
      %p3397 = scmp.lt.s32.totalorder %s124, 4
      %v3398 = vmax.f32 %v3028, 0.0
      %v3399 = vmax.f32 %v3030, 0.0
      %v3400 = vmax.f32 %v3335, 0.0
      %v3401 = vmax.f32 %v3032, 0.0
      %v3402 = vmax.f32 %v3034, 0.0
      %v3403 = vmax.f32 %v3338, 0.0
      %v3404 = vmax.f32 %v3038, 0.0
      %v3405 = vmax.f32 %v3040, 0.0
      %v3406 = vmax.f32 %v3343, 0.0
      %v3407 = vmax.f32 %v3042, 0.0
      %v3408 = vmax.f32 %v3044, 0.0
      %v3409 = vmax.f32 %v3346, 0.0
      %v3410 = vmax.f32 %v3048, 0.0
      %v3411 = vmax.f32 %v3050, 0.0
      %v3412 = vmax.f32 %v3351, 0.0
      %v3413 = vmax.f32 %v3052, 0.0
      %v3414 = vmax.f32 %v3054, 0.0
      %v3415 = vmax.f32 %v3354, 0.0
      %v3416 = vmax.f32 %v3058, 0.0
      %v3417 = vmax.f32 %v3060, 0.0
      %v3418 = vmax.f32 %v3359, 0.0
      %v3419 = vmax.f32 %v3062, 0.0
      %v3420 = vmax.f32 %v3064, 0.0
      %v3421 = vmax.f32 %v3362, 0.0
      %v3422 = vmax.f32 %v3068, 0.0
      %v3423 = vmax.f32 %v3070, 0.0
      %v3424 = vmax.f32 %v3367, 0.0
      %v3425 = vmax.f32 %v3072, 0.0
      %v3426 = vmax.f32 %v3074, 0.0
      %v3427 = vmax.f32 %v3370, 0.0
      %v3428 = vmax.f32 %v3078, 0.0
      %v3429 = vmax.f32 %v3080, 0.0
      %v3430 = vmax.f32 %v3375, 0.0
      %v3431 = vmax.f32 %v3082, 0.0
      %v3432 = vmax.f32 %v3084, 0.0
      %v3433 = vmax.f32 %v3378, 0.0
      %v3434 = vmax.f32 %v3088, 0.0
      %v3435 = vmax.f32 %v3090, 0.0
      %v3436 = vmax.f32 %v3383, 0.0
      %v3437 = vmax.f32 %v3092, 0.0
      %v3438 = vmax.f32 %v3094, 0.0
      %v3439 = vmax.f32 %v3386, 0.0
      %v3440 = vmax.f32 %v3098, 0.0
      %v3441 = vmax.f32 %v3100, 0.0
      %v3442 = vmax.f32 %v3391, 0.0
      %v3443 = vmax.f32 %v3102, 0.0
      %v3444 = vmax.f32 %v3104, 0.0
      %v3445 = vmax.f32 %v3394, 0.0
      %s3446 = scalar_select %p3397, 1, 0
      %v3447 = vstv %s3446
      %vm3448 = vcmp.eq.s32.totalorder %v3447, 1
      %v3449 = vsel %vm3448, %v3398, %v3028
      %v3450 = vsel %vm3448, %v3399, %v3030
      %v3451 = vsel %vm3448, %v3400, %v3335
      %v3452 = vsel %vm3448, %v3401, %v3032
      %v3453 = vsel %vm3448, %v3402, %v3034
      %v3454 = vsel %vm3448, %v3403, %v3338
      %v3455 = vsel %vm3448, %v3404, %v3038
      %v3456 = vsel %vm3448, %v3405, %v3040
      %v3457 = vsel %vm3448, %v3406, %v3343
      %v3458 = vsel %vm3448, %v3407, %v3042
      %v3459 = vsel %vm3448, %v3408, %v3044
      %v3460 = vsel %vm3448, %v3409, %v3346
      %v3461 = vsel %vm3448, %v3410, %v3048
      %v3462 = vsel %vm3448, %v3411, %v3050
      %v3463 = vsel %vm3448, %v3412, %v3351
      %v3464 = vsel %vm3448, %v3413, %v3052
      %v3465 = vsel %vm3448, %v3414, %v3054
      %v3466 = vsel %vm3448, %v3415, %v3354
      %v3467 = vsel %vm3448, %v3416, %v3058
      %v3468 = vsel %vm3448, %v3417, %v3060
      %v3469 = vsel %vm3448, %v3418, %v3359
      %v3470 = vsel %vm3448, %v3419, %v3062
      %v3471 = vsel %vm3448, %v3420, %v3064
      %v3472 = vsel %vm3448, %v3421, %v3362
      %v3473 = vsel %vm3448, %v3422, %v3068
      %v3474 = vsel %vm3448, %v3423, %v3070
      %v3475 = vsel %vm3448, %v3424, %v3367
      %v3476 = vsel %vm3448, %v3425, %v3072
      %v3477 = vsel %vm3448, %v3426, %v3074
      %v3478 = vsel %vm3448, %v3427, %v3370
      %v3479 = vsel %vm3448, %v3428, %v3078
      %v3480 = vsel %vm3448, %v3429, %v3080
      %v3481 = vsel %vm3448, %v3430, %v3375
      %v3482 = vsel %vm3448, %v3431, %v3082
      %v3483 = vsel %vm3448, %v3432, %v3084
      %v3484 = vsel %vm3448, %v3433, %v3378
      %v3485 = vsel %vm3448, %v3434, %v3088
      %v3486 = vsel %vm3448, %v3435, %v3090
      %v3487 = vsel %vm3448, %v3436, %v3383
      %v3488 = vsel %vm3448, %v3437, %v3092
      %v3489 = vsel %vm3448, %v3438, %v3094
      %v3490 = vsel %vm3448, %v3439, %v3386
      %v3491 = vsel %vm3448, %v3440, %v3098
      %v3492 = vsel %vm3448, %v3441, %v3100
      %v3493 = vsel %vm3448, %v3442, %v3391
      %v3494 = vsel %vm3448, %v3443, %v3102
      %v3495 = vsel %vm3448, %v3444, %v3104
      %v3496 = vsel %vm3448, %v3445, %v3394
    $region38: #{tpu_custom_call.1} parent=1 // loop_footer
      %s128 = sadd.s32 1, %s124
    $region39: #{tpu_custom_call.1} parent=1 // loop_footer_branch
      %123 = sbr.rel target = $region35
    $region40: #{tpu_custom_call.1} parent=1 // loop_exit
      _
    %v3497 = vld [vmem:[%s3] sm:$0xf]
    %v3498 = vpack.c.bf16 %v132, %v129
    %v3499 = vpack.c.bf16 %v133, %v130
    %v3500 = vpack.c.bf16 %v134, %v131
    %v3501 = vpack.c.bf16 %v138, %v135
    %v3502 = vpack.c.bf16 %v139, %v136
    %v3503 = vpack.c.bf16 %v140, %v137
    %v3504 = vpack.c.bf16 %v144, %v141
    %v3505 = vpack.c.bf16 %v145, %v142
    %v3506 = vpack.c.bf16 %v146, %v143
    %v3507 = vpack.c.bf16 %v150, %v147
    %v3508 = vpack.c.bf16 %v151, %v148
    %v3509 = vpack.c.bf16 %v152, %v149
    %v3510 = vpack.c.bf16 %v156, %v153
    %v3511 = vpack.c.bf16 %v157, %v154
    %v3512 = vpack.c.bf16 %v158, %v155
    %v3513 = vpack.c.bf16 %v162, %v159
    %v3514 = vpack.c.bf16 %v163, %v160
    %v3515 = vpack.c.bf16 %v164, %v161
    %v3516 = vpack.c.bf16 %v168, %v165
    %v3517 = vpack.c.bf16 %v169, %v166
    %v3518 = vpack.c.bf16 %v170, %v167
    %v3519 = vpack.c.bf16 %v174, %v171
    %v3520 = vpack.c.bf16 %v175, %v172
    %v3521 = vpack.c.bf16 %v176, %v173
    %3522 = vmatprep.subr.bf16.mxu0 %v3499
    %3523 = vmatpush1.bf16.msra.mxu0 %v3498
    %3524 = vmatprep.subr.bf16.mxu0 %v3502
    %3525 = vmatpush1.bf16.msra.mxu0 %v3501
    %3526 = vmatprep.subr.bf16.mxu0 %v3505
    %3527 = vmatpush1.bf16.msra.mxu0 %v3504
    %3528 = vmatprep.subr.bf16.mxu0 %v3508
    %3529 = vmatpush1.bf16.msra.mxu0 %v3507
    %3530 = vmatprep.subr.bf16.mxu0 %v3511
    %3531 = vmatpush1.bf16.msra.mxu0 %v3510
    %3532 = vmatprep.subr.bf16.mxu0 %v3514
    %3533 = vmatpush1.bf16.msra.mxu0 %v3513
    %3534 = vmatprep.subr.bf16.mxu0 %v3517
    %3535 = vmatpush1.bf16.msra.mxu0 %v3516
    %3536 = vmatprep.subr.bf16.mxu0 %v3520
    %3537 = vmatpush1.bf16.msra.mxu0 %v3519
    %3538 = vmatprep.subr.bf16.mxu0 0
    %3539 = vmatpush1.bf16.msra.mxu0 0
    %3540 = vmatprep.subr.bf16.mxu0 0
    %3541 = vmatpush1.bf16.msra.mxu0 0
    %3542 = vmatprep.subr.bf16.mxu0 0
    %3543 = vmatpush1.bf16.msra.mxu0 0
    %3544 = vmatprep.subr.bf16.mxu0 0
    %3545 = vmatpush1.bf16.msra.mxu0 0
    %3546 = vmatprep.subr.bf16.mxu0 0
    %3547 = vmatpush1.bf16.msra.mxu0 0
    %3548 = vmatprep.subr.bf16.mxu0 0
    %3549 = vmatpush1.bf16.msra.mxu0 0
    %3550 = vmatprep.subr.bf16.mxu0 0
    %3551 = vmatpush1.bf16.msra.mxu0 0
    %3552 = vmatprep.subr.bf16.mxu0 0
    %3553 = vmatpush1.bf16.msra.mxu0 0
    %3554 = vmatprep.mubr.bf16.mxu0 0
    %3555 = vmatmul.mubr.bf16.gmra.mrb[0].mxu0 %v3497
    %v3556 = vpop.f32.mrb[0].mxu0
    %v3557 = vadd.f32 0.0, %v3556
    %v3558 = vpop.f32.mrb[0].mxu0
    %v3559 = vadd.f32 0.0, %v3558
    %v3560 = vpop.f32.mrb[0].mxu0
    %v3561 = vpop.f32.mrb[0].mxu0
    %3562 = vdwg.mxu0
    %3563 = vmatprep.subr.bf16.mxu0 0
    %3564 = vmatpush1.bf16.msra.mxu0 %v3500
    %3565 = vmatprep.subr.bf16.mxu0 0
    %3566 = vmatpush1.bf16.msra.mxu0 %v3503
    %3567 = vmatprep.subr.bf16.mxu0 0
    %3568 = vmatpush1.bf16.msra.mxu0 %v3506
    %3569 = vmatprep.subr.bf16.mxu0 0
    %3570 = vmatpush1.bf16.msra.mxu0 %v3509
    %3571 = vmatprep.subr.bf16.mxu0 0
    %3572 = vmatpush1.bf16.msra.mxu0 %v3512
    %3573 = vmatprep.subr.bf16.mxu0 0
    %3574 = vmatpush1.bf16.msra.mxu0 %v3515
    %3575 = vmatprep.subr.bf16.mxu0 0
    %3576 = vmatpush1.bf16.msra.mxu0 %v3518
    %3577 = vmatprep.subr.bf16.mxu0 0
    %3578 = vmatpush1.bf16.msra.mxu0 %v3521
    %3579 = vmatprep.subr.bf16.mxu0 0
    %3580 = vmatpush1.bf16.msra.mxu0 0
    %3581 = vmatprep.subr.bf16.mxu0 0
    %3582 = vmatpush1.bf16.msra.mxu0 0
    %3583 = vmatprep.subr.bf16.mxu0 0
    %3584 = vmatpush1.bf16.msra.mxu0 0
    %3585 = vmatprep.subr.bf16.mxu0 0
    %3586 = vmatpush1.bf16.msra.mxu0 0
    %3587 = vmatprep.subr.bf16.mxu0 0
    %3588 = vmatpush1.bf16.msra.mxu0 0
    %3589 = vmatprep.subr.bf16.mxu0 0
    %3590 = vmatpush1.bf16.msra.mxu0 0
    %3591 = vmatprep.subr.bf16.mxu0 0
    %3592 = vmatpush1.bf16.msra.mxu0 0
    %3593 = vmatprep.subr.bf16.mxu0 0
    %3594 = vmatpush1.bf16.msra.mxu0 0
    %3595 = vmatprep.mubr.bf16.mxu0 0
    %3596 = vmatmul.mubr.bf16.gmra.mrb[0].mxu0 %v3497
    %v3597 = vpop.f32.mrb[0].mxu0
    %v3598 = vadd.f32 0.0, %v3597
    %v3599 = vpop.f32.mrb[0].mxu0
    %v3600 = vpop.f32.mrb[0].mxu0
    %v3601 = vpop.f32.mrb[0].mxu0
    %3602 = vdwg.mxu0
    %3603 = vst [vmem:[#allocation2] sm:$0xff] %v3557
    %3604 = vst [vmem:[#allocation2 + $0x8] sm:$0xff] %v3559
    %vm3605 = vcmask 359424
    %3606 = vst.msk [vmem:[#allocation2 + $0x10] sm:$0xff] %vm3605, %v3598
    // Predicated region
    $region41: #{tpu_custom_call.1} parent=1 // pred_check
      _
    $region42: #{tpu_custom_call.1} parent=1 // pred_check_branch
      %3608 = sbr.rel (0) target = $region44
    $region43: #{tpu_custom_call.1} parent=1 // pred_region
      %s3610 = ssub.s32 384, 384
      %3611 = vsyncadd [#allocation3], %s3610
      %s3613 = sshll.u32 [#allocation2], 4
      %s3614 = int_to_ptr.vmem [resolvable:$true] %s3613
      %3616 = dma.vmem_to_hbm [thread:$0]  %s3614, 384, %s8, [#allocation3]
    $region44: #{tpu_custom_call.1} parent=1 // pred_fallthru
      _
    // Predicated region
    $region45: #{tpu_custom_call.1} parent=1 // pred_check
      _
    $region46: #{tpu_custom_call.1} parent=1 // pred_check_branch
      %3618 = sbr.rel (0) target = $region48
    $region47: #{tpu_custom_call.1} parent=1 // pred_region
      %3619 = dma.done [#allocation3], 384
    $region48: #{tpu_custom_call.1} parent=1 // pred_fallthru
      _
    %3620 = vsyncpa [#allocation3], 1

</llo_original>
